<compile_context>
chip_gen: v7x
topology: tpu7x:2x2x1
jax: 0.10.0
libtpu: 0.0.40
codegen_flags: <defaults>
</compile_context>

<pallas_src>
import functools
import math

import numpy as np
import jax
import jax.numpy as jnp
from jax import lax
from jax.experimental import pallas as pl
from jax.experimental.pallas import tpu as pltpu


# ----------------------------------------------------------------------------
# in-kernel helpers (traced inside Pallas kernel bodies)
# ----------------------------------------------------------------------------

def _dot(a, w):
    """bf16 MXU matmul with fp32 accumulation (w already stored as bf16)."""
    return jnp.dot(a.astype(jnp.bfloat16), w, preferred_element_type=jnp.float32)


def _layernorm(x, g, b, eps):
    mu = jnp.mean(x, axis=-1, keepdims=True)
    xc = x - mu
    var = jnp.mean(xc * xc, axis=-1, keepdims=True)
    return xc * lax.rsqrt(var + eps) * g + b


def _gelu_tanh(x):
    # TODO(synk): nn.GELU() in the adapters is exact (erf); the tanh
    # approximation is used inside Mosaic kernels since erf lowering there is
    # not guaranteed.
    c = math.sqrt(2.0 / math.pi)
    return 0.5 * x * (1.0 + jnp.tanh(c * (x + 0.044715 * x * x * x)))


def _quick_gelu(x):
    return x * jax.nn.sigmoid(1.702 * x)


def _adapter(x, dw, db, uw, ub):
    h = _dot(x, dw) + db
    h = _gelu_tanh(h)
    return _dot(h, uw) + ub


# ----------------------------------------------------------------------------
# Pallas kernels
# ----------------------------------------------------------------------------

def _embed_kernel(p_ref, w_ref, cls_ref, pe_ref, g_ref, b_ref, o_ref, *, eps):
    """Fused conv1-as-matmul patch embed + cls concat + pos add + ln_pre
    for ONE frame."""
    tok = jnp.dot(p_ref[0, 0], w_ref[...],
                  preferred_element_type=jnp.float32)          # (P, D)
    full = jnp.concatenate([cls_ref[...], tok], axis=0)        # (N, D)
    o_ref[0, 0] = _layernorm(full + pe_ref[0], g_ref[...], b_ref[...], eps)


def _block_kernel(x_ref,
                  ln1g_ref, ln1b_ref, wqkv_ref, bqkv_ref, wout_ref, bout_ref,
                  a1dw_ref, a1db_ref, a1uw_ref, a1ub_ref,
                  ln2g_ref, ln2b_ref, wfc_ref, bfc_ref, wproj_ref, bproj_ref,
                  a2dw_ref, a2db_ref, a2uw_ref, a2ub_ref,
                  o_ref, *, n_head, n_temporal, eps):
    """One full residual block (attention half + MLP half) for ONE frame."""
    x = x_ref[0, 0]                                   # (N, D) fp32 residual
    N, D = x.shape
    hd = D // n_head
    scale = 1.0 / math.sqrt(hd)

    frame = pl.program_id(1)                          # frame index within clip
    m = (frame < n_temporal).astype(jnp.float32)      # 1.0 temporal / 0.0 spatial
    path = (frame >= n_temporal).astype(jnp.int32)    # 0 temporal / 1 spatial

    # ---- attention half ---------------------------------------------------
    ln1 = _layernorm(x, ln1g_ref[...], ln1b_ref[...], eps)
    ln1_bf = ln1.astype(jnp.bfloat16)

    # single fused QKV matmul (review item 2)
    qkv = jnp.dot(ln1_bf, wqkv_ref[...], preferred_element_type=jnp.float32)
    qkv = (qkv + bqkv_ref[...]).astype(jnp.bfloat16)  # (N, 3D)

    heads = []
    for h in range(n_head):                           # static unroll over heads
        q_h = qkv[:, h * hd:(h + 1) * hd]
        k_h = qkv[:, D + h * hd:D + (h + 1) * hd]
        v_h = qkv[:, 2 * D + h * hd:2 * D + (h + 1) * hd]
        s = lax.dot_general(q_h, k_h, (((1,), (1,)), ((), ())),
                            preferred_element_type=jnp.float32) * scale
        s = s - jnp.max(s, axis=-1, keepdims=True)
        p = jnp.exp(s)
        p = p * pl.reciprocal(jnp.sum(p, axis=-1, keepdims=True), approx=True)
        heads.append(jnp.dot(p.astype(jnp.bfloat16), v_h,
                             preferred_element_type=jnp.float32))
    # lane-contiguous head concat + ONE dense out_proj (review item 3)
    attn = _dot(jnp.concatenate(heads, axis=-1), wout_ref[...]) + bout_ref[...]

    # temporal frames: serial adapter on attn output (attn itself is NOT re-added)
    # spatial  frames: attention + parallel adapter on ln_1 output
    ad1 = _adapter(m * attn + (1.0 - m) * ln1,
                   a1dw_ref[path], a1db_ref[path], a1uw_ref[path], a1ub_ref[path])
    x1 = x + ad1 + (1.0 - m) * attn

    # ---- MLP half -----------------------------------------------------------
    ln2 = _layernorm(x1, ln2g_ref[...], ln2b_ref[...], eps)
    hid = _dot(ln2, wfc_ref[...]) + bfc_ref[...]
    mlp = _dot(_quick_gelu(hid), wproj_ref[...]) + bproj_ref[...]

    ad2 = _adapter(m * mlp + (1.0 - m) * ln2,
                   a2dw_ref[path], a2db_ref[path], a2uw_ref[path], a2ub_ref[path])
    o_ref[0, 0] = x1 + ad2 + (1.0 - m) * mlp


def _post_head_kernel(cls_ref, lg_ref, lb_ref, proj_ref, hwt_ref, hws_ref, hb_ref,
                      o_ref, *, t_frames, eps):
    """Fused ln_post + proj + dual-path temporal/spatial pooling + head linear."""
    x = cls_ref[0]                                   # (Tp, D) cls tokens of one clip
    ln = _layernorm(x, lg_ref[...], lb_ref[...], eps)
    feat = _dot(ln, proj_ref[...])                   # (Tp, out_dim)
    mean_t = jnp.mean(feat[:t_frames], axis=0, keepdims=True)
    mean_s = jnp.mean(feat[t_frames:], axis=0, keepdims=True)
    # head Linear(2*out, out) expressed as two half-matmuls (pre-split weights)
    o_ref[0] = _dot(mean_t, hwt_ref[...]) + _dot(mean_s, hws_ref[...]) + hb_ref[...]


# ----------------------------------------------------------------------------
# pallas_call wrappers
# ----------------------------------------------------------------------------

def _cparams(semantics):
    return pltpu.CompilerParams(dimension_semantics=semantics,
                                vmem_limit_bytes=64 * 1024 * 1024)


def _const_spec(a):
    # grid-invariant block: fetched once, kept resident across the grid.
    # TODO(synk): at real model scale add pipeline_mode=pl.Buffered(1) here to
    # single-buffer the weights (v7x 64 MiB VMEM budget).
    zeros = (0,) * a.ndim
    return pl.BlockSpec(a.shape, lambda *_args, _z=zeros: _z)


def embed_call(patches, pe, conv_w, cls_emb, ln_g, ln_b, eps=1e-5):
    B, Tp, P, K = patches.shape
    _, N, D = pe.shape
    return pl.pallas_call(
        functools.partial(_embed_kernel, eps=eps),
        out_shape=jax.ShapeDtypeStruct((B, Tp, N, D), jnp.float32),
        grid=(B, Tp),
        in_specs=[pl.BlockSpec((1, 1, P, K), lambda b, t: (b, t, 0, 0)),
                  _const_spec(conv_w),
                  _const_spec(cls_emb),
                  pl.BlockSpec((1, N, D), lambda b, t: (t, 0, 0)),
                  _const_spec(ln_g), _const_spec(ln_b)],
        out_specs=pl.BlockSpec((1, 1, N, D), lambda b, t: (b, t, 0, 0)),
        compiler_params=_cparams(("parallel", "parallel")),
    )(patches, conv_w, cls_emb, pe, ln_g, ln_b)


def block_call(x, blk, n_head, n_temporal, eps=1e-5):
    B, Tp, N, D = x.shape
    ws = [blk["ln_1_g"], blk["ln_1_b"], blk["w_qkv"], blk["b_qkv"],
          blk["w_out"], blk["b_out"],
          blk["attn_ad_dw"], blk["attn_ad_db"], blk["attn_ad_uw"], blk["attn_ad_ub"],
          blk["ln_2_g"], blk["ln_2_b"], blk["w_fc"], blk["b_fc"],
          blk["w_proj"], blk["b_proj"],
          blk["mlp_ad_dw"], blk["mlp_ad_db"], blk["mlp_ad_uw"], blk["mlp_ad_ub"]]
    in_specs = ([pl.BlockSpec((1, 1, N, D), lambda b, t: (b, t, 0, 0))]
                + [_const_spec(w) for w in ws])
    return pl.pallas_call(
        functools.partial(_block_kernel, n_head=n_head,
                          n_temporal=n_temporal, eps=eps),
        out_shape=jax.ShapeDtypeStruct((B, Tp, N, D), jnp.float32),
        grid=(B, Tp),
        in_specs=in_specs,
        out_specs=pl.BlockSpec((1, 1, N, D), lambda b, t: (b, t, 0, 0)),
        compiler_params=_cparams(("parallel", "parallel")),
    )(x, *ws)


def post_head_call(cls_tok, params, t_frames, out_dim, eps=1e-5):
    B, Tp, D = cls_tok.shape
    ws = [params["ln_post_g"], params["ln_post_b"], params["proj"],
          params["head_w_t"], params["head_w_s"], params["head_b"]]
    return pl.pallas_call(
        functools.partial(_post_head_kernel, t_frames=t_frames, eps=eps),
        out_shape=jax.ShapeDtypeStruct((B, 1, out_dim), jnp.float32),
        grid=(B,),
        in_specs=([pl.BlockSpec((1, Tp, D), lambda i: (i, 0, 0))]
                  + [_const_spec(w) for w in ws]),
        out_specs=pl.BlockSpec((1, 1, out_dim), lambda i: (i, 0, 0)),
        compiler_params=_cparams(("parallel",)),
    )(cls_tok, *ws)


# ----------------------------------------------------------------------------
# host-side precomputed constants (hoisted out of the traced forward)
# ----------------------------------------------------------------------------

def _np_bilinear_matrix(in_size, out_size):
    # F.interpolate(mode="bilinear", align_corners=False, no antialias) as a matrix.
    # TODO(synk): torchvision transforms.Resize may antialias tensor inputs
    # (version dependent); plain bilinear sampling is implemented here.
    m = np.zeros((out_size, in_size), np.float32)
    scale = in_size / out_size
    for i in range(out_size):
        src = (i + 0.5) * scale - 0.5
        src = min(max(src, 0.0), in_size - 1)
        lo = int(np.floor(src))
        hi = min(lo + 1, in_size - 1)
        w = src - lo
        m[i, lo] += 1.0 - w
        m[i, hi] += w
    return m


def _make_tpe(Tt, N, D):
    # TemporalPositionalEmbedding (4-D branch); depends only on static shapes.
    rs = int(math.isqrt(N - 1))
    nfw = 4
    w = 16 // nfw
    vals = np.arange(16 * Tt, dtype=np.float32) + 1.0
    temp = np.broadcast_to(vals[:, None, None], (16 * Tt, w, w))
    temp = temp.reshape(Tt, nfw, nfw, w, w).transpose(0, 1, 3, 2, 4).reshape(Tt, 16, 16)
    wy = _np_bilinear_matrix(16, rs)
    wx = _np_bilinear_matrix(16, rs)
    temp = np.einsum('oh,thw->tow', wy, temp)
    temp = np.einsum('tow,pw->top', temp, wx)                     # (Tt, rs, rs)
    emb = temp.reshape(Tt, -1)
    emb = np.concatenate([np.zeros((Tt, 1), np.float32), emb], axis=1).reshape(-1)
    inv_freq = 1.0 / (10000.0 ** (np.arange(0, D, 2, dtype=np.float32) / D))
    e = emb[:, None] * inv_freq[None, :]
    e = np.stack([np.sin(e), np.cos(e)], axis=-1).reshape(Tt * N, D)
    return e.reshape(Tt, N, D).astype(np.float32)


# ----------------------------------------------------------------------------
# XLA glue: grid-like frameset + top-level forward
# ----------------------------------------------------------------------------

def grid_like_frameset(x, T, wy, wx):
    B, C, _, H, W = x.shape
    stride = T // 8
    bw = 4
    ntf = T // (bw * bw)
    samples_s = x[:, :, ::stride]                                  # (B, C, 8, H, W)
    st = x.reshape(B, C, ntf, bw, bw, H, W)
    st = st.transpose(0, 1, 2, 3, 5, 4, 6).reshape(B * C * ntf, bw * H, bw * W)
    # bilinear downscale expressed as two small matmuls (precomputed tables)
    st = jnp.einsum('oh,bhw->bow', wy, st)
    st = jnp.einsum('bow,pw->bop', st, wx)
    st = st.reshape(B, C, ntf, H, W)
    xc = jnp.concatenate([st, samples_s], axis=2)                  # (B, C, ntf+8, H, W)
    xc = xc.transpose(0, 2, 1, 3, 4).reshape(B * (8 + ntf), C, H, W)
    return xc


def vit_clip_dualpath_forward(params, x, cfg):
    B, C, T, H, W = x.shape
    ps = cfg["patch_size"]
    D = cfg["width"]
    out_dim = cfg["output_dim"]
    Tt = T // 16
    Ts = 8
    Tp = Tt + Ts                                  # == self.num_frames
    gh = H // ps
    P = gh * gh
    N = P + 1

    # dual-path frame construction (XLA preprocessing, resize tables precomputed)
    xg = grid_like_frameset(x, T, params["resize_wy"], params["resize_wx"])

    # conv1 patch embedding expressed as patchify (XLA) + in-kernel matmul
    patches = xg.reshape(B, Tp, C, gh, ps, gh, ps)
    patches = patches.transpose(0, 1, 3, 5, 2, 4, 6).reshape(B, Tp, P, C * ps * ps)
    patches = patches.astype(jnp.bfloat16)        # MXU input dtype; halves DMA

    # per-frame positional embeddings: temporal frames get tpe + spatial_pos,
    # spatial frames get the CLIP positional embedding.
    pe_t = params["tpe"] + params["spatial_positional_embedding"][None]
    pe_s = jnp.broadcast_to(params["positional_embedding"][None], (Ts, N, D))
    pe = jnp.concatenate([pe_t, pe_s], axis=0)    # (Tp, N, D)

    # fused patch-embed + cls concat + pos add + ln_pre -> (B, Tp, N, D) fp32
    xt = embed_call(patches, pe, params["conv_w"], params["class_embedding"],
                    params["ln_pre_g"], params["ln_pre_b"])

    # transformer: ONE fused Pallas kernel per residual block, grid (B, Tp)
    for blk in params["blocks"]:
        xt = block_call(xt, blk, cfg["heads"], Tt)

    # cls token per frame -> fused ln_post + proj + dual-path pooling + head
    cls_tok = xt[:, :, 0, :]                      # (B, Tp, D)
    head = post_head_call(cls_tok, params, Tt, out_dim)            # (B, 1, out)
    head = jax.nn.gelu(head, approximate=False)   # exact GELU of the head (XLA)

    return head.reshape(B, out_dim, 1, 1, 1)      # '(b t) d -> b d t' + unsqueezes


# ----------------------------------------------------------------------------
# deterministic parameter initialization (shapes from the module __init__)
# ----------------------------------------------------------------------------

def init_params(key, cfg):
    D = cfg["width"]
    ps = cfg["patch_size"]
    res = cfg["input_resolution"]
    out_dim = cfg["output_dim"]
    layers = cfg["layers"]
    T = cfg["num_frames"]
    C = 3
    P = (res // ps) ** 2
    N = P + 1
    Tt = T // 16
    bott = int(cfg["adapter_scale"] * D)
    scale = D ** -0.5

    keys = iter(jax.random.split(key, 32 + layers * 16))
    nk = lambda: next(keys)

    def nrm(shape, s=0.02):
        return s * jax.random.normal(nk(), shape, dtype=jnp.float32)

    zeros = lambda shape: jnp.zeros(shape, jnp.float32)
    ones = lambda shape: jnp.ones(shape, jnp.float32)
    bf16 = lambda a: a.astype(jnp.bfloat16)

    # NOTE: adapter up-proj is zero-init (LoRA) in the reference; deterministic
    # random is used here so the adapter compute path is actually exercised.
    def adapter_stack():
        dw = bf16(jnp.stack([nrm((D, bott)), nrm((D, bott))]))   # [temporal, spatial]
        db = zeros((2, 1, bott))
        uw = bf16(jnp.stack([nrm((bott, D)), nrm((bott, D))]))
        ub = zeros((2, 1, D))
        return dw, db, uw, ub

    blocks = []
    for _ in range(layers):
        blk = {
            "ln_1_g": ones((1, D)), "ln_1_b": zeros((1, D)),
            # fused, pre-transposed QKV weight (D, 3D): [q | k | v] head-major lanes
            "w_qkv": bf16(nrm((D, 3 * D))), "b_qkv": zeros((1, 3 * D)),
            "w_out": bf16(nrm((D, D))), "b_out": zeros((1, D)),
            "ln_2_g": ones((1, D)), "ln_2_b": zeros((1, D)),
            "w_fc": bf16(nrm((D, 4 * D))), "b_fc": zeros((1, 4 * D)),
            "w_proj": bf16(nrm((4 * D, D))), "b_proj": zeros((1, D)),
        }
        (blk["attn_ad_dw"], blk["attn_ad_db"],
         blk["attn_ad_uw"], blk["attn_ad_ub"]) = adapter_stack()
        (blk["mlp_ad_dw"], blk["mlp_ad_db"],
         blk["mlp_ad_uw"], blk["mlp_ad_ub"]) = adapter_stack()
        blocks.append(blk)

    conv_w = nrm((D, C, ps, ps))                       # torch conv layout
    conv_w = bf16(conv_w.reshape(D, C * ps * ps).T)    # pre-transposed (K, D)

    return {
        "conv_w": conv_w,
        "class_embedding": scale * jax.random.normal(nk(), (1, D), dtype=jnp.float32),
        "positional_embedding": scale * jax.random.normal(nk(), (N, D), dtype=jnp.float32),
        "spatial_positional_embedding": scale * jax.random.normal(nk(), (N, D), dtype=jnp.float32),
        "ln_pre_g": ones((1, D)), "ln_pre_b": zeros((1, D)),
        "ln_post_g": ones((1, D)), "ln_post_b": zeros((1, D)),
        "proj": bf16(scale * jax.random.normal(nk(), (D, out_dim), dtype=jnp.float32)),
        # head Linear(2*out, out) stored pre-transposed and pre-split
        "head_w_t": bf16(nrm((out_dim, out_dim))),
        "head_w_s": bf16(nrm((out_dim, out_dim))),
        "head_b": zeros((1, out_dim)),
        "blocks": blocks,
        # precomputed constant buffers (hoisted out of the traced forward)
        "tpe": jnp.asarray(_make_tpe(Tt, N, D)),
        "resize_wy": jnp.asarray(_np_bilinear_matrix(4 * res, res)),
        "resize_wx": jnp.asarray(_np_bilinear_matrix(4 * res, res)),
    }


# ----------------------------------------------------------------------------
# main
# ----------------------------------------------------------------------------

if __name__ == "__main__":
    cfg = dict(
        input_resolution=16,   # H = W = 16
        num_frames=16,         # T = 16 -> Tt = 1, num_frames (Tp) = 9
        patch_size=8,          # 2x2 patch grid -> N = 5 tokens per frame
        width=128,             # lane-dense D
        layers=2,
        heads=4,               # head_dim = 32
        adapter_scale=0.5,     # bottleneck = 64
        output_dim=128,        # lane-dense head output
    )

    key = jax.random.PRNGKey(0)
    kx, kp = jax.random.split(key)
    x = jax.random.normal(
        kx,
        (2, 3, cfg["num_frames"], cfg["input_resolution"], cfg["input_resolution"]),
        dtype=jnp.float32)
    params = init_params(kp, cfg)

    fwd = jax.jit(functools.partial(vit_clip_dualpath_forward, cfg=cfg))
    out = jax.block_until_ready(fwd(params, x))

    assert out.shape == (2, cfg["output_dim"], 1, 1, 1), out.shape
    assert bool(jnp.all(jnp.isfinite(out)))
    print("KERNEL_OK")
</pallas_src>

<mosaic_0001>
module attributes {stable_mosaic.version = 11 : i64} {
  func.func @_embed_kernel(%arg0: i32, %arg1: i32, %arg2: memref<1x1x4x192xbf16, #tpu.memory_space<vmem>>, %arg3: memref<192x128xbf16, #tpu.memory_space<vmem>>, %arg4: memref<1x128xf32, #tpu.memory_space<vmem>>, %arg5: memref<1x5x128xf32, #tpu.memory_space<vmem>>, %arg6: memref<1x128xf32, #tpu.memory_space<vmem>>, %arg7: memref<1x128xf32, #tpu.memory_space<vmem>>, %arg8: memref<1x1x5x128xf32, #tpu.memory_space<vmem>>) attributes {dimension_semantics = [#tpu.dimension_semantics<parallel>, #tpu.dimension_semantics<parallel>], iteration_bounds = array<i64: 2, 9>, scalar_prefetch = 0 : i64, scratch_operands = 0 : i64, tpu.core_type = #tpu.core_type<tc>, window_params = [{transform_indices = @transform_0, window_bounds = array<i64: 1, 1, 4, 192>}, {pipeline_mode = #tpu.pipeline_mode<synchronous>, transform_indices = @transform_1, window_bounds = array<i64: 192, 128>}, {pipeline_mode = #tpu.pipeline_mode<synchronous>, transform_indices = @transform_2, window_bounds = array<i64: 1, 128>}, {transform_indices = @transform_3, window_bounds = array<i64: 1, 5, 128>}, {pipeline_mode = #tpu.pipeline_mode<synchronous>, transform_indices = @transform_4, window_bounds = array<i64: 1, 128>}, {pipeline_mode = #tpu.pipeline_mode<synchronous>, transform_indices = @transform_5, window_bounds = array<i64: 1, 128>}, {transform_indices = @transform_6, window_bounds = array<i64: 1, 1, 5, 128>}]} {
    %c0 = arith.constant 0 : index
    %c0_0 = arith.constant 0 : index
    %c0_1 = arith.constant 0 : index
    %c0_2 = arith.constant 0 : index
    %0 = vector.load %arg2[%c0, %c0_0, %c0_1, %c0_2] : memref<1x1x4x192xbf16, #tpu.memory_space<vmem>>, vector<1x1x4x192xbf16>
    %1 = vector.shape_cast %0 : vector<1x1x4x192xbf16> to vector<4x192xbf16>
    %c0_3 = arith.constant 0 : index
    %c0_4 = arith.constant 0 : index
    %2 = vector.load %arg3[%c0_3, %c0_4] : memref<192x128xbf16, #tpu.memory_space<vmem>>, vector<192x128xbf16>
    %cst = arith.constant dense<0.000000e+00> : vector<4x128xf32>
    %3 = tpu.matmul %1, %2, %cst {dimension_numbers = #tpu.dot_dimension_numbers<[1], [0], [0], [1], [0, 0, 1, 1], [], []>} : vector<4x192xbf16>, vector<192x128xbf16>, vector<4x128xf32> -> vector<4x128xf32>
    %c0_5 = arith.constant 0 : index
    %c0_6 = arith.constant 0 : index
    %4 = vector.load %arg4[%c0_5, %c0_6] : memref<1x128xf32, #tpu.memory_space<vmem>>, vector<1x128xf32>
    %5 = tpu.concatenate %4, %3 in 0 : vector<1x128xf32>, vector<4x128xf32> -> vector<5x128xf32>
    %c0_7 = arith.constant 0 : index
    %c0_8 = arith.constant 0 : index
    %c0_9 = arith.constant 0 : index
    %6 = vector.load %arg5[%c0_7, %c0_8, %c0_9] : memref<1x5x128xf32, #tpu.memory_space<vmem>>, vector<1x5x128xf32>
    %7 = vector.shape_cast %6 : vector<1x5x128xf32> to vector<5x128xf32>
    %8 = arith.addf %5, %7 : vector<5x128xf32>
    %c0_10 = arith.constant 0 : index
    %c0_11 = arith.constant 0 : index
    %9 = vector.load %arg6[%c0_10, %c0_11] : memref<1x128xf32, #tpu.memory_space<vmem>>, vector<1x128xf32>
    %c0_12 = arith.constant 0 : index
    %c0_13 = arith.constant 0 : index
    %10 = vector.load %arg7[%c0_12, %c0_13] : memref<1x128xf32, #tpu.memory_space<vmem>>, vector<1x128xf32>
    %cst_14 = arith.constant dense<0.000000e+00> : vector<5xf32>
    %11 = vector.multi_reduction <add>, %8, %cst_14 [1] : vector<5x128xf32> to vector<5xf32>
    %12 = vector.shape_cast %11 : vector<5xf32> to vector<5x1xf32>
    %cst_15 = arith.constant 1.280000e+02 : f32
    %13 = vector.broadcast %cst_15 : f32 to vector<5x1xf32>
    %14 = arith.divf %12, %13 : vector<5x1xf32>
    %15 = vector.broadcast %14 : vector<5x1xf32> to vector<5x128xf32>
    %16 = arith.subf %8, %15 : vector<5x128xf32>
    %17 = arith.mulf %16, %16 : vector<5x128xf32>
    %cst_16 = arith.constant dense<0.000000e+00> : vector<5xf32>
    %18 = vector.multi_reduction <add>, %17, %cst_16 [1] : vector<5x128xf32> to vector<5xf32>
    %19 = vector.shape_cast %18 : vector<5xf32> to vector<5x1xf32>
    %cst_17 = arith.constant 1.280000e+02 : f32
    %20 = vector.broadcast %cst_17 : f32 to vector<5x1xf32>
    %21 = arith.divf %19, %20 : vector<5x1xf32>
    %cst_18 = arith.constant 9.99999974E-6 : f32
    %22 = vector.broadcast %cst_18 : f32 to vector<5x1xf32>
    %23 = arith.addf %21, %22 : vector<5x1xf32>
    %24 = math.rsqrt %23 : vector<5x1xf32>
    %25 = vector.broadcast %24 : vector<5x1xf32> to vector<5x128xf32>
    %26 = arith.mulf %16, %25 : vector<5x128xf32>
    %27 = vector.broadcast %9 : vector<1x128xf32> to vector<5x128xf32>
    %28 = arith.mulf %26, %27 : vector<5x128xf32>
    %29 = vector.broadcast %10 : vector<1x128xf32> to vector<5x128xf32>
    %30 = arith.addf %28, %29 : vector<5x128xf32>
    %c0_19 = arith.constant 0 : index
    %c0_20 = arith.constant 0 : index
    %c0_21 = arith.constant 0 : index
    %c0_22 = arith.constant 0 : index
    %31 = vector.load %arg8[%c0_19, %c0_20, %c0_21, %c0_22] : memref<1x1x5x128xf32, #tpu.memory_space<vmem>>, vector<1x1x5x128xf32>
    %32 = vector.shape_cast %31 : vector<1x1x5x128xf32> to vector<5x128xf32>
    %33 = vector.shape_cast %30 : vector<5x128xf32> to vector<1x1x5x128xf32>
    tpu.vector_store %arg8[%c0_19, %c0_20, %c0_21, %c0_22], %33 {strides = array<i32>} : memref<1x1x5x128xf32, #tpu.memory_space<vmem>>, vector<1x1x5x128xf32>,
    return
  }
  func.func @transform_0(%arg0: i32, %arg1: i32) -> (i32, i32, i32, i32) {
    %c0_i32 = arith.constant 0 : i32
    %c0_i32_0 = arith.constant 0 : i32
    %c0_i32_1 = arith.constant 0 : i32
    return %arg0, %arg1, %c0_i32, %c0_i32_0 : i32, i32, i32, i32
  }
  func.func @transform_1(%arg0: i32, %arg1: i32) -> (i32, i32) {
    %c0_i32 = arith.constant 0 : i32
    %c0_i32_0 = arith.constant 0 : i32
    %c0_i32_1 = arith.constant 0 : i32
    return %c0_i32, %c0_i32_0 : i32, i32
  }
  func.func @transform_2(%arg0: i32, %arg1: i32) -> (i32, i32) {
    %c0_i32 = arith.constant 0 : i32
    %c0_i32_0 = arith.constant 0 : i32
    %c0_i32_1 = arith.constant 0 : i32
    return %c0_i32, %c0_i32_0 : i32, i32
  }
  func.func @transform_3(%arg0: i32, %arg1: i32) -> (i32, i32, i32) {
    %c0_i32 = arith.constant 0 : i32
    %c0_i32_0 = arith.constant 0 : i32
    %c0_i32_1 = arith.constant 0 : i32
    return %arg1, %c0_i32, %c0_i32_0 : i32, i32, i32
  }
  func.func @transform_4(%arg0: i32, %arg1: i32) -> (i32, i32) {
    %c0_i32 = arith.constant 0 : i32
    %c0_i32_0 = arith.constant 0 : i32
    %c0_i32_1 = arith.constant 0 : i32
    return %c0_i32, %c0_i32_0 : i32, i32
  }
  func.func @transform_5(%arg0: i32, %arg1: i32) -> (i32, i32) {
    %c0_i32 = arith.constant 0 : i32
    %c0_i32_0 = arith.constant 0 : i32
    %c0_i32_1 = arith.constant 0 : i32
    return %c0_i32, %c0_i32_0 : i32, i32
  }
  func.func @transform_6(%arg0: i32, %arg1: i32) -> (i32, i32, i32, i32) {
    %c0_i32 = arith.constant 0 : i32
    %c0_i32_0 = arith.constant 0 : i32
    %c0_i32_1 = arith.constant 0 : i32
    return %arg0, %arg1, %c0_i32, %c0_i32_0 : i32, i32, i32, i32
  }
}

module attributes {stable_mosaic.version = 11 : i64} {
  func.func @_block_kernel(%arg0: i32, %arg1: i32, %arg2: memref<1x1x5x128xf32, #tpu.memory_space<vmem>>, %arg3: memref<1x128xf32, #tpu.memory_space<vmem>>, %arg4: memref<1x128xf32, #tpu.memory_space<vmem>>, %arg5: memref<128x384xbf16, #tpu.memory_space<vmem>>, %arg6: memref<1x384xf32, #tpu.memory_space<vmem>>, %arg7: memref<128x128xbf16, #tpu.memory_space<vmem>>, %arg8: memref<1x128xf32, #tpu.memory_space<vmem>>, %arg9: memref<2x128x64xbf16, #tpu.memory_space<vmem>>, %arg10: memref<2x1x64xf32, #tpu.memory_space<vmem>>, %arg11: memref<2x64x128xbf16, #tpu.memory_space<vmem>>, %arg12: memref<2x1x128xf32, #tpu.memory_space<vmem>>, %arg13: memref<1x128xf32, #tpu.memory_space<vmem>>, %arg14: memref<1x128xf32, #tpu.memory_space<vmem>>, %arg15: memref<128x512xbf16, #tpu.memory_space<vmem>>, %arg16: memref<1x512xf32, #tpu.memory_space<vmem>>, %arg17: memref<512x128xbf16, #tpu.memory_space<vmem>>, %arg18: memref<1x128xf32, #tpu.memory_space<vmem>>, %arg19: memref<2x128x64xbf16, #tpu.memory_space<vmem>>, %arg20: memref<2x1x64xf32, #tpu.memory_space<vmem>>, %arg21: memref<2x64x128xbf16, #tpu.memory_space<vmem>>, %arg22: memref<2x1x128xf32, #tpu.memory_space<vmem>>, %arg23: memref<1x1x5x128xf32, #tpu.memory_space<vmem>>) attributes {dimension_semantics = [#tpu.dimension_semantics<parallel>, #tpu.dimension_semantics<parallel>], iteration_bounds = array<i64: 2, 9>, scalar_prefetch = 0 : i64, scratch_operands = 0 : i64, tpu.core_type = #tpu.core_type<tc>, window_params = [{transform_indices = @transform_0, window_bounds = array<i64: 1, 1, 5, 128>}, {pipeline_mode = #tpu.pipeline_mode<synchronous>, transform_indices = @transform_1, window_bounds = array<i64: 1, 128>}, {pipeline_mode = #tpu.pipeline_mode<synchronous>, transform_indices = @transform_2, window_bounds = array<i64: 1, 128>}, {pipeline_mode = #tpu.pipeline_mode<synchronous>, transform_indices = @transform_3, window_bounds = array<i64: 128, 384>}, {pipeline_mode = #tpu.pipeline_mode<synchronous>, transform_indices = @transform_4, window_bounds = array<i64: 1, 384>}, {pipeline_mode = #tpu.pipeline_mode<synchronous>, transform_indices = @transform_5, window_bounds = array<i64: 128, 128>}, {pipeline_mode = #tpu.pipeline_mode<synchronous>, transform_indices = @transform_6, window_bounds = array<i64: 1, 128>}, {pipeline_mode = #tpu.pipeline_mode<synchronous>, transform_indices = @transform_7, window_bounds = array<i64: 2, 128, 64>}, {pipeline_mode = #tpu.pipeline_mode<synchronous>, transform_indices = @transform_8, window_bounds = array<i64: 2, 1, 64>}, {pipeline_mode = #tpu.pipeline_mode<synchronous>, transform_indices = @transform_9, window_bounds = array<i64: 2, 64, 128>}, {pipeline_mode = #tpu.pipeline_mode<synchronous>, transform_indices = @transform_10, window_bounds = array<i64: 2, 1, 128>}, {pipeline_mode = #tpu.pipeline_mode<synchronous>, transform_indices = @transform_11, window_bounds = array<i64: 1, 128>}, {pipeline_mode = #tpu.pipeline_mode<synchronous>, transform_indices = @transform_12, window_bounds = array<i64: 1, 128>}, {pipeline_mode = #tpu.pipeline_mode<synchronous>, transform_indices = @transform_13, window_bounds = array<i64: 128, 512>}, {pipeline_mode = #tpu.pipeline_mode<synchronous>, transform_indices = @transform_14, window_bounds = array<i64: 1, 512>}, {pipeline_mode = #tpu.pipeline_mode<synchronous>, transform_indices = @transform_15, window_bounds = array<i64: 512, 128>}, {pipeline_mode = #tpu.pipeline_mode<synchronous>, transform_indices = @transform_16, window_bounds = array<i64: 1, 128>}, {pipeline_mode = #tpu.pipeline_mode<synchronous>, transform_indices = @transform_17, window_bounds = array<i64: 2, 128, 64>}, {pipeline_mode = #tpu.pipeline_mode<synchronous>, transform_indices = @transform_18, window_bounds = array<i64: 2, 1, 64>}, {pipeline_mode = #tpu.pipeline_mode<synchronous>, transform_indices = @transform_19, window_bounds = array<i64: 2, 64, 128>}, {pipeline_mode = #tpu.pipeline_mode<synchronous>, transform_indices = @transform_20, window_bounds = array<i64: 2, 1, 128>}, {transform_indices = @transform_21, window_bounds = array<i64: 1, 1, 5, 128>}]} {
    %c0 = arith.constant 0 : index
    %c0_0 = arith.constant 0 : index
    %c0_1 = arith.constant 0 : index
    %c0_2 = arith.constant 0 : index
    %0 = vector.load %arg2[%c0, %c0_0, %c0_1, %c0_2] : memref<1x1x5x128xf32, #tpu.memory_space<vmem>>, vector<1x1x5x128xf32>
    %1 = vector.shape_cast %0 : vector<1x1x5x128xf32> to vector<5x128xf32>
    %c1_i32 = arith.constant 1 : i32
    %2 = arith.cmpi slt, %arg1, %c1_i32 : i32
    %3 = arith.extui %2 : i1 to i32
    %4 = arith.sitofp %3 : i32 to f32
    %c1_i32_3 = arith.constant 1 : i32
    %5 = arith.cmpi sge, %arg1, %c1_i32_3 : i32
    %6 = arith.extui %5 : i1 to i32
    %c0_4 = arith.constant 0 : index
    %c0_5 = arith.constant 0 : index
    %7 = vector.load %arg3[%c0_4, %c0_5] : memref<1x128xf32, #tpu.memory_space<vmem>>, vector<1x128xf32>
    %c0_6 = arith.constant 0 : index
    %c0_7 = arith.constant 0 : index
    %8 = vector.load %arg4[%c0_6, %c0_7] : memref<1x128xf32, #tpu.memory_space<vmem>>, vector<1x128xf32>
    %cst = arith.constant dense<0.000000e+00> : vector<5xf32>
    %9 = vector.multi_reduction <add>, %1, %cst [1] : vector<5x128xf32> to vector<5xf32>
    %10 = vector.shape_cast %9 : vector<5xf32> to vector<5x1xf32>
    %cst_8 = arith.constant 1.280000e+02 : f32
    %11 = vector.broadcast %cst_8 : f32 to vector<5x1xf32>
    %12 = arith.divf %10, %11 : vector<5x1xf32>
    %13 = vector.broadcast %12 : vector<5x1xf32> to vector<5x128xf32>
    %14 = arith.subf %1, %13 : vector<5x128xf32>
    %15 = arith.mulf %14, %14 : vector<5x128xf32>
    %cst_9 = arith.constant dense<0.000000e+00> : vector<5xf32>
    %16 = vector.multi_reduction <add>, %15, %cst_9 [1] : vector<5x128xf32> to vector<5xf32>
    %17 = vector.shape_cast %16 : vector<5xf32> to vector<5x1xf32>
    %cst_10 = arith.constant 1.280000e+02 : f32
    %18 = vector.broadcast %cst_10 : f32 to vector<5x1xf32>
    %19 = arith.divf %17, %18 : vector<5x1xf32>
    %cst_11 = arith.constant 9.99999974E-6 : f32
    %20 = vector.broadcast %cst_11 : f32 to vector<5x1xf32>
    %21 = arith.addf %19, %20 : vector<5x1xf32>
    %22 = math.rsqrt %21 : vector<5x1xf32>
    %23 = vector.broadcast %22 : vector<5x1xf32> to vector<5x128xf32>
    %24 = arith.mulf %14, %23 : vector<5x128xf32>
    %25 = vector.broadcast %7 : vector<1x128xf32> to vector<5x128xf32>
    %26 = arith.mulf %24, %25 : vector<5x128xf32>
    %27 = vector.broadcast %8 : vector<1x128xf32> to vector<5x128xf32>
    %28 = arith.addf %26, %27 : vector<5x128xf32>
    %29 = arith.truncf %28 : vector<5x128xf32> to vector<5x128xbf16>
    %c0_12 = arith.constant 0 : index
    %c0_13 = arith.constant 0 : index
    %30 = vector.load %arg5[%c0_12, %c0_13] : memref<128x384xbf16, #tpu.memory_space<vmem>>, vector<128x384xbf16>
    %cst_14 = arith.constant dense<0.000000e+00> : vector<5x384xf32>
    %31 = tpu.matmul %29, %30, %cst_14 {dimension_numbers = #tpu.dot_dimension_numbers<[1], [0], [0], [1], [0, 0, 1, 1], [], []>} : vector<5x128xbf16>, vector<128x384xbf16>, vector<5x384xf32> -> vector<5x384xf32>
    %c0_15 = arith.constant 0 : index
    %c0_16 = arith.constant 0 : index
    %32 = vector.load %arg6[%c0_15, %c0_16] : memref<1x384xf32, #tpu.memory_space<vmem>>, vector<1x384xf32>
    %33 = vector.broadcast %32 : vector<1x384xf32> to vector<5x384xf32>
    %34 = arith.addf %31, %33 : vector<5x384xf32>
    %35 = arith.truncf %34 : vector<5x384xf32> to vector<5x384xbf16>
    %36 = vector.extract_strided_slice %35 {offsets = [0, 0], sizes = [5, 32], strides = [1, 1]} : vector<5x384xbf16> to vector<5x32xbf16>
    %37 = vector.extract_strided_slice %35 {offsets = [0, 128], sizes = [5, 32], strides = [1, 1]} : vector<5x384xbf16> to vector<5x32xbf16>
    %38 = vector.extract_strided_slice %35 {offsets = [0, 256], sizes = [5, 32], strides = [1, 1]} : vector<5x384xbf16> to vector<5x32xbf16>
    %cst_17 = arith.constant dense<0.000000e+00> : vector<5x5xf32>
    %39 = tpu.matmul %36, %37, %cst_17 {dimension_numbers = #tpu.dot_dimension_numbers<[1], [1], [0], [0], [0, 0, 1, 0], [], []>} : vector<5x32xbf16>, vector<5x32xbf16>, vector<5x5xf32> -> vector<5x5xf32>
    %cst_18 = arith.constant 0.176776692 : f32
    %40 = vector.broadcast %cst_18 : f32 to vector<5x5xf32>
    %41 = arith.mulf %39, %40 : vector<5x5xf32>
    %cst_19 = arith.constant dense<0xFF800000> : vector<5xf32>
    %42 = vector.multi_reduction <maximumf>, %41, %cst_19 [1] : vector<5x5xf32> to vector<5xf32>
    %43 = vector.shape_cast %42 : vector<5xf32> to vector<5x1xf32>
    %44 = vector.broadcast %43 : vector<5x1xf32> to vector<5x5xf32>
    %45 = arith.subf %41, %44 : vector<5x5xf32>
    %46 = math.exp %45 : vector<5x5xf32>
    %cst_20 = arith.constant dense<0.000000e+00> : vector<5xf32>
    %47 = vector.multi_reduction <add>, %46, %cst_20 [1] : vector<5x5xf32> to vector<5xf32>
    %48 = vector.shape_cast %47 : vector<5xf32> to vector<5x1xf32>
    %49 = tpu.reciprocal %48 {approx = true} : vector<5x1xf32> -> vector<5x1xf32>
    %50 = vector.broadcast %49 : vector<5x1xf32> to vector<5x5xf32>
    %51 = arith.mulf %46, %50 : vector<5x5xf32>
    %52 = arith.truncf %51 : vector<5x5xf32> to vector<5x5xbf16>
    %cst_21 = arith.constant dense<0.000000e+00> : vector<5x32xf32>
    %53 = tpu.matmul %52, %38, %cst_21 {dimension_numbers = #tpu.dot_dimension_numbers<[1], [0], [0], [1], [0, 0, 1, 1], [], []>} : vector<5x5xbf16>, vector<5x32xbf16>, vector<5x32xf32> -> vector<5x32xf32>
    %54 = vector.extract_strided_slice %35 {offsets = [0, 32], sizes = [5, 32], strides = [1, 1]} : vector<5x384xbf16> to vector<5x32xbf16>
    %55 = vector.extract_strided_slice %35 {offsets = [0, 160], sizes = [5, 32], strides = [1, 1]} : vector<5x384xbf16> to vector<5x32xbf16>
    %56 = vector.extract_strided_slice %35 {offsets = [0, 288], sizes = [5, 32], strides = [1, 1]} : vector<5x384xbf16> to vector<5x32xbf16>
    %cst_22 = arith.constant dense<0.000000e+00> : vector<5x5xf32>
    %57 = tpu.matmul %54, %55, %cst_22 {dimension_numbers = #tpu.dot_dimension_numbers<[1], [1], [0], [0], [0, 0, 1, 0], [], []>} : vector<5x32xbf16>, vector<5x32xbf16>, vector<5x5xf32> -> vector<5x5xf32>
    %cst_23 = arith.constant 0.176776692 : f32
    %58 = vector.broadcast %cst_23 : f32 to vector<5x5xf32>
    %59 = arith.mulf %57, %58 : vector<5x5xf32>
    %cst_24 = arith.constant dense<0xFF800000> : vector<5xf32>
    %60 = vector.multi_reduction <maximumf>, %59, %cst_24 [1] : vector<5x5xf32> to vector<5xf32>
    %61 = vector.shape_cast %60 : vector<5xf32> to vector<5x1xf32>
    %62 = vector.broadcast %61 : vector<5x1xf32> to vector<5x5xf32>
    %63 = arith.subf %59, %62 : vector<5x5xf32>
    %64 = math.exp %63 : vector<5x5xf32>
    %cst_25 = arith.constant dense<0.000000e+00> : vector<5xf32>
    %65 = vector.multi_reduction <add>, %64, %cst_25 [1] : vector<5x5xf32> to vector<5xf32>
    %66 = vector.shape_cast %65 : vector<5xf32> to vector<5x1xf32>
    %67 = tpu.reciprocal %66 {approx = true} : vector<5x1xf32> -> vector<5x1xf32>
    %68 = vector.broadcast %67 : vector<5x1xf32> to vector<5x5xf32>
    %69 = arith.mulf %64, %68 : vector<5x5xf32>
    %70 = arith.truncf %69 : vector<5x5xf32> to vector<5x5xbf16>
    %cst_26 = arith.constant dense<0.000000e+00> : vector<5x32xf32>
    %71 = tpu.matmul %70, %56, %cst_26 {dimension_numbers = #tpu.dot_dimension_numbers<[1], [0], [0], [1], [0, 0, 1, 1], [], []>} : vector<5x5xbf16>, vector<5x32xbf16>, vector<5x32xf32> -> vector<5x32xf32>
    %72 = vector.extract_strided_slice %35 {offsets = [0, 64], sizes = [5, 32], strides = [1, 1]} : vector<5x384xbf16> to vector<5x32xbf16>
    %73 = vector.extract_strided_slice %35 {offsets = [0, 192], sizes = [5, 32], strides = [1, 1]} : vector<5x384xbf16> to vector<5x32xbf16>
    %74 = vector.extract_strided_slice %35 {offsets = [0, 320], sizes = [5, 32], strides = [1, 1]} : vector<5x384xbf16> to vector<5x32xbf16>
    %cst_27 = arith.constant dense<0.000000e+00> : vector<5x5xf32>
    %75 = tpu.matmul %72, %73, %cst_27 {dimension_numbers = #tpu.dot_dimension_numbers<[1], [1], [0], [0], [0, 0, 1, 0], [], []>} : vector<5x32xbf16>, vector<5x32xbf16>, vector<5x5xf32> -> vector<5x5xf32>
    %cst_28 = arith.constant 0.176776692 : f32
    %76 = vector.broadcast %cst_28 : f32 to vector<5x5xf32>
    %77 = arith.mulf %75, %76 : vector<5x5xf32>
    %cst_29 = arith.constant dense<0xFF800000> : vector<5xf32>
    %78 = vector.multi_reduction <maximumf>, %77, %cst_29 [1] : vector<5x5xf32> to vector<5xf32>
    %79 = vector.shape_cast %78 : vector<5xf32> to vector<5x1xf32>
    %80 = vector.broadcast %79 : vector<5x1xf32> to vector<5x5xf32>
    %81 = arith.subf %77, %80 : vector<5x5xf32>
    %82 = math.exp %81 : vector<5x5xf32>
    %cst_30 = arith.constant dense<0.000000e+00> : vector<5xf32>
    %83 = vector.multi_reduction <add>, %82, %cst_30 [1] : vector<5x5xf32> to vector<5xf32>
    %84 = vector.shape_cast %83 : vector<5xf32> to vector<5x1xf32>
    %85 = tpu.reciprocal %84 {approx = true} : vector<5x1xf32> -> vector<5x1xf32>
    %86 = vector.broadcast %85 : vector<5x1xf32> to vector<5x5xf32>
    %87 = arith.mulf %82, %86 : vector<5x5xf32>
    %88 = arith.truncf %87 : vector<5x5xf32> to vector<5x5xbf16>
    %cst_31 = arith.constant dense<0.000000e+00> : vector<5x32xf32>
    %89 = tpu.matmul %88, %74, %cst_31 {dimension_numbers = #tpu.dot_dimension_numbers<[1], [0], [0], [1], [0, 0, 1, 1], [], []>} : vector<5x5xbf16>, vector<5x32xbf16>, vector<5x32xf32> -> vector<5x32xf32>
    %90 = vector.extract_strided_slice %35 {offsets = [0, 96], sizes = [5, 32], strides = [1, 1]} : vector<5x384xbf16> to vector<5x32xbf16>
    %91 = vector.extract_strided_slice %35 {offsets = [0, 224], sizes = [5, 32], strides = [1, 1]} : vector<5x384xbf16> to vector<5x32xbf16>
    %92 = vector.extract_strided_slice %35 {offsets = [0, 352], sizes = [5, 32], strides = [1, 1]} : vector<5x384xbf16> to vector<5x32xbf16>
    %cst_32 = arith.constant dense<0.000000e+00> : vector<5x5xf32>
    %93 = tpu.matmul %90, %91, %cst_32 {dimension_numbers = #tpu.dot_dimension_numbers<[1], [1], [0], [0], [0, 0, 1, 0], [], []>} : vector<5x32xbf16>, vector<5x32xbf16>, vector<5x5xf32> -> vector<5x5xf32>
    %cst_33 = arith.constant 0.176776692 : f32
    %94 = vector.broadcast %cst_33 : f32 to vector<5x5xf32>
    %95 = arith.mulf %93, %94 : vector<5x5xf32>
    %cst_34 = arith.constant dense<0xFF800000> : vector<5xf32>
    %96 = vector.multi_reduction <maximumf>, %95, %cst_34 [1] : vector<5x5xf32> to vector<5xf32>
    %97 = vector.shape_cast %96 : vector<5xf32> to vector<5x1xf32>
    %98 = vector.broadcast %97 : vector<5x1xf32> to vector<5x5xf32>
    %99 = arith.subf %95, %98 : vector<5x5xf32>
    %100 = math.exp %99 : vector<5x5xf32>
    %cst_35 = arith.constant dense<0.000000e+00> : vector<5xf32>
    %101 = vector.multi_reduction <add>, %100, %cst_35 [1] : vector<5x5xf32> to vector<5xf32>
    %102 = vector.shape_cast %101 : vector<5xf32> to vector<5x1xf32>
    %103 = tpu.reciprocal %102 {approx = true} : vector<5x1xf32> -> vector<5x1xf32>
    %104 = vector.broadcast %103 : vector<5x1xf32> to vector<5x5xf32>
    %105 = arith.mulf %100, %104 : vector<5x5xf32>
    %106 = arith.truncf %105 : vector<5x5xf32> to vector<5x5xbf16>
    %cst_36 = arith.constant dense<0.000000e+00> : vector<5x32xf32>
    %107 = tpu.matmul %106, %92, %cst_36 {dimension_numbers = #tpu.dot_dimension_numbers<[1], [0], [0], [1], [0, 0, 1, 1], [], []>} : vector<5x5xbf16>, vector<5x32xbf16>, vector<5x32xf32> -> vector<5x32xf32>
    %108 = tpu.concatenate %53, %71, %89, %107 in 1 : vector<5x32xf32>, vector<5x32xf32>, vector<5x32xf32>, vector<5x32xf32> -> vector<5x128xf32>
    %c0_37 = arith.constant 0 : index
    %c0_38 = arith.constant 0 : index
    %109 = vector.load %arg7[%c0_37, %c0_38] : memref<128x128xbf16, #tpu.memory_space<vmem>>, vector<128x128xbf16>
    %110 = arith.truncf %108 : vector<5x128xf32> to vector<5x128xbf16>
    %cst_39 = arith.constant dense<0.000000e+00> : vector<5x128xf32>
    %111 = tpu.matmul %110, %109, %cst_39 {dimension_numbers = #tpu.dot_dimension_numbers<[1], [0], [0], [1], [0, 0, 1, 1], [], []>} : vector<5x128xbf16>, vector<128x128xbf16>, vector<5x128xf32> -> vector<5x128xf32>
    %c0_40 = arith.constant 0 : index
    %c0_41 = arith.constant 0 : index
    %112 = vector.load %arg8[%c0_40, %c0_41] : memref<1x128xf32, #tpu.memory_space<vmem>>, vector<1x128xf32>
    %113 = vector.broadcast %112 : vector<1x128xf32> to vector<5x128xf32>
    %114 = arith.addf %111, %113 : vector<5x128xf32>
    %115 = vector.broadcast %4 : f32 to vector<5x128xf32>
    %116 = arith.mulf %115, %114 : vector<5x128xf32>
    %cst_42 = arith.constant 1.000000e+00 : f32
    %117 = arith.subf %cst_42, %4 : f32
    %118 = vector.broadcast %117 : f32 to vector<5x128xf32>
    %119 = arith.mulf %118, %28 : vector<5x128xf32>
    %120 = arith.addf %116, %119 : vector<5x128xf32>
    %121 = arith.index_cast %6 : i32 to index
    %c0_43 = arith.constant 0 : index
    %c0_44 = arith.constant 0 : index
    %122 = vector.load %arg9[%121, %c0_43, %c0_44] : memref<2x128x64xbf16, #tpu.memory_space<vmem>>, vector<1x128x64xbf16>
    %123 = vector.shape_cast %122 : vector<1x128x64xbf16> to vector<128x64xbf16>
    %124 = arith.index_cast %6 : i32 to index
    %c0_45 = arith.constant 0 : index
    %c0_46 = arith.constant 0 : index
    %125 = vector.load %arg10[%124, %c0_45, %c0_46] : memref<2x1x64xf32, #tpu.memory_space<vmem>>, vector<1x1x64xf32>
    %126 = vector.shape_cast %125 : vector<1x1x64xf32> to vector<1x64xf32>
    %127 = arith.index_cast %6 : i32 to index
    %c0_47 = arith.constant 0 : index
    %c0_48 = arith.constant 0 : index
    %128 = vector.load %arg11[%127, %c0_47, %c0_48] : memref<2x64x128xbf16, #tpu.memory_space<vmem>>, vector<1x64x128xbf16>
    %129 = vector.shape_cast %128 : vector<1x64x128xbf16> to vector<64x128xbf16>
    %130 = arith.index_cast %6 : i32 to index
    %c0_49 = arith.constant 0 : index
    %c0_50 = arith.constant 0 : index
    %131 = vector.load %arg12[%130, %c0_49, %c0_50] : memref<2x1x128xf32, #tpu.memory_space<vmem>>, vector<1x1x128xf32>
    %132 = vector.shape_cast %131 : vector<1x1x128xf32> to vector<1x128xf32>
    %133 = arith.truncf %120 : vector<5x128xf32> to vector<5x128xbf16>
    %cst_51 = arith.constant dense<0.000000e+00> : vector<5x64xf32>
    %134 = tpu.matmul %133, %123, %cst_51 {dimension_numbers = #tpu.dot_dimension_numbers<[1], [0], [0], [1], [0, 0, 1, 1], [], []>} : vector<5x128xbf16>, vector<128x64xbf16>, vector<5x64xf32> -> vector<5x64xf32>
    %135 = vector.broadcast %126 : vector<1x64xf32> to vector<5x64xf32>
    %136 = arith.addf %134, %135 : vector<5x64xf32>
    %cst_52 = arith.constant 5.000000e-01 : f32
    %137 = vector.broadcast %cst_52 : f32 to vector<5x64xf32>
    %138 = arith.mulf %137, %136 : vector<5x64xf32>
    %cst_53 = arith.constant 4.471500e-02 : f32
    %139 = vector.broadcast %cst_53 : f32 to vector<5x64xf32>
    %140 = arith.mulf %139, %136 : vector<5x64xf32>
    %141 = arith.mulf %140, %136 : vector<5x64xf32>
    %142 = arith.mulf %141, %136 : vector<5x64xf32>
    %143 = arith.addf %136, %142 : vector<5x64xf32>
    %cst_54 = arith.constant 0.797884583 : f32
    %144 = vector.broadcast %cst_54 : f32 to vector<5x64xf32>
    %145 = arith.mulf %144, %143 : vector<5x64xf32>
    %146 = math.tanh %145 : vector<5x64xf32>
    %cst_55 = arith.constant 1.000000e+00 : f32
    %147 = vector.broadcast %cst_55 : f32 to vector<5x64xf32>
    %148 = arith.addf %147, %146 : vector<5x64xf32>
    %149 = arith.mulf %138, %148 : vector<5x64xf32>
    %150 = arith.truncf %149 : vector<5x64xf32> to vector<5x64xbf16>
    %cst_56 = arith.constant dense<0.000000e+00> : vector<5x128xf32>
    %151 = tpu.matmul %150, %129, %cst_56 {dimension_numbers = #tpu.dot_dimension_numbers<[1], [0], [0], [1], [0, 0, 1, 1], [], []>} : vector<5x64xbf16>, vector<64x128xbf16>, vector<5x128xf32> -> vector<5x128xf32>
    %152 = vector.broadcast %132 : vector<1x128xf32> to vector<5x128xf32>
    %153 = arith.addf %151, %152 : vector<5x128xf32>
    %154 = arith.addf %1, %153 : vector<5x128xf32>
    %cst_57 = arith.constant 1.000000e+00 : f32
    %155 = arith.subf %cst_57, %4 : f32
    %156 = vector.broadcast %155 : f32 to vector<5x128xf32>
    %157 = arith.mulf %156, %114 : vector<5x128xf32>
    %158 = arith.addf %154, %157 : vector<5x128xf32>
    %c0_58 = arith.constant 0 : index
    %c0_59 = arith.constant 0 : index
    %159 = vector.load %arg13[%c0_58, %c0_59] : memref<1x128xf32, #tpu.memory_space<vmem>>, vector<1x128xf32>
    %c0_60 = arith.constant 0 : index
    %c0_61 = arith.constant 0 : index
    %160 = vector.load %arg14[%c0_60, %c0_61] : memref<1x128xf32, #tpu.memory_space<vmem>>, vector<1x128xf32>
    %cst_62 = arith.constant dense<0.000000e+00> : vector<5xf32>
    %161 = vector.multi_reduction <add>, %158, %cst_62 [1] : vector<5x128xf32> to vector<5xf32>
    %162 = vector.shape_cast %161 : vector<5xf32> to vector<5x1xf32>
    %cst_63 = arith.constant 1.280000e+02 : f32
    %163 = vector.broadcast %cst_63 : f32 to vector<5x1xf32>
    %164 = arith.divf %162, %163 : vector<5x1xf32>
    %165 = vector.broadcast %164 : vector<5x1xf32> to vector<5x128xf32>
    %166 = arith.subf %158, %165 : vector<5x128xf32>
    %167 = arith.mulf %166, %166 : vector<5x128xf32>
    %cst_64 = arith.constant dense<0.000000e+00> : vector<5xf32>
    %168 = vector.multi_reduction <add>, %167, %cst_64 [1] : vector<5x128xf32> to vector<5xf32>
    %169 = vector.shape_cast %168 : vector<5xf32> to vector<5x1xf32>
    %cst_65 = arith.constant 1.280000e+02 : f32
    %170 = vector.broadcast %cst_65 : f32 to vector<5x1xf32>
    %171 = arith.divf %169, %170 : vector<5x1xf32>
    %cst_66 = arith.constant 9.99999974E-6 : f32
    %172 = vector.broadcast %cst_66 : f32 to vector<5x1xf32>
    %173 = arith.addf %171, %172 : vector<5x1xf32>
    %174 = math.rsqrt %173 : vector<5x1xf32>
    %175 = vector.broadcast %174 : vector<5x1xf32> to vector<5x128xf32>
    %176 = arith.mulf %166, %175 : vector<5x128xf32>
    %177 = vector.broadcast %159 : vector<1x128xf32> to vector<5x128xf32>
    %178 = arith.mulf %176, %177 : vector<5x128xf32>
    %179 = vector.broadcast %160 : vector<1x128xf32> to vector<5x128xf32>
    %180 = arith.addf %178, %179 : vector<5x128xf32>
    %c0_67 = arith.constant 0 : index
    %c0_68 = arith.constant 0 : index
    %181 = vector.load %arg15[%c0_67, %c0_68] : memref<128x512xbf16, #tpu.memory_space<vmem>>, vector<128x512xbf16>
    %182 = arith.truncf %180 : vector<5x128xf32> to vector<5x128xbf16>
    %cst_69 = arith.constant dense<0.000000e+00> : vector<5x512xf32>
    %183 = tpu.matmul %182, %181, %cst_69 {dimension_numbers = #tpu.dot_dimension_numbers<[1], [0], [0], [1], [0, 0, 1, 1], [], []>} : vector<5x128xbf16>, vector<128x512xbf16>, vector<5x512xf32> -> vector<5x512xf32>
    %c0_70 = arith.constant 0 : index
    %c0_71 = arith.constant 0 : index
    %184 = vector.load %arg16[%c0_70, %c0_71] : memref<1x512xf32, #tpu.memory_space<vmem>>, vector<1x512xf32>
    %185 = vector.broadcast %184 : vector<1x512xf32> to vector<5x512xf32>
    %186 = arith.addf %183, %185 : vector<5x512xf32>
    %cst_72 = arith.constant 1.702000e+00 : f32
    %187 = vector.broadcast %cst_72 : f32 to vector<5x512xf32>
    %188 = arith.mulf %187, %186 : vector<5x512xf32>
    %189 = arith.negf %188 : vector<5x512xf32>
    %190 = math.exp %189 : vector<5x512xf32>
    %cst_73 = arith.constant 1.000000e+00 : f32
    %191 = vector.broadcast %cst_73 : f32 to vector<5x512xf32>
    %192 = arith.addf %191, %190 : vector<5x512xf32>
    %193 = arith.divf %191, %192 : vector<5x512xf32>
    %194 = arith.mulf %186, %193 : vector<5x512xf32>
    %c0_74 = arith.constant 0 : index
    %c0_75 = arith.constant 0 : index
    %195 = vector.load %arg17[%c0_74, %c0_75] : memref<512x128xbf16, #tpu.memory_space<vmem>>, vector<512x128xbf16>
    %196 = arith.truncf %194 : vector<5x512xf32> to vector<5x512xbf16>
    %cst_76 = arith.constant dense<0.000000e+00> : vector<5x128xf32>
    %197 = tpu.matmul %196, %195, %cst_76 {dimension_numbers = #tpu.dot_dimension_numbers<[1], [0], [0], [1], [0, 0, 1, 1], [], []>} : vector<5x512xbf16>, vector<512x128xbf16>, vector<5x128xf32> -> vector<5x128xf32>
    %c0_77 = arith.constant 0 : index
    %c0_78 = arith.constant 0 : index
    %198 = vector.load %arg18[%c0_77, %c0_78] : memref<1x128xf32, #tpu.memory_space<vmem>>, vector<1x128xf32>
    %199 = vector.broadcast %198 : vector<1x128xf32> to vector<5x128xf32>
    %200 = arith.addf %197, %199 : vector<5x128xf32>
    %201 = vector.broadcast %4 : f32 to vector<5x128xf32>
    %202 = arith.mulf %201, %200 : vector<5x128xf32>
    %cst_79 = arith.constant 1.000000e+00 : f32
    %203 = arith.subf %cst_79, %4 : f32
    %204 = vector.broadcast %203 : f32 to vector<5x128xf32>
    %205 = arith.mulf %204, %180 : vector<5x128xf32>
    %206 = arith.addf %202, %205 : vector<5x128xf32>
    %207 = arith.index_cast %6 : i32 to index
    %c0_80 = arith.constant 0 : index
    %c0_81 = arith.constant 0 : index
    %208 = vector.load %arg19[%207, %c0_80, %c0_81] : memref<2x128x64xbf16, #tpu.memory_space<vmem>>, vector<1x128x64xbf16>
    %209 = vector.shape_cast %208 : vector<1x128x64xbf16> to vector<128x64xbf16>
    %210 = arith.index_cast %6 : i32 to index
    %c0_82 = arith.constant 0 : index
    %c0_83 = arith.constant 0 : index
    %211 = vector.load %arg20[%210, %c0_82, %c0_83] : memref<2x1x64xf32, #tpu.memory_space<vmem>>, vector<1x1x64xf32>
    %212 = vector.shape_cast %211 : vector<1x1x64xf32> to vector<1x64xf32>
    %213 = arith.index_cast %6 : i32 to index
    %c0_84 = arith.constant 0 : index
    %c0_85 = arith.constant 0 : index
    %214 = vector.load %arg21[%213, %c0_84, %c0_85] : memref<2x64x128xbf16, #tpu.memory_space<vmem>>, vector<1x64x128xbf16>
    %215 = vector.shape_cast %214 : vector<1x64x128xbf16> to vector<64x128xbf16>
    %216 = arith.index_cast %6 : i32 to index
    %c0_86 = arith.constant 0 : index
    %c0_87 = arith.constant 0 : index
    %217 = vector.load %arg22[%216, %c0_86, %c0_87] : memref<2x1x128xf32, #tpu.memory_space<vmem>>, vector<1x1x128xf32>
    %218 = vector.shape_cast %217 : vector<1x1x128xf32> to vector<1x128xf32>
    %219 = arith.truncf %206 : vector<5x128xf32> to vector<5x128xbf16>
    %cst_88 = arith.constant dense<0.000000e+00> : vector<5x64xf32>
    %220 = tpu.matmul %219, %209, %cst_88 {dimension_numbers = #tpu.dot_dimension_numbers<[1], [0], [0], [1], [0, 0, 1, 1], [], []>} : vector<5x128xbf16>, vector<128x64xbf16>, vector<5x64xf32> -> vector<5x64xf32>
    %221 = vector.broadcast %212 : vector<1x64xf32> to vector<5x64xf32>
    %222 = arith.addf %220, %221 : vector<5x64xf32>
    %cst_89 = arith.constant 5.000000e-01 : f32
    %223 = vector.broadcast %cst_89 : f32 to vector<5x64xf32>
    %224 = arith.mulf %223, %222 : vector<5x64xf32>
    %cst_90 = arith.constant 4.471500e-02 : f32
    %225 = vector.broadcast %cst_90 : f32 to vector<5x64xf32>
    %226 = arith.mulf %225, %222 : vector<5x64xf32>
    %227 = arith.mulf %226, %222 : vector<5x64xf32>
    %228 = arith.mulf %227, %222 : vector<5x64xf32>
    %229 = arith.addf %222, %228 : vector<5x64xf32>
    %cst_91 = arith.constant 0.797884583 : f32
    %230 = vector.broadcast %cst_91 : f32 to vector<5x64xf32>
    %231 = arith.mulf %230, %229 : vector<5x64xf32>
    %232 = math.tanh %231 : vector<5x64xf32>
    %cst_92 = arith.constant 1.000000e+00 : f32
    %233 = vector.broadcast %cst_92 : f32 to vector<5x64xf32>
    %234 = arith.addf %233, %232 : vector<5x64xf32>
    %235 = arith.mulf %224, %234 : vector<5x64xf32>
    %236 = arith.truncf %235 : vector<5x64xf32> to vector<5x64xbf16>
    %cst_93 = arith.constant dense<0.000000e+00> : vector<5x128xf32>
    %237 = tpu.matmul %236, %215, %cst_93 {dimension_numbers = #tpu.dot_dimension_numbers<[1], [0], [0], [1], [0, 0, 1, 1], [], []>} : vector<5x64xbf16>, vector<64x128xbf16>, vector<5x128xf32> -> vector<5x128xf32>
    %238 = vector.broadcast %218 : vector<1x128xf32> to vector<5x128xf32>
    %239 = arith.addf %237, %238 : vector<5x128xf32>
    %240 = arith.addf %158, %239 : vector<5x128xf32>
    %cst_94 = arith.constant 1.000000e+00 : f32
    %241 = arith.subf %cst_94, %4 : f32
    %242 = vector.broadcast %241 : f32 to vector<5x128xf32>
    %243 = arith.mulf %242, %200 : vector<5x128xf32>
    %244 = arith.addf %240, %243 : vector<5x128xf32>
    %c0_95 = arith.constant 0 : index
    %c0_96 = arith.constant 0 : index
    %c0_97 = arith.constant 0 : index
    %c0_98 = arith.constant 0 : index
    %245 = vector.load %arg23[%c0_95, %c0_96, %c0_97, %c0_98] : memref<1x1x5x128xf32, #tpu.memory_space<vmem>>, vector<1x1x5x128xf32>
    %246 = vector.shape_cast %245 : vector<1x1x5x128xf32> to vector<5x128xf32>
    %247 = vector.shape_cast %244 : vector<5x128xf32> to vector<1x1x5x128xf32>
    tpu.vector_store %arg23[%c0_95, %c0_96, %c0_97, %c0_98], %247 {strides = array<i32>} : memref<1x1x5x128xf32, #tpu.memory_space<vmem>>, vector<1x1x5x128xf32>,
    return
  }
  func.func @transform_0(%arg0: i32, %arg1: i32) -> (i32, i32, i32, i32) {
    %c0_i32 = arith.constant 0 : i32
    %c0_i32_0 = arith.constant 0 : i32
    %c0_i32_1 = arith.constant 0 : i32
    return %arg0, %arg1, %c0_i32, %c0_i32_0 : i32, i32, i32, i32
  }
  func.func @transform_1(%arg0: i32, %arg1: i32) -> (i32, i32) {
    %c0_i32 = arith.constant 0 : i32
    %c0_i32_0 = arith.constant 0 : i32
    %c0_i32_1 = arith.constant 0 : i32
    return %c0_i32, %c0_i32_0 : i32, i32
  }
  func.func @transform_2(%arg0: i32, %arg1: i32) -> (i32, i32) {
    %c0_i32 = arith.constant 0 : i32
    %c0_i32_0 = arith.constant 0 : i32
    %c0_i32_1 = arith.constant 0 : i32
    return %c0_i32, %c0_i32_0 : i32, i32
  }
  func.func @transform_3(%arg0: i32, %arg1: i32) -> (i32, i32) {
    %c0_i32 = arith.constant 0 : i32
    %c0_i32_0 = arith.constant 0 : i32
    %c0_i32_1 = arith.constant 0 : i32
    return %c0_i32, %c0_i32_0 : i32, i32
  }
  func.func @transform_4(%arg0: i32, %arg1: i32) -> (i32, i32) {
    %c0_i32 = arith.constant 0 : i32
    %c0_i32_0 = arith.constant 0 : i32
    %c0_i32_1 = arith.constant 0 : i32
    return %c0_i32, %c0_i32_0 : i32, i32
  }
  func.func @transform_5(%arg0: i32, %arg1: i32) -> (i32, i32) {
    %c0_i32 = arith.constant 0 : i32
    %c0_i32_0 = arith.constant 0 : i32
    %c0_i32_1 = arith.constant 0 : i32
    return %c0_i32, %c0_i32_0 : i32, i32
  }
  func.func @transform_6(%arg0: i32, %arg1: i32) -> (i32, i32) {
    %c0_i32 = arith.constant 0 : i32
    %c0_i32_0 = arith.constant 0 : i32
    %c0_i32_1 = arith.constant 0 : i32
    return %c0_i32, %c0_i32_0 : i32, i32
  }
  func.func @transform_7(%arg0: i32, %arg1: i32) -> (i32, i32, i32) {
    %c0_i32 = arith.constant 0 : i32
    %c0_i32_0 = arith.constant 0 : i32
    %c0_i32_1 = arith.constant 0 : i32
    %c0_i32_2 = arith.constant 0 : i32
    return %c0_i32, %c0_i32_0, %c0_i32_1 : i32, i32, i32
  }
  func.func @transform_8(%arg0: i32, %arg1: i32) -> (i32, i32, i32) {
    %c0_i32 = arith.constant 0 : i32
    %c0_i32_0 = arith.constant 0 : i32
    %c0_i32_1 = arith.constant 0 : i32
    %c0_i32_2 = arith.constant 0 : i32
    return %c0_i32, %c0_i32_0, %c0_i32_1 : i32, i32, i32
  }
  func.func @transform_9(%arg0: i32, %arg1: i32) -> (i32, i32, i32) {
    %c0_i32 = arith.constant 0 : i32
    %c0_i32_0 = arith.constant 0 : i32
    %c0_i32_1 = arith.constant 0 : i32
    %c0_i32_2 = arith.constant 0 : i32
    return %c0_i32, %c0_i32_0, %c0_i32_1 : i32, i32, i32
  }
  func.func @transform_10(%arg0: i32, %arg1: i32) -> (i32, i32, i32) {
    %c0_i32 = arith.constant 0 : i32
    %c0_i32_0 = arith.constant 0 : i32
    %c0_i32_1 = arith.constant 0 : i32
    %c0_i32_2 = arith.constant 0 : i32
    return %c0_i32, %c0_i32_0, %c0_i32_1 : i32, i32, i32
  }
  func.func @transform_11(%arg0: i32, %arg1: i32) -> (i32, i32) {
    %c0_i32 = arith.constant 0 : i32
    %c0_i32_0 = arith.constant 0 : i32
    %c0_i32_1 = arith.constant 0 : i32
    return %c0_i32, %c0_i32_0 : i32, i32
  }
  func.func @transform_12(%arg0: i32, %arg1: i32) -> (i32, i32) {
    %c0_i32 = arith.constant 0 : i32
    %c0_i32_0 = arith.constant 0 : i32
    %c0_i32_1 = arith.constant 0 : i32
    return %c0_i32, %c0_i32_0 : i32, i32
  }
  func.func @transform_13(%arg0: i32, %arg1: i32) -> (i32, i32) {
    %c0_i32 = arith.constant 0 : i32
    %c0_i32_0 = arith.constant 0 : i32
    %c0_i32_1 = arith.constant 0 : i32
    return %c0_i32, %c0_i32_0 : i32, i32
  }
  func.func @transform_14(%arg0: i32, %arg1: i32) -> (i32, i32) {
    %c0_i32 = arith.constant 0 : i32
    %c0_i32_0 = arith.constant 0 : i32
    %c0_i32_1 = arith.constant 0 : i32
    return %c0_i32, %c0_i32_0 : i32, i32
  }
  func.func @transform_15(%arg0: i32, %arg1: i32) -> (i32, i32) {
    %c0_i32 = arith.constant 0 : i32
    %c0_i32_0 = arith.constant 0 : i32
    %c0_i32_1 = arith.constant 0 : i32
    return %c0_i32, %c0_i32_0 : i32, i32
  }
  func.func @transform_16(%arg0: i32, %arg1: i32) -> (i32, i32) {
    %c0_i32 = arith.constant 0 : i32
    %c0_i32_0 = arith.constant 0 : i32
    %c0_i32_1 = arith.constant 0 : i32
    return %c0_i32, %c0_i32_0 : i32, i32
  }
  func.func @transform_17(%arg0: i32, %arg1: i32) -> (i32, i32, i32) {
    %c0_i32 = arith.constant 0 : i32
    %c0_i32_0 = arith.constant 0 : i32
    %c0_i32_1 = arith.constant 0 : i32
    %c0_i32_2 = arith.constant 0 : i32
    return %c0_i32, %c0_i32_0, %c0_i32_1 : i32, i32, i32
  }
  func.func @transform_18(%arg0: i32, %arg1: i32) -> (i32, i32, i32) {
    %c0_i32 = arith.constant 0 : i32
    %c0_i32_0 = arith.constant 0 : i32
    %c0_i32_1 = arith.constant 0 : i32
    %c0_i32_2 = arith.constant 0 : i32
    return %c0_i32, %c0_i32_0, %c0_i32_1 : i32, i32, i32
  }
  func.func @transform_19(%arg0: i32, %arg1: i32) -> (i32, i32, i32) {
    %c0_i32 = arith.constant 0 : i32
    %c0_i32_0 = arith.constant 0 : i32
    %c0_i32_1 = arith.constant 0 : i32
    %c0_i32_2 = arith.constant 0 : i32
    return %c0_i32, %c0_i32_0, %c0_i32_1 : i32, i32, i32
  }
  func.func @transform_20(%arg0: i32, %arg1: i32) -> (i32, i32, i32) {
    %c0_i32 = arith.constant 0 : i32
    %c0_i32_0 = arith.constant 0 : i32
    %c0_i32_1 = arith.constant 0 : i32
    %c0_i32_2 = arith.constant 0 : i32
    return %c0_i32, %c0_i32_0, %c0_i32_1 : i32, i32, i32
  }
  func.func @transform_21(%arg0: i32, %arg1: i32) -> (i32, i32, i32, i32) {
    %c0_i32 = arith.constant 0 : i32
    %c0_i32_0 = arith.constant 0 : i32
    %c0_i32_1 = arith.constant 0 : i32
    return %arg0, %arg1, %c0_i32, %c0_i32_0 : i32, i32, i32, i32
  }
}

module attributes {stable_mosaic.version = 11 : i64} {
  func.func @_post_head_kernel(%arg0: i32, %arg1: memref<1x9x128xf32, #tpu.memory_space<vmem>>, %arg2: memref<1x128xf32, #tpu.memory_space<vmem>>, %arg3: memref<1x128xf32, #tpu.memory_space<vmem>>, %arg4: memref<128x128xbf16, #tpu.memory_space<vmem>>, %arg5: memref<128x128xbf16, #tpu.memory_space<vmem>>, %arg6: memref<128x128xbf16, #tpu.memory_space<vmem>>, %arg7: memref<1x128xf32, #tpu.memory_space<vmem>>, %arg8: memref<1x1x128xf32, #tpu.memory_space<vmem>>) attributes {dimension_semantics = [#tpu.dimension_semantics<parallel>], iteration_bounds = array<i64: 2>, scalar_prefetch = 0 : i64, scratch_operands = 0 : i64, tpu.core_type = #tpu.core_type<tc>, window_params = [{transform_indices = @transform_0, window_bounds = array<i64: 1, 9, 128>}, {pipeline_mode = #tpu.pipeline_mode<synchronous>, transform_indices = @transform_1, window_bounds = array<i64: 1, 128>}, {pipeline_mode = #tpu.pipeline_mode<synchronous>, transform_indices = @transform_2, window_bounds = array<i64: 1, 128>}, {pipeline_mode = #tpu.pipeline_mode<synchronous>, transform_indices = @transform_3, window_bounds = array<i64: 128, 128>}, {pipeline_mode = #tpu.pipeline_mode<synchronous>, transform_indices = @transform_4, window_bounds = array<i64: 128, 128>}, {pipeline_mode = #tpu.pipeline_mode<synchronous>, transform_indices = @transform_5, window_bounds = array<i64: 128, 128>}, {pipeline_mode = #tpu.pipeline_mode<synchronous>, transform_indices = @transform_6, window_bounds = array<i64: 1, 128>}, {transform_indices = @transform_7, window_bounds = array<i64: 1, 1, 128>}]} {
    %c0 = arith.constant 0 : index
    %c0_0 = arith.constant 0 : index
    %c0_1 = arith.constant 0 : index
    %0 = vector.load %arg1[%c0, %c0_0, %c0_1] : memref<1x9x128xf32, #tpu.memory_space<vmem>>, vector<1x9x128xf32>
    %1 = vector.shape_cast %0 : vector<1x9x128xf32> to vector<9x128xf32>
    %c0_2 = arith.constant 0 : index
    %c0_3 = arith.constant 0 : index
    %2 = vector.load %arg2[%c0_2, %c0_3] : memref<1x128xf32, #tpu.memory_space<vmem>>, vector<1x128xf32>
    %c0_4 = arith.constant 0 : index
    %c0_5 = arith.constant 0 : index
    %3 = vector.load %arg3[%c0_4, %c0_5] : memref<1x128xf32, #tpu.memory_space<vmem>>, vector<1x128xf32>
    %cst = arith.constant dense<0.000000e+00> : vector<9xf32>
    %4 = vector.multi_reduction <add>, %1, %cst [1] : vector<9x128xf32> to vector<9xf32>
    %5 = vector.shape_cast %4 : vector<9xf32> to vector<9x1xf32>
    %cst_6 = arith.constant 1.280000e+02 : f32
    %6 = vector.broadcast %cst_6 : f32 to vector<9x1xf32>
    %7 = arith.divf %5, %6 : vector<9x1xf32>
    %8 = vector.broadcast %7 : vector<9x1xf32> to vector<9x128xf32>
    %9 = arith.subf %1, %8 : vector<9x128xf32>
    %10 = arith.mulf %9, %9 : vector<9x128xf32>
    %cst_7 = arith.constant dense<0.000000e+00> : vector<9xf32>
    %11 = vector.multi_reduction <add>, %10, %cst_7 [1] : vector<9x128xf32> to vector<9xf32>
    %12 = vector.shape_cast %11 : vector<9xf32> to vector<9x1xf32>
    %cst_8 = arith.constant 1.280000e+02 : f32
    %13 = vector.broadcast %cst_8 : f32 to vector<9x1xf32>
    %14 = arith.divf %12, %13 : vector<9x1xf32>
    %cst_9 = arith.constant 9.99999974E-6 : f32
    %15 = vector.broadcast %cst_9 : f32 to vector<9x1xf32>
    %16 = arith.addf %14, %15 : vector<9x1xf32>
    %17 = math.rsqrt %16 : vector<9x1xf32>
    %18 = vector.broadcast %17 : vector<9x1xf32> to vector<9x128xf32>
    %19 = arith.mulf %9, %18 : vector<9x128xf32>
    %20 = vector.broadcast %2 : vector<1x128xf32> to vector<9x128xf32>
    %21 = arith.mulf %19, %20 : vector<9x128xf32>
    %22 = vector.broadcast %3 : vector<1x128xf32> to vector<9x128xf32>
    %23 = arith.addf %21, %22 : vector<9x128xf32>
    %c0_10 = arith.constant 0 : index
    %c0_11 = arith.constant 0 : index
    %24 = vector.load %arg4[%c0_10, %c0_11] : memref<128x128xbf16, #tpu.memory_space<vmem>>, vector<128x128xbf16>
    %25 = arith.truncf %23 : vector<9x128xf32> to vector<9x128xbf16>
    %cst_12 = arith.constant dense<0.000000e+00> : vector<9x128xf32>
    %26 = tpu.matmul %25, %24, %cst_12 {dimension_numbers = #tpu.dot_dimension_numbers<[1], [0], [0], [1], [0, 0, 1, 1], [], []>} : vector<9x128xbf16>, vector<128x128xbf16>, vector<9x128xf32> -> vector<9x128xf32>
    %27 = vector.extract_strided_slice %26 {offsets = [0, 0], sizes = [1, 128], strides = [1, 1]} : vector<9x128xf32> to vector<1x128xf32>
    %cst_13 = arith.constant dense<0.000000e+00> : vector<128xf32>
    %28 = vector.multi_reduction <add>, %27, %cst_13 [0] : vector<1x128xf32> to vector<128xf32>
    %29 = vector.shape_cast %28 : vector<128xf32> to vector<1x128xf32>
    %cst_14 = arith.constant 1.000000e+00 : f32
    %30 = vector.broadcast %cst_14 : f32 to vector<1x128xf32>
    %31 = arith.divf %29, %30 : vector<1x128xf32>
    %32 = vector.extract_strided_slice %26 {offsets = [1, 0], sizes = [8, 128], strides = [1, 1]} : vector<9x128xf32> to vector<8x128xf32>
    %cst_15 = arith.constant dense<0.000000e+00> : vector<128xf32>
    %33 = vector.multi_reduction <add>, %32, %cst_15 [0] : vector<8x128xf32> to vector<128xf32>
    %34 = vector.shape_cast %33 : vector<128xf32> to vector<1x128xf32>
    %cst_16 = arith.constant 8.000000e+00 : f32
    %35 = vector.broadcast %cst_16 : f32 to vector<1x128xf32>
    %36 = arith.divf %34, %35 : vector<1x128xf32>
    %c0_17 = arith.constant 0 : index
    %c0_18 = arith.constant 0 : index
    %37 = vector.load %arg5[%c0_17, %c0_18] : memref<128x128xbf16, #tpu.memory_space<vmem>>, vector<128x128xbf16>
    %38 = arith.truncf %31 : vector<1x128xf32> to vector<1x128xbf16>
    %cst_19 = arith.constant dense<0.000000e+00> : vector<1x128xf32>
    %39 = tpu.matmul %38, %37, %cst_19 {dimension_numbers = #tpu.dot_dimension_numbers<[1], [0], [0], [1], [0, 0, 1, 1], [], []>} : vector<1x128xbf16>, vector<128x128xbf16>, vector<1x128xf32> -> vector<1x128xf32>
    %c0_20 = arith.constant 0 : index
    %c0_21 = arith.constant 0 : index
    %40 = vector.load %arg6[%c0_20, %c0_21] : memref<128x128xbf16, #tpu.memory_space<vmem>>, vector<128x128xbf16>
    %41 = arith.truncf %36 : vector<1x128xf32> to vector<1x128xbf16>
    %cst_22 = arith.constant dense<0.000000e+00> : vector<1x128xf32>
    %42 = tpu.matmul %41, %40, %cst_22 {dimension_numbers = #tpu.dot_dimension_numbers<[1], [0], [0], [1], [0, 0, 1, 1], [], []>} : vector<1x128xbf16>, vector<128x128xbf16>, vector<1x128xf32> -> vector<1x128xf32>
    %43 = arith.addf %39, %42 : vector<1x128xf32>
    %c0_23 = arith.constant 0 : index
    %c0_24 = arith.constant 0 : index
    %44 = vector.load %arg7[%c0_23, %c0_24] : memref<1x128xf32, #tpu.memory_space<vmem>>, vector<1x128xf32>
    %45 = arith.addf %43, %44 : vector<1x128xf32>
    %c0_25 = arith.constant 0 : index
    %c0_26 = arith.constant 0 : index
    %c0_27 = arith.constant 0 : index
    %46 = vector.load %arg8[%c0_25, %c0_26, %c0_27] : memref<1x1x128xf32, #tpu.memory_space<vmem>>, vector<1x1x128xf32>
    %47 = vector.shape_cast %46 : vector<1x1x128xf32> to vector<1x128xf32>
    %48 = vector.shape_cast %45 : vector<1x128xf32> to vector<1x1x128xf32>
    tpu.vector_store %arg8[%c0_25, %c0_26, %c0_27], %48 {strides = array<i32>} : memref<1x1x128xf32, #tpu.memory_space<vmem>>, vector<1x1x128xf32>,
    return
  }
  func.func @transform_0(%arg0: i32) -> (i32, i32, i32) {
    %c0_i32 = arith.constant 0 : i32
    %c0_i32_0 = arith.constant 0 : i32
    %c0_i32_1 = arith.constant 0 : i32
    return %arg0, %c0_i32, %c0_i32_0 : i32, i32, i32
  }
  func.func @transform_1(%arg0: i32) -> (i32, i32) {
    %c0_i32 = arith.constant 0 : i32
    %c0_i32_0 = arith.constant 0 : i32
    %c0_i32_1 = arith.constant 0 : i32
    return %c0_i32, %c0_i32_0 : i32, i32
  }
  func.func @transform_2(%arg0: i32) -> (i32, i32) {
    %c0_i32 = arith.constant 0 : i32
    %c0_i32_0 = arith.constant 0 : i32
    %c0_i32_1 = arith.constant 0 : i32
    return %c0_i32, %c0_i32_0 : i32, i32
  }
  func.func @transform_3(%arg0: i32) -> (i32, i32) {
    %c0_i32 = arith.constant 0 : i32
    %c0_i32_0 = arith.constant 0 : i32
    %c0_i32_1 = arith.constant 0 : i32
    return %c0_i32, %c0_i32_0 : i32, i32
  }
  func.func @transform_4(%arg0: i32) -> (i32, i32) {
    %c0_i32 = arith.constant 0 : i32
    %c0_i32_0 = arith.constant 0 : i32
    %c0_i32_1 = arith.constant 0 : i32
    return %c0_i32, %c0_i32_0 : i32, i32
  }
  func.func @transform_5(%arg0: i32) -> (i32, i32) {
    %c0_i32 = arith.constant 0 : i32
    %c0_i32_0 = arith.constant 0 : i32
    %c0_i32_1 = arith.constant 0 : i32
    return %c0_i32, %c0_i32_0 : i32, i32
  }
  func.func @transform_6(%arg0: i32) -> (i32, i32) {
    %c0_i32 = arith.constant 0 : i32
    %c0_i32_0 = arith.constant 0 : i32
    %c0_i32_1 = arith.constant 0 : i32
    return %c0_i32, %c0_i32_0 : i32, i32
  }
  func.func @transform_7(%arg0: i32) -> (i32, i32, i32) {
    %c0_i32 = arith.constant 0 : i32
    %c0_i32_0 = arith.constant 0 : i32
    %c0_i32_1 = arith.constant 0 : i32
    return %arg0, %c0_i32, %c0_i32_0 : i32, i32, i32
  }
}

</mosaic_0001>

<llo_original>
// kernel: vit_clip_dualpath_forward.4
$region0: #{vit_clip_dualpath_forward.4}
  #allocation0 [shape = 'u32[]', space=smem, size = 0x4, offset = 0x4, fixed_abs, tag = 'smem constant byte address 0x4 - core index']
  #allocation1 [shape = 'u32[144,128]{1,0:T(1,128)}', space=vmem, size = 0x12000, scoped, tag = 'internal scratch']
  %s0 = inlined_call_operand.hbm [shape: bf16[2,9,4,192], index: 0, kind: input, shape index: {}]
  %s1 = inlined_call_operand.hbm [shape: bf16[192,128], index: 1, kind: input, shape index: {}]
  %s2 = inlined_call_operand.hbm [shape: f32[1,128], index: 2, kind: input, shape index: {}]
  %s3 = inlined_call_operand.hbm [shape: f32[9,5,128], index: 3, kind: input, shape index: {}]
  %s4 = inlined_call_operand.hbm [shape: f32[1,128], index: 4, kind: input, shape index: {}]
  %s5 = inlined_call_operand.hbm [shape: f32[1,128], index: 5, kind: input, shape index: {}]
  %s6 = inlined_call_operand.hbm [shape: f32[2,9,5,128], index: 6, kind: output, shape index: {}]
  %s7 = sld [smem:[#allocation0]]
  $region81: #{vit_clip_dualpath_forward.4} parent=0
    _
  %s9 = ssub.s32 1, %s7
  %s10 = scalar_select 0, %s9, %s7
  $region1: #{vit_clip_dualpath_forward.4} parent=0
    #allocation2 [shape = 'u8[4096]{0}', space=vmem, size = 0x1000, scoped, tag = 'input window, operand 0']
    #allocation3 [shape = 's32[2]{0}', space=sflag, size = 0x8, scoped, tag = 'scoped memory for vit_clip_dualpath_forward.4']
    #allocation4 [shape = 's32[2]{0}', space=sflag, size = 0x8, scoped, tag = 'scoped memory for vit_clip_dualpath_forward.4']
    #allocation5 [shape = 'u8[49152]{0}', space=vmem, size = 0xc000, scoped, tag = 'input window, operand 1, single buffered']
    #allocation6 [shape = 's32[1]{0}', space=sflag, size = 0x4, scoped, tag = 'scoped memory for vit_clip_dualpath_forward.4']
    #allocation7 [shape = 'u8[512]{0}', space=vmem, size = 0x400, scoped, tag = 'input window, operand 2, single buffered']
    #allocation8 [shape = 'u8[8192]{0}', space=vmem, size = 0x2000, scoped, tag = 'input window, operand 3']
    #allocation9 [shape = 's32[2]{0}', space=sflag, size = 0x8, scoped, tag = 'scoped memory for vit_clip_dualpath_forward.4']
    #allocation10 [shape = 'u8[512]{0}', space=vmem, size = 0x400, scoped, tag = 'input window, operand 4, single buffered']
    #allocation11 [shape = 'u8[512]{0}', space=vmem, size = 0x400, scoped, tag = 'input window, operand 5, single buffered']
    #allocation12 [shape = 's32[1]{0}', space=sflag, size = 0x4, scoped, tag = 'scoped memory for vit_clip_dualpath_forward.4']
    #allocation13 [shape = 'u8[8192]{0}', space=vmem, size = 0x2000, scoped, tag = 'output window, operand 0']
    %11 = vsyncpa [#allocation3], 0
    %s12 = scalar_lea.sflag [#allocation3], 1
    %13 = vsyncpa %s12, 0
    %14 = vsyncpa [#allocation6], 0
    %15 = vsyncpa [#allocation9], 0
    %s16 = scalar_lea.sflag [#allocation9], 1
    %17 = vsyncpa %s16, 0
    %18 = vsyncpa [#allocation12], 0
    %19 = vsyncpa [#allocation4], 0
    %s20 = scalar_lea.sflag [#allocation4], 1
    %21 = vsyncpa %s20, 0
    loop: start=0, step=1, limit=20
    $region2: #{vit_clip_dualpath_forward.4} parent=1 // loop_pre_header
      _
    $region3: #{vit_clip_dualpath_forward.4} parent=1 // loop_header
      %s23 = sphi 0, %s27
      %p24 = scmp.ge.s32.totalorder %s23, 20
      %s30 = sphi 0, %s42
      %s31 = sphi 0, %s38
      %s32 = sphi 0, %s30
      %s33 = sphi 0, %s31
      %s34 = sphi 0, %s32
      %s35 = sphi 0, %s33
      %s47 = sphi 0, %s49
      %s50 = sphi 0, %s47
      %s51 = sphi 0, %s50
      %s67 = sphi 0, %s51
      %s71 = sphi 0, %s71
      %s73 = sphi 0, %s71
      %s74 = sphi 0, %s73
      %s88 = sphi 0, %s74
      %s92 = sphi 0, %s92
      %s94 = sphi 0, %s92
      %s95 = sphi 0, %s94
      %s109 = sphi 0, %s95
      %s115 = sphi 0, %s117
      %s118 = sphi 0, %s115
      %s119 = sphi 0, %s118
      %s135 = sphi 0, %s119
      %s139 = sphi 0, %s139
      %s141 = sphi 0, %s139
      %s142 = sphi 0, %s141
      %s156 = sphi 0, %s142
      %s160 = sphi 0, %s160
      %s162 = sphi 0, %s160
      %s163 = sphi 0, %s162
      %s177 = sphi 0, %s163
      %s185 = sphi 0, %s187
      %s188 = sphi 0, %s185
      %s189 = sphi 0, %s188
      %s205 = sphi 0, %s189
    $region4: #{vit_clip_dualpath_forward.4} parent=1 // loop_header_branch
      %26 = sbr.rel (%p24) target = $region8
    $region5: #{vit_clip_dualpath_forward.4} parent=1 // loop_body
      %s28 = ssub.s32 %s23, 1
      %s29 = ssub.s32 %s23, 2
      %s36 = sadd.s32 1, %s31
      %p37 = scmp.ge.s32.totalorder %s36, 9
      %s38 = scalar_select %p37, 0, %s36
      %s39 = sadd.s32 1, %s30
      %s40 = scalar_select %p37, %s39, %s30
      %p41 = scmp.ge.s32.totalorder %s40, 2
      %s42 = scalar_select %p41, 0, %s40
      %s43 = ssub.s32 %s30, %s42
      %s44 = ssub.s32 %s31, %s38
      %s45 = sor.u32 %s43, %s44
      %p46 = scmp.eq.s32.totalorder %s45, 0
      %s48 = sadd.s32 %s47, 1
      %s49 = scalar_select %p46, %s47, %s48
      %p52 = pneg %p46
      %p53 = scmp.eq.s32.totalorder %s23, 17
      %p54 = por %p52, %p53
      %p55 = scmp.ne.s32.totalorder %s47, %s50
      %p56 = scmp.eq.s32.totalorder %s23, 0
      %p57 = por %p55, %p56
      %p58 = scmp.ne.s32.totalorder %s47, %s50
      %p59 = scmp.eq.s32.totalorder %s28, 17
      %p60 = por %p58, %p59
      %p61 = scmp.ne.s32.totalorder %s50, %s51
      %p62 = scmp.eq.s32.totalorder %s28, 0
      %p63 = por %p61, %p62
      %p64 = scmp.ne.s32.totalorder %s50, %s51
      %p65 = scmp.eq.s32.totalorder %s29, 17
      %p66 = por %p64, %p65
      %p68 = scmp.ne.s32.totalorder %s51, %s67
      %p69 = scmp.eq.s32.totalorder %s29, 0
      %p70 = por %p68, %p69
      %s72 = sadd.s32 %s71, 1
      %p75 = scmp.eq.s32.totalorder %s23, 17
      %p76 = scmp.ne.s32.totalorder %s71, %s73
      %p77 = scmp.eq.s32.totalorder %s23, 0
      %p78 = por %p76, %p77
      %p79 = scmp.ne.s32.totalorder %s71, %s73
      %p80 = scmp.eq.s32.totalorder %s28, 17
      %p81 = por %p79, %p80
      %p82 = scmp.ne.s32.totalorder %s73, %s74
      %p83 = scmp.eq.s32.totalorder %s28, 0
      %p84 = por %p82, %p83
      %p85 = scmp.ne.s32.totalorder %s73, %s74
      %p86 = scmp.eq.s32.totalorder %s29, 17
      %p87 = por %p85, %p86
      %p89 = scmp.ne.s32.totalorder %s74, %s88
      %p90 = scmp.eq.s32.totalorder %s29, 0
      %p91 = por %p89, %p90
      %s93 = sadd.s32 %s92, 1
      %p96 = scmp.eq.s32.totalorder %s23, 17
      %p97 = scmp.ne.s32.totalorder %s92, %s94
      %p98 = scmp.eq.s32.totalorder %s23, 0
      %p99 = por %p97, %p98
      %p100 = scmp.ne.s32.totalorder %s92, %s94
      %p101 = scmp.eq.s32.totalorder %s28, 17
      %p102 = por %p100, %p101
      %p103 = scmp.ne.s32.totalorder %s94, %s95
      %p104 = scmp.eq.s32.totalorder %s28, 0
      %p105 = por %p103, %p104
      %p106 = scmp.ne.s32.totalorder %s94, %s95
      %p107 = scmp.eq.s32.totalorder %s29, 17
      %p108 = por %p106, %p107
      %p110 = scmp.ne.s32.totalorder %s95, %s109
      %p111 = scmp.eq.s32.totalorder %s29, 0
      %p112 = por %p110, %p111
      %s113 = ssub.s32 %s31, %s38
      %p114 = scmp.eq.s32.totalorder %s113, 0
      %s116 = sadd.s32 %s115, 1
      %s117 = scalar_select %p114, %s115, %s116
      %p120 = pneg %p114
      %p121 = scmp.eq.s32.totalorder %s23, 17
      %p122 = por %p120, %p121
      %p123 = scmp.ne.s32.totalorder %s115, %s118
      %p124 = scmp.eq.s32.totalorder %s23, 0
      %p125 = por %p123, %p124
      %p126 = scmp.ne.s32.totalorder %s115, %s118
      %p127 = scmp.eq.s32.totalorder %s28, 17
      %p128 = por %p126, %p127
      %p129 = scmp.ne.s32.totalorder %s118, %s119
      %p130 = scmp.eq.s32.totalorder %s28, 0
      %p131 = por %p129, %p130
      %p132 = scmp.ne.s32.totalorder %s118, %s119
      %p133 = scmp.eq.s32.totalorder %s29, 17
      %p134 = por %p132, %p133
      %p136 = scmp.ne.s32.totalorder %s119, %s135
      %p137 = scmp.eq.s32.totalorder %s29, 0
      %p138 = por %p136, %p137
      %s140 = sadd.s32 %s139, 1
      %p143 = scmp.eq.s32.totalorder %s23, 17
      %p144 = scmp.ne.s32.totalorder %s139, %s141
      %p145 = scmp.eq.s32.totalorder %s23, 0
      %p146 = por %p144, %p145
      %p147 = scmp.ne.s32.totalorder %s139, %s141
      %p148 = scmp.eq.s32.totalorder %s28, 17
      %p149 = por %p147, %p148
      %p150 = scmp.ne.s32.totalorder %s141, %s142
      %p151 = scmp.eq.s32.totalorder %s28, 0
      %p152 = por %p150, %p151
      %p153 = scmp.ne.s32.totalorder %s141, %s142
      %p154 = scmp.eq.s32.totalorder %s29, 17
      %p155 = por %p153, %p154
      %p157 = scmp.ne.s32.totalorder %s142, %s156
      %p158 = scmp.eq.s32.totalorder %s29, 0
      %p159 = por %p157, %p158
      %s161 = sadd.s32 %s160, 1
      %p164 = scmp.eq.s32.totalorder %s23, 17
      %p165 = scmp.ne.s32.totalorder %s160, %s162
      %p166 = scmp.eq.s32.totalorder %s23, 0
      %p167 = por %p165, %p166
      %p168 = scmp.ne.s32.totalorder %s160, %s162
      %p169 = scmp.eq.s32.totalorder %s28, 17
      %p170 = por %p168, %p169
      %p171 = scmp.ne.s32.totalorder %s162, %s163
      %p172 = scmp.eq.s32.totalorder %s28, 0
      %p173 = por %p171, %p172
      %p174 = scmp.ne.s32.totalorder %s162, %s163
      %p175 = scmp.eq.s32.totalorder %s29, 17
      %p176 = por %p174, %p175
      %p178 = scmp.ne.s32.totalorder %s163, %s177
      %p179 = scmp.eq.s32.totalorder %s29, 0
      %p180 = por %p178, %p179
      %s181 = ssub.s32 %s30, %s42
      %s182 = ssub.s32 %s31, %s38
      %s183 = sor.u32 %s181, %s182
      %p184 = scmp.eq.s32.totalorder %s183, 0
      %s186 = sadd.s32 %s185, 1
      %s187 = scalar_select %p184, %s185, %s186
      %p190 = pneg %p184
      %p191 = scmp.eq.s32.totalorder %s23, 17
      %p192 = por %p190, %p191
      %p193 = scmp.ne.s32.totalorder %s185, %s188
      %p194 = scmp.eq.s32.totalorder %s23, 0
      %p195 = por %p193, %p194
      %p196 = scmp.ne.s32.totalorder %s185, %s188
      %p197 = scmp.eq.s32.totalorder %s28, 17
      %p198 = por %p196, %p197
      %p199 = scmp.ne.s32.totalorder %s188, %s189
      %p200 = scmp.eq.s32.totalorder %s28, 0
      %p201 = por %p199, %p200
      %p202 = scmp.ne.s32.totalorder %s188, %s189
      %p203 = scmp.eq.s32.totalorder %s29, 17
      %p204 = por %p202, %p203
      %p206 = scmp.ne.s32.totalorder %s189, %s205
      %p207 = scmp.eq.s32.totalorder %s29, 0
      %p208 = por %p206, %p207
      %p209 = scmp.le.s32.totalorder 1, %s23
      %p210 = scmp.lt.s32.totalorder %s23, 19
      %p211 = pnand %p209, %p210
      %p212 = pneg %p211
      // Predicated region
      $region9: #{vit_clip_dualpath_forward.4} parent=5 // pred_check
        _
      $region10: #{vit_clip_dualpath_forward.4} parent=5 // pred_check_branch
        %214 = sbr.rel (%p211) target = $region12
      $region11: #{vit_clip_dualpath_forward.4} parent=5 // pred_region
        %s215 = ssub.s32 %s23, 1
        // Predicated region
        $region13: #{vit_clip_dualpath_forward.4} parent=11 // pred_check
          %p216 = pneg %p84
        $region14: #{vit_clip_dualpath_forward.4} parent=11 // pred_check_branch
          %218 = sbr.rel (%p216) target = $region16
        $region15: #{vit_clip_dualpath_forward.4} parent=11 // pred_region
          %s220 = ssub.s32 1536, 1536
          %221 = vsyncadd [#allocation6], %s220
          %s222 = sshll.u32 [#allocation5], 4
          %s223 = int_to_ptr.vmem [resolvable:$true] %s222
          %228 = dma.hbm_to_vmem [thread:$0]  %s1, 1536, %s223, [#allocation6], 64, 64, 4
        $region16: #{vit_clip_dualpath_forward.4} parent=11 // pred_fallthru
          _
        // Predicated region
        $region17: #{vit_clip_dualpath_forward.4} parent=11 // pred_check
          %p229 = pneg %p105
        $region18: #{vit_clip_dualpath_forward.4} parent=11 // pred_check_branch
          %231 = sbr.rel (%p229) target = $region20
        $region19: #{vit_clip_dualpath_forward.4} parent=11 // pred_region
          %s233 = ssub.s32 16, 16
          %234 = vsyncadd [#allocation6], %s233
          %s236 = sshll.u32 [#allocation7], 4
          %s237 = int_to_ptr.vmem [resolvable:$true] %s236
          %239 = dma.hbm_to_vmem [thread:$0]  %s2, 16, %s237, [#allocation6]
        $region20: #{vit_clip_dualpath_forward.4} parent=11 // pred_fallthru
          _
        // Predicated region
        $region21: #{vit_clip_dualpath_forward.4} parent=11 // pred_check
          %p240 = pneg %p152
        $region22: #{vit_clip_dualpath_forward.4} parent=11 // pred_check_branch
          %242 = sbr.rel (%p240) target = $region24
        $region23: #{vit_clip_dualpath_forward.4} parent=11 // pred_region
          %s244 = ssub.s32 16, 16
          %245 = vsyncadd [#allocation9], %s244
          %s247 = sshll.u32 [#allocation10], 4
          %s248 = int_to_ptr.vmem [resolvable:$true] %s247
          %250 = dma.hbm_to_vmem [thread:$0]  %s4, 16, %s248, [#allocation9]
        $region24: #{vit_clip_dualpath_forward.4} parent=11 // pred_fallthru
          _
        // Predicated region
        $region25: #{vit_clip_dualpath_forward.4} parent=11 // pred_check
          %p251 = pneg %p173
        $region26: #{vit_clip_dualpath_forward.4} parent=11 // pred_check_branch
          %253 = sbr.rel (%p251) target = $region28
        $region27: #{vit_clip_dualpath_forward.4} parent=11 // pred_region
          %s255 = ssub.s32 16, 16
          %256 = vsyncadd [#allocation12], %s255
          %s258 = sshll.u32 [#allocation11], 4
          %s259 = int_to_ptr.vmem [resolvable:$true] %s258
          %261 = dma.hbm_to_vmem [thread:$0]  %s5, 16, %s259, [#allocation12]
        $region28: #{vit_clip_dualpath_forward.4} parent=11 // pred_fallthru
          _
      $region12: #{vit_clip_dualpath_forward.4} parent=5 // pred_fallthru
        _
      %p262 = scmp.lt.s32.totalorder %s23, 18
      // Predicated region
      $region29: #{vit_clip_dualpath_forward.4} parent=5 // pred_check
        %p263 = pneg %p262
      $region30: #{vit_clip_dualpath_forward.4} parent=5 // pred_check_branch
        %265 = sbr.rel (%p263) target = $region32
      $region31: #{vit_clip_dualpath_forward.4} parent=5 // pred_region
        // Predicated region
        $region33: #{vit_clip_dualpath_forward.4} parent=31 // pred_check
          %p266 = pneg %p57
        $region34: #{vit_clip_dualpath_forward.4} parent=31 // pred_check_branch
          %268 = sbr.rel (%p266) target = $region36
        $region35: #{vit_clip_dualpath_forward.4} parent=31 // pred_region
          %s269 = sand.u32 %s47, 1
          %s270 = scalar_lea.sflag [#allocation3], %s269
          %s271 = sand.u32 %s47, 1
          %s272 = smul.addr %s271, 4
          %s273 = scalar_lea.vmem [#allocation2], %s272
          %s275 = ssub.s32 64, 64
          %276 = vsyncadd %s270, %s275
          %s277 = smul.addr %s31, 2
          %s278 = smul.addr %s30, 18
          %s279 = sadd.s32 %s277, %s278
          %s280 = smul.addr %s279, 32
          %s281 = scalar_lea.hbm %s0, %s280
          %s283 = sshll.u32 %s273, 4
          %s284 = int_to_ptr.vmem [resolvable:$true] %s283
          %286 = dma.hbm_to_vmem [thread:$0]  %s281, 64, %s284, %s270
        $region36: #{vit_clip_dualpath_forward.4} parent=31 // pred_fallthru
          _
        // Predicated region
        $region37: #{vit_clip_dualpath_forward.4} parent=31 // pred_check
          %p287 = pneg %p125
        $region38: #{vit_clip_dualpath_forward.4} parent=31 // pred_check_branch
          %289 = sbr.rel (%p287) target = $region40
        $region39: #{vit_clip_dualpath_forward.4} parent=31 // pred_region
          %s290 = sand.u32 %s23, 1
          %s291 = scalar_lea.sflag [#allocation9], %s290
          %s292 = sand.u32 %s115, 1
          %s293 = smul.addr %s292, 8
          %s294 = scalar_lea.vmem [#allocation8], %s293
          %s296 = ssub.s32 128, 128
          %297 = vsyncadd %s291, %s296
          %s298 = smul.addr %s31, 128
          %s299 = scalar_lea.hbm %s3, %s298
          %s301 = sshll.u32 %s294, 4
          %s302 = int_to_ptr.vmem [resolvable:$true] %s301
          %304 = dma.hbm_to_vmem [thread:$0]  %s299, 128, %s302, %s291
        $region40: #{vit_clip_dualpath_forward.4} parent=31 // pred_fallthru
          _
      $region32: #{vit_clip_dualpath_forward.4} parent=5 // pred_fallthru
        _
      %p305 = scmp.le.s32.totalorder 1, %s23
      %p306 = scmp.lt.s32.totalorder %s23, 19
      %p307 = pnand %p305, %p306
      %p308 = pneg %p307
      // Predicated region
      $region41: #{vit_clip_dualpath_forward.4} parent=5 // pred_check
        _
      $region42: #{vit_clip_dualpath_forward.4} parent=5 // pred_check_branch
        %310 = sbr.rel (%p307) target = $region44
      $region43: #{vit_clip_dualpath_forward.4} parent=5 // pred_region
        %s311 = ssub.s32 %s23, 1
        %s312 = sand.u32 %s50, 1
        %s313 = scalar_lea.sflag [#allocation3], %s312
        %s314 = sand.u32 %s50, 1
        %s315 = smul.addr %s314, 4
        %s316 = scalar_lea.vmem [#allocation2], %s315
        // Predicated region
        $region45: #{vit_clip_dualpath_forward.4} parent=43 // pred_check
          %p317 = pneg %p63
        $region46: #{vit_clip_dualpath_forward.4} parent=43 // pred_check_branch
          %319 = sbr.rel (%p317) target = $region48
        $region47: #{vit_clip_dualpath_forward.4} parent=43 // pred_region
          %320 = dma.done %s313, 64
        $region48: #{vit_clip_dualpath_forward.4} parent=43 // pred_fallthru
          _
        // Predicated region
        $region49: #{vit_clip_dualpath_forward.4} parent=43 // pred_check
          %p321 = pneg %p84
        $region50: #{vit_clip_dualpath_forward.4} parent=43 // pred_check_branch
          %323 = sbr.rel (%p321) target = $region52
        $region51: #{vit_clip_dualpath_forward.4} parent=43 // pred_region
          %324 = dma.done [#allocation6], 1536
        $region52: #{vit_clip_dualpath_forward.4} parent=43 // pred_fallthru
          _
        // Predicated region
        $region53: #{vit_clip_dualpath_forward.4} parent=43 // pred_check
          %p325 = pneg %p105
        $region54: #{vit_clip_dualpath_forward.4} parent=43 // pred_check_branch
          %327 = sbr.rel (%p325) target = $region56
        $region55: #{vit_clip_dualpath_forward.4} parent=43 // pred_region
          %328 = dma.done [#allocation6], 16
        $region56: #{vit_clip_dualpath_forward.4} parent=43 // pred_fallthru
          _
        %s329 = sand.u32 %s28, 1
        %s330 = scalar_lea.sflag [#allocation9], %s329
        %s331 = sand.u32 %s118, 1
        %s332 = smul.addr %s331, 8
        %s333 = scalar_lea.vmem [#allocation8], %s332
        // Predicated region
        $region57: #{vit_clip_dualpath_forward.4} parent=43 // pred_check
          %p334 = pneg %p131
        $region58: #{vit_clip_dualpath_forward.4} parent=43 // pred_check_branch
          %336 = sbr.rel (%p334) target = $region60
        $region59: #{vit_clip_dualpath_forward.4} parent=43 // pred_region
          %337 = dma.done %s330, 128
        $region60: #{vit_clip_dualpath_forward.4} parent=43 // pred_fallthru
          _
        // Predicated region
        $region61: #{vit_clip_dualpath_forward.4} parent=43 // pred_check
          %p338 = pneg %p152
        $region62: #{vit_clip_dualpath_forward.4} parent=43 // pred_check_branch
          %340 = sbr.rel (%p338) target = $region64
        $region63: #{vit_clip_dualpath_forward.4} parent=43 // pred_region
          %341 = dma.done [#allocation9], 16
        $region64: #{vit_clip_dualpath_forward.4} parent=43 // pred_fallthru
          _
        // Predicated region
        $region65: #{vit_clip_dualpath_forward.4} parent=43 // pred_check
          %p342 = pneg %p173
        $region66: #{vit_clip_dualpath_forward.4} parent=43 // pred_check_branch
          %344 = sbr.rel (%p342) target = $region68
        $region67: #{vit_clip_dualpath_forward.4} parent=43 // pred_region
          %345 = dma.done [#allocation12], 16
        $region68: #{vit_clip_dualpath_forward.4} parent=43 // pred_fallthru
          _
        %s346 = sand.u32 %s50, 1
        %s347 = scalar_lea.sflag [#allocation3], %s346
        %s348 = sand.u32 %s50, 1
        %s349 = smul.addr %s348, 4
        %s350 = scalar_lea.vmem [#allocation2], %s349
        %p351 = pneg %p63
        %p352 = pneg %p60
        %p353 = pneg %p84
        %p354 = pneg %p81
        %p355 = pneg %p105
        %p356 = pneg %p102
        %s357 = sand.u32 %s28, 1
        %s358 = scalar_lea.sflag [#allocation9], %s357
        %s359 = sand.u32 %s118, 1
        %s360 = smul.addr %s359, 8
        %s361 = scalar_lea.vmem [#allocation8], %s360
        %p362 = pneg %p131
        %p363 = pneg %p128
        %p364 = pneg %p152
        %p365 = pneg %p149
        %p366 = pneg %p173
        %p367 = pneg %p170
        %p368 = pneg %p201
        %p369 = pneg %p198
        %s370 = sand.u32 %s188, 1
        %s371 = scalar_lea.sflag [#allocation4], %s370
        %s372 = sand.u32 %s188, 1
        %s373 = smul.addr %s372, 8
        %s374 = scalar_lea.vmem [#allocation13], %s373
        %v376 = vld [vmem:[%s316] sm:$0xf]
        %v377 = vld [vmem:[#allocation5] sm:$0xf]
        %v378 = vld [vmem:[#allocation5 + $0x4] sm:$0xf]
        %v379 = vld [vmem:[#allocation5 + $0x8] sm:$0xf]
        %v380 = vld [vmem:[#allocation5 + $0xc] sm:$0xf]
        %v381 = vld [vmem:[#allocation5 + $0x10] sm:$0xf]
        %v382 = vld [vmem:[#allocation5 + $0x14] sm:$0xf]
        %v383 = vld [vmem:[#allocation5 + $0x18] sm:$0xf]
        %v384 = vld [vmem:[#allocation5 + $0x1c] sm:$0xf]
        %v385 = vld [vmem:[#allocation5 + $0x20] sm:$0xf]
        %v386 = vld [vmem:[#allocation5 + $0x24] sm:$0xf]
        %v387 = vld [vmem:[#allocation5 + $0x28] sm:$0xf]
        %v388 = vld [vmem:[#allocation5 + $0x2c] sm:$0xf]
        %v389 = vld [vmem:[#allocation5 + $0x30] sm:$0xf]
        %v390 = vld [vmem:[#allocation5 + $0x34] sm:$0xf]
        %v391 = vld [vmem:[#allocation5 + $0x38] sm:$0xf]
        %v392 = vld [vmem:[#allocation5 + $0x3c] sm:$0xf]
        %v393 = vld [vmem:[#allocation5 + $0x40] sm:$0xf]
        %v394 = vld [vmem:[#allocation5 + $0x44] sm:$0xf]
        %v395 = vld [vmem:[#allocation5 + $0x48] sm:$0xf]
        %v396 = vld [vmem:[#allocation5 + $0x4c] sm:$0xf]
        %v397 = vld [vmem:[#allocation5 + $0x50] sm:$0xf]
        %v398 = vld [vmem:[#allocation5 + $0x54] sm:$0xf]
        %v399 = vld [vmem:[#allocation5 + $0x58] sm:$0xf]
        %v400 = vld [vmem:[#allocation5 + $0x5c] sm:$0xf]
        %v403 = vunpack.c.l.s4 1983009808
        %v404 = vunpack.c.0.s8 %v403
        %v405 = vlaneseq
        %v406 = vshrl.u32 %v405, 7
        %v407 = vsub.s32 %v404, %v406
        %v408 = vrot.slane %v376, %v407
        %v409 = vcombine.high %v408, %v408
        %v435 = vunpack.c.l.b16 %v377
        %v436 = vunpack.c.l.b16 %v378
        %v437 = vunpack.c.l.b16 %v379
        %v438 = vunpack.c.l.b16 %v380
        %v439 = vunpack.c.l.b16 %v381
        %v440 = vunpack.c.l.b16 %v382
        %v441 = vunpack.c.l.b16 %v383
        %v442 = vunpack.c.l.b16 %v384
        %v443 = vunpack.c.l.b16 %v385
        %v444 = vunpack.c.l.b16 %v386
        %v445 = vunpack.c.l.b16 %v387
        %v446 = vunpack.c.l.b16 %v388
        %v447 = vunpack.c.l.b16 %v389
        %v448 = vunpack.c.l.b16 %v390
        %v449 = vunpack.c.l.b16 %v391
        %v450 = vunpack.c.l.b16 %v392
        %v451 = vunpack.c.l.b16 %v393
        %v452 = vunpack.c.l.b16 %v394
        %v453 = vunpack.c.l.b16 %v395
        %v454 = vunpack.c.l.b16 %v396
        %v455 = vunpack.c.l.b16 %v397
        %v456 = vunpack.c.l.b16 %v398
        %v457 = vunpack.c.l.b16 %v399
        %v458 = vunpack.c.l.b16 %v400
        %v459 = vpack.c.b16 %v436, %v435
        %v460 = vpack.c.b16 %v438, %v437
        %v461 = vpack.c.b16 %v440, %v439
        %v462 = vpack.c.b16 %v442, %v441
        %v463 = vpack.c.b16 %v444, %v443
        %v464 = vpack.c.b16 %v446, %v445
        %v465 = vpack.c.b16 %v448, %v447
        %v466 = vpack.c.b16 %v450, %v449
        %v467 = vpack.c.b16 %v452, %v451
        %v468 = vpack.c.b16 %v454, %v453
        %v469 = vpack.c.b16 %v456, %v455
        %v470 = vpack.c.b16 %v458, %v457
        %vm483 = vcmask 523264
        %v485 = vsel %vm483, %v409, 0
        %487 = vmatprep.subr.bf16.mxu0 0
        %488 = vmatpush1.bf16.msra.mxu0 %v459
        %489 = vmatprep.subr.bf16.mxu0 0
        %490 = vmatpush1.bf16.msra.mxu0 %v460
        %491 = vmatprep.subr.bf16.mxu0 0
        %492 = vmatpush1.bf16.msra.mxu0 %v461
        %493 = vmatprep.subr.bf16.mxu0 0
        %494 = vmatpush1.bf16.msra.mxu0 %v462
        %495 = vmatprep.subr.bf16.mxu0 0
        %496 = vmatpush1.bf16.msra.mxu0 %v463
        %497 = vmatprep.subr.bf16.mxu0 0
        %498 = vmatpush1.bf16.msra.mxu0 %v464
        %499 = vmatprep.subr.bf16.mxu0 0
        %500 = vmatpush1.bf16.msra.mxu0 %v465
        %501 = vmatprep.subr.bf16.mxu0 0
        %502 = vmatpush1.bf16.msra.mxu0 %v466
        %503 = vmatprep.subr.bf16.mxu0 0
        %504 = vmatpush1.bf16.msra.mxu0 %v467
        %505 = vmatprep.subr.bf16.mxu0 0
        %506 = vmatpush1.bf16.msra.mxu0 %v468
        %507 = vmatprep.subr.bf16.mxu0 0
        %508 = vmatpush1.bf16.msra.mxu0 %v469
        %509 = vmatprep.subr.bf16.mxu0 0
        %510 = vmatpush1.bf16.msra.mxu0 %v470
        %511 = vmatprep.subr.bf16.mxu0 0
        %512 = vmatpush1.bf16.msra.mxu0 0
        %513 = vmatprep.subr.bf16.mxu0 0
        %514 = vmatpush1.bf16.msra.mxu0 0
        %515 = vmatprep.subr.bf16.mxu0 0
        %516 = vmatpush1.bf16.msra.mxu0 0
        %517 = vmatprep.subr.bf16.mxu0 0
        %518 = vmatpush1.bf16.msra.mxu0 0
        %519 = vmatprep.mubr.bf16.mxu0 %v485
        %520 = vmatmul.mubr.bf16.gmra.mrb[0].mxu0 %v408
        %v521 = vpop.f32.mrb[0].mxu0
        %v522 = vadd.f32 0.0, %v521
        %v523 = vpop.f32.mrb[0].mxu0
        %v524 = vpop.f32.mrb[0].mxu0
        %v525 = vpop.f32.mrb[0].mxu0
        %526 = vdwg.mxu0
        %v527 = vld [vmem:[#allocation7] sm:$0x1]
        %v529 = vrot.slane %v522, 7
        %vm531 = vcmask 1040384
        %v532 = vsel %vm531, %v527, %v529
        %v533 = vld [vmem:[%s333] sm:$0x1f]
        %v534 = vadd.f32 %v532, %v533
        %v535 = vld [vmem:[#allocation10] sm:$0x1]
        %v536 = vld [vmem:[#allocation11] sm:$0x1]
        %vm537 = vcmask 1044480
        %v538 = vsel %vm537, %v534, 0.0
        %539 = vadd.xlane.f32.xlu0 %v538
        %v540 = vpop.xlane.xlu0 %539
        %v541 = vrcp.pop 128.0
        %v542 = vmul.f32 %v540, %v541
        %v543 = vsub.f32 %v534, %v542
        %v544 = vmul.f32 %v543, %v543
        %v545 = vsel %vm537, %v544, 0.0
        %546 = vadd.xlane.f32.xlu0 %v545
        %v547 = vpop.xlane.xlu0 %546
        %v548 = vmul.f32 %v547, %v541
        %v549 = vadd.f32 %v548, 1e-05
        %v550 = vrsqrt.pop %v549
        %v551 = vmul.f32 %v543, %v550
        %v553 = vlaneseq
        %v554 = vshrl.u32 %v553, 7
        %v555 = vsub.s32 0, %v554
        %v556 = vrot.slane %v535, %v555
        %v558 = vmul.f32 %v551, %v556
        %v560 = vlaneseq
        %v561 = vshrl.u32 %v560, 7
        %v562 = vsub.s32 0, %v561
        %v563 = vrot.slane %v536, %v562
        %v565 = vadd.f32 %v558, %v563
        %566 = vst [vmem:[%s374] sm:$0x1f] %v565
        %s567 = sand.u32 %s188, 1
        %s568 = scalar_lea.sflag [#allocation4], %s567
        %s569 = sand.u32 %s188, 1
        %s570 = smul.addr %s569, 8
        %s571 = scalar_lea.vmem [#allocation13], %s570
        // Predicated region
        $region69: #{vit_clip_dualpath_forward.4} parent=43 // pred_check
          %p572 = pneg %p198
        $region70: #{vit_clip_dualpath_forward.4} parent=43 // pred_check_branch
          %574 = sbr.rel (%p572) target = $region72
        $region71: #{vit_clip_dualpath_forward.4} parent=43 // pred_region
          %s576 = ssub.s32 128, 128
          %577 = vsyncadd %s568, %s576
          %s578 = smul.addr %s32, 9
          %s579 = sadd.s32 %s33, %s578
          %s580 = smul.addr %s579, 128
          %s581 = scalar_lea.hbm %s6, %s580
          %s583 = sshll.u32 %s571, 4
          %s584 = int_to_ptr.vmem [resolvable:$true] %s583
          %586 = dma.vmem_to_hbm [thread:$0]  %s584, 128, %s581, %s568
        $region72: #{vit_clip_dualpath_forward.4} parent=43 // pred_fallthru
          _
      $region44: #{vit_clip_dualpath_forward.4} parent=5 // pred_fallthru
        _
      %p587 = scmp.le.s32.totalorder 2, %s23
      // Predicated region
      $region73: #{vit_clip_dualpath_forward.4} parent=5 // pred_check
        %p588 = pneg %p587
      $region74: #{vit_clip_dualpath_forward.4} parent=5 // pred_check_branch
        %590 = sbr.rel (%p588) target = $region76
      $region75: #{vit_clip_dualpath_forward.4} parent=5 // pred_region
        %s591 = ssub.s32 %s23, 2
        // Predicated region
        $region77: #{vit_clip_dualpath_forward.4} parent=75 // pred_check
          %p592 = pneg %p204
        $region78: #{vit_clip_dualpath_forward.4} parent=75 // pred_check_branch
          %594 = sbr.rel (%p592) target = $region80
        $region79: #{vit_clip_dualpath_forward.4} parent=75 // pred_region
          %s595 = sand.u32 %s189, 1
          %s596 = scalar_lea.sflag [#allocation4], %s595
          %s597 = sand.u32 %s189, 1
          %s598 = smul.addr %s597, 8
          %s599 = scalar_lea.vmem [#allocation13], %s598
          %600 = dma.done %s596, 128
        $region80: #{vit_clip_dualpath_forward.4} parent=75 // pred_fallthru
          _
      $region76: #{vit_clip_dualpath_forward.4} parent=5 // pred_fallthru
        _
    $region6: #{vit_clip_dualpath_forward.4} parent=1 // loop_footer
      %s27 = sadd.s32 1, %s23
    $region7: #{vit_clip_dualpath_forward.4} parent=1 // loop_footer_branch
      %22 = sbr.rel target = $region3
    $region8: #{vit_clip_dualpath_forward.4} parent=1 // loop_exit
      _
    %601 = vsyncpa [#allocation3], 1
    %s602 = scalar_lea.sflag [#allocation3], 1
    %603 = vsyncpa %s602, 1
    %604 = vsyncpa [#allocation6], 1
    %605 = vsyncpa [#allocation9], 1
    %s606 = scalar_lea.sflag [#allocation9], 1
    %607 = vsyncpa %s606, 1
    %608 = vsyncpa [#allocation12], 1
    %609 = vsyncpa [#allocation4], 1
    %s610 = scalar_lea.sflag [#allocation4], 1
    %611 = vsyncpa %s610, 1

// kernel: vit_clip_dualpath_forward.5
$region0: #{vit_clip_dualpath_forward.5}
  #allocation0 [shape = 'u32[]', space=smem, size = 0x4, offset = 0x4, fixed_abs, tag = 'smem constant byte address 0x4 - core index']
  #allocation1 [shape = 'u32[144,128]{1,0:T(1,128)}', space=vmem, size = 0x12000, scoped, tag = 'internal scratch']
  %s0 = inlined_call_operand.hbm [shape: f32[2,9,5,128], index: 0, kind: input, shape index: {}]
  %s1 = inlined_call_operand.hbm [shape: f32[1,128], index: 1, kind: input, shape index: {}]
  %s2 = inlined_call_operand.hbm [shape: f32[1,128], index: 2, kind: input, shape index: {}]
  %s3 = inlined_call_operand.hbm [shape: bf16[128,384], index: 3, kind: input, shape index: {}]
  %s4 = inlined_call_operand.hbm [shape: f32[1,384], index: 4, kind: input, shape index: {}]
  %s5 = inlined_call_operand.hbm [shape: bf16[128,128], index: 5, kind: input, shape index: {}]
  %s6 = inlined_call_operand.hbm [shape: f32[1,128], index: 6, kind: input, shape index: {}]
  %s7 = inlined_call_operand.hbm [shape: bf16[2,128,64], index: 7, kind: input, shape index: {}]
  %s8 = inlined_call_operand.hbm [shape: f32[2,1,64], index: 8, kind: input, shape index: {}]
  %s9 = inlined_call_operand.hbm [shape: bf16[2,64,128], index: 9, kind: input, shape index: {}]
  %s10 = inlined_call_operand.hbm [shape: f32[2,1,128], index: 10, kind: input, shape index: {}]
  %s11 = inlined_call_operand.hbm [shape: f32[1,128], index: 11, kind: input, shape index: {}]
  %s12 = inlined_call_operand.hbm [shape: f32[1,128], index: 12, kind: input, shape index: {}]
  %s13 = inlined_call_operand.hbm [shape: bf16[128,512], index: 13, kind: input, shape index: {}]
  %s14 = inlined_call_operand.hbm [shape: f32[1,512], index: 14, kind: input, shape index: {}]
  %s15 = inlined_call_operand.hbm [shape: bf16[512,128], index: 15, kind: input, shape index: {}]
  %s16 = inlined_call_operand.hbm [shape: f32[1,128], index: 16, kind: input, shape index: {}]
  %s17 = inlined_call_operand.hbm [shape: bf16[2,128,64], index: 17, kind: input, shape index: {}]
  %s18 = inlined_call_operand.hbm [shape: f32[2,1,64], index: 18, kind: input, shape index: {}]
  %s19 = inlined_call_operand.hbm [shape: bf16[2,64,128], index: 19, kind: input, shape index: {}]
  %s20 = inlined_call_operand.hbm [shape: f32[2,1,128], index: 20, kind: input, shape index: {}]
  %s21 = inlined_call_operand.hbm [shape: f32[2,9,5,128], index: 21, kind: output, shape index: {}]
  %s22 = sld [smem:[#allocation0]]
  $region201: #{vit_clip_dualpath_forward.5} parent=0
    _
  %s24 = ssub.s32 1, %s22
  %s25 = scalar_select 0, %s24, %s22
  $region1: #{vit_clip_dualpath_forward.5} parent=0
    #allocation2 [shape = 'u8[8192]{0}', space=vmem, size = 0x2000, scoped, tag = 'input window, operand 0']
    #allocation3 [shape = 's32[2]{0}', space=sflag, size = 0x8, scoped, tag = 'scoped memory for vit_clip_dualpath_forward.5']
    #allocation4 [shape = 's32[2]{0}', space=sflag, size = 0x8, scoped, tag = 'scoped memory for vit_clip_dualpath_forward.5']
    #allocation5 [shape = 'u8[512]{0}', space=vmem, size = 0x400, scoped, tag = 'input window, operand 1, single buffered']
    #allocation6 [shape = 's32[1]{0}', space=sflag, size = 0x4, scoped, tag = 'scoped memory for vit_clip_dualpath_forward.5']
    #allocation7 [shape = 'u8[512]{0}', space=vmem, size = 0x400, scoped, tag = 'input window, operand 2, single buffered']
    #allocation8 [shape = 'u8[98304]{0}', space=vmem, size = 0x18000, scoped, tag = 'input window, operand 3, single buffered']
    #allocation9 [shape = 's32[1]{0}', space=sflag, size = 0x4, scoped, tag = 'scoped memory for vit_clip_dualpath_forward.5']
    #allocation10 [shape = 'u8[1536]{0}', space=vmem, size = 0x800, scoped, tag = 'input window, operand 4, single buffered']
    #allocation11 [shape = 'u8[32768]{0}', space=vmem, size = 0x8000, scoped, tag = 'input window, operand 5, single buffered']
    #allocation12 [shape = 's32[1]{0}', space=sflag, size = 0x4, scoped, tag = 'scoped memory for vit_clip_dualpath_forward.5']
    #allocation13 [shape = 'u8[512]{0}', space=vmem, size = 0x400, scoped, tag = 'input window, operand 6, single buffered']
    #allocation14 [shape = 'u8[65536]{0}', space=vmem, size = 0x10000, scoped, tag = 'input window, operand 7, single buffered']
    #allocation15 [shape = 's32[1]{0}', space=sflag, size = 0x4, scoped, tag = 'scoped memory for vit_clip_dualpath_forward.5']
    #allocation16 [shape = 'u8[1024]{0}', space=vmem, size = 0x400, scoped, tag = 'input window, operand 8, single buffered']
    #allocation17 [shape = 'u8[32768]{0}', space=vmem, size = 0x8000, scoped, tag = 'input window, operand 9, single buffered']
    #allocation18 [shape = 's32[1]{0}', space=sflag, size = 0x4, scoped, tag = 'scoped memory for vit_clip_dualpath_forward.5']
    #allocation19 [shape = 'u8[1024]{0}', space=vmem, size = 0x400, scoped, tag = 'input window, operand 10, single buffered']
    #allocation20 [shape = 'u8[512]{0}', space=vmem, size = 0x400, scoped, tag = 'input window, operand 11, single buffered']
    #allocation21 [shape = 's32[1]{0}', space=sflag, size = 0x4, scoped, tag = 'scoped memory for vit_clip_dualpath_forward.5']
    #allocation22 [shape = 'u8[512]{0}', space=vmem, size = 0x400, scoped, tag = 'input window, operand 12, single buffered']
    #allocation23 [shape = 'u8[131072]{0}', space=vmem, size = 0x20000, scoped, tag = 'input window, operand 13, single buffered']
    #allocation24 [shape = 's32[1]{0}', space=sflag, size = 0x4, scoped, tag = 'scoped memory for vit_clip_dualpath_forward.5']
    #allocation25 [shape = 'u8[2048]{0}', space=vmem, size = 0x800, scoped, tag = 'input window, operand 14, single buffered']
    #allocation26 [shape = 'u8[131072]{0}', space=vmem, size = 0x20000, scoped, tag = 'input window, operand 15, single buffered']
    #allocation27 [shape = 's32[1]{0}', space=sflag, size = 0x4, scoped, tag = 'scoped memory for vit_clip_dualpath_forward.5']
    #allocation28 [shape = 'u8[512]{0}', space=vmem, size = 0x400, scoped, tag = 'input window, operand 16, single buffered']
    #allocation29 [shape = 'u8[65536]{0}', space=vmem, size = 0x10000, scoped, tag = 'input window, operand 17, single buffered']
    #allocation30 [shape = 's32[1]{0}', space=sflag, size = 0x4, scoped, tag = 'scoped memory for vit_clip_dualpath_forward.5']
    #allocation31 [shape = 'u8[1024]{0}', space=vmem, size = 0x400, scoped, tag = 'input window, operand 18, single buffered']
    #allocation32 [shape = 'u8[32768]{0}', space=vmem, size = 0x8000, scoped, tag = 'input window, operand 19, single buffered']
    #allocation33 [shape = 's32[1]{0}', space=sflag, size = 0x4, scoped, tag = 'scoped memory for vit_clip_dualpath_forward.5']
    #allocation34 [shape = 'u8[1024]{0}', space=vmem, size = 0x400, scoped, tag = 'input window, operand 20, single buffered']
    #allocation35 [shape = 'u8[8192]{0}', space=vmem, size = 0x2000, scoped, tag = 'output window, operand 0']
    %26 = vsyncpa [#allocation3], 0
    %s27 = scalar_lea.sflag [#allocation3], 1
    %28 = vsyncpa %s27, 0
    %29 = vsyncpa [#allocation6], 0
    %30 = vsyncpa [#allocation9], 0
    %31 = vsyncpa [#allocation12], 0
    %32 = vsyncpa [#allocation15], 0
    %33 = vsyncpa [#allocation18], 0
    %34 = vsyncpa [#allocation21], 0
    %35 = vsyncpa [#allocation24], 0
    %36 = vsyncpa [#allocation27], 0
    %37 = vsyncpa [#allocation30], 0
    %38 = vsyncpa [#allocation33], 0
    %39 = vsyncpa [#allocation4], 0
    %s40 = scalar_lea.sflag [#allocation4], 1
    %41 = vsyncpa %s40, 0
    loop: start=0, step=1, limit=20
    $region2: #{vit_clip_dualpath_forward.5} parent=1 // loop_pre_header
      _
    $region3: #{vit_clip_dualpath_forward.5} parent=1 // loop_header
      %s43 = sphi 0, %s47
      %p44 = scmp.ge.s32.totalorder %s43, 20
      %s50 = sphi 0, %s62
      %s51 = sphi 0, %s58
      %s52 = sphi 0, %s50
      %s53 = sphi 0, %s51
      %s54 = sphi 0, %s52
      %s55 = sphi 0, %s53
      %s67 = sphi 0, %s69
      %s70 = sphi 0, %s67
      %s71 = sphi 0, %s70
      %s87 = sphi 0, %s71
      %s91 = sphi 0, %s91
      %s93 = sphi 0, %s91
      %s94 = sphi 0, %s93
      %s108 = sphi 0, %s94
      %s112 = sphi 0, %s112
      %s114 = sphi 0, %s112
      %s115 = sphi 0, %s114
      %s129 = sphi 0, %s115
      %s133 = sphi 0, %s133
      %s135 = sphi 0, %s133
      %s136 = sphi 0, %s135
      %s150 = sphi 0, %s136
      %s154 = sphi 0, %s154
      %s156 = sphi 0, %s154
      %s157 = sphi 0, %s156
      %s171 = sphi 0, %s157
      %s175 = sphi 0, %s175
      %s177 = sphi 0, %s175
      %s178 = sphi 0, %s177
      %s192 = sphi 0, %s178
      %s196 = sphi 0, %s196
      %s198 = sphi 0, %s196
      %s199 = sphi 0, %s198
      %s213 = sphi 0, %s199
      %s217 = sphi 0, %s217
      %s219 = sphi 0, %s217
      %s220 = sphi 0, %s219
      %s234 = sphi 0, %s220
      %s238 = sphi 0, %s238
      %s240 = sphi 0, %s238
      %s241 = sphi 0, %s240
      %s255 = sphi 0, %s241
      %s259 = sphi 0, %s259
      %s261 = sphi 0, %s259
      %s262 = sphi 0, %s261
      %s276 = sphi 0, %s262
      %s280 = sphi 0, %s280
      %s282 = sphi 0, %s280
      %s283 = sphi 0, %s282
      %s297 = sphi 0, %s283
      %s301 = sphi 0, %s301
      %s303 = sphi 0, %s301
      %s304 = sphi 0, %s303
      %s318 = sphi 0, %s304
      %s322 = sphi 0, %s322
      %s324 = sphi 0, %s322
      %s325 = sphi 0, %s324
      %s339 = sphi 0, %s325
      %s343 = sphi 0, %s343
      %s345 = sphi 0, %s343
      %s346 = sphi 0, %s345
      %s360 = sphi 0, %s346
      %s364 = sphi 0, %s364
      %s366 = sphi 0, %s364
      %s367 = sphi 0, %s366
      %s381 = sphi 0, %s367
      %s385 = sphi 0, %s385
      %s387 = sphi 0, %s385
      %s388 = sphi 0, %s387
      %s402 = sphi 0, %s388
      %s406 = sphi 0, %s406
      %s408 = sphi 0, %s406
      %s409 = sphi 0, %s408
      %s423 = sphi 0, %s409
      %s427 = sphi 0, %s427
      %s429 = sphi 0, %s427
      %s430 = sphi 0, %s429
      %s444 = sphi 0, %s430
      %s448 = sphi 0, %s448
      %s450 = sphi 0, %s448
      %s451 = sphi 0, %s450
      %s465 = sphi 0, %s451
      %s469 = sphi 0, %s469
      %s471 = sphi 0, %s469
      %s472 = sphi 0, %s471
      %s486 = sphi 0, %s472
      %s490 = sphi 0, %s490
      %s492 = sphi 0, %s490
      %s493 = sphi 0, %s492
      %s507 = sphi 0, %s493
      %s515 = sphi 0, %s517
      %s518 = sphi 0, %s515
      %s519 = sphi 0, %s518
      %s535 = sphi 0, %s519
    $region4: #{vit_clip_dualpath_forward.5} parent=1 // loop_header_branch
      %46 = sbr.rel (%p44) target = $region8
    $region5: #{vit_clip_dualpath_forward.5} parent=1 // loop_body
      %s48 = ssub.s32 %s43, 1
      %s49 = ssub.s32 %s43, 2
      %s56 = sadd.s32 1, %s51
      %p57 = scmp.ge.s32.totalorder %s56, 9
      %s58 = scalar_select %p57, 0, %s56
      %s59 = sadd.s32 1, %s50
      %s60 = scalar_select %p57, %s59, %s50
      %p61 = scmp.ge.s32.totalorder %s60, 2
      %s62 = scalar_select %p61, 0, %s60
      %s63 = ssub.s32 %s50, %s62
      %s64 = ssub.s32 %s51, %s58
      %s65 = sor.u32 %s63, %s64
      %p66 = scmp.eq.s32.totalorder %s65, 0
      %s68 = sadd.s32 %s67, 1
      %s69 = scalar_select %p66, %s67, %s68
      %p72 = pneg %p66
      %p73 = scmp.eq.s32.totalorder %s43, 17
      %p74 = por %p72, %p73
      %p75 = scmp.ne.s32.totalorder %s67, %s70
      %p76 = scmp.eq.s32.totalorder %s43, 0
      %p77 = por %p75, %p76
      %p78 = scmp.ne.s32.totalorder %s67, %s70
      %p79 = scmp.eq.s32.totalorder %s48, 17
      %p80 = por %p78, %p79
      %p81 = scmp.ne.s32.totalorder %s70, %s71
      %p82 = scmp.eq.s32.totalorder %s48, 0
      %p83 = por %p81, %p82
      %p84 = scmp.ne.s32.totalorder %s70, %s71
      %p85 = scmp.eq.s32.totalorder %s49, 17
      %p86 = por %p84, %p85
      %p88 = scmp.ne.s32.totalorder %s71, %s87
      %p89 = scmp.eq.s32.totalorder %s49, 0
      %p90 = por %p88, %p89
      %s92 = sadd.s32 %s91, 1
      %p95 = scmp.eq.s32.totalorder %s43, 17
      %p96 = scmp.ne.s32.totalorder %s91, %s93
      %p97 = scmp.eq.s32.totalorder %s43, 0
      %p98 = por %p96, %p97
      %p99 = scmp.ne.s32.totalorder %s91, %s93
      %p100 = scmp.eq.s32.totalorder %s48, 17
      %p101 = por %p99, %p100
      %p102 = scmp.ne.s32.totalorder %s93, %s94
      %p103 = scmp.eq.s32.totalorder %s48, 0
      %p104 = por %p102, %p103
      %p105 = scmp.ne.s32.totalorder %s93, %s94
      %p106 = scmp.eq.s32.totalorder %s49, 17
      %p107 = por %p105, %p106
      %p109 = scmp.ne.s32.totalorder %s94, %s108
      %p110 = scmp.eq.s32.totalorder %s49, 0
      %p111 = por %p109, %p110
      %s113 = sadd.s32 %s112, 1
      %p116 = scmp.eq.s32.totalorder %s43, 17
      %p117 = scmp.ne.s32.totalorder %s112, %s114
      %p118 = scmp.eq.s32.totalorder %s43, 0
      %p119 = por %p117, %p118
      %p120 = scmp.ne.s32.totalorder %s112, %s114
      %p121 = scmp.eq.s32.totalorder %s48, 17
      %p122 = por %p120, %p121
      %p123 = scmp.ne.s32.totalorder %s114, %s115
      %p124 = scmp.eq.s32.totalorder %s48, 0
      %p125 = por %p123, %p124
      %p126 = scmp.ne.s32.totalorder %s114, %s115
      %p127 = scmp.eq.s32.totalorder %s49, 17
      %p128 = por %p126, %p127
      %p130 = scmp.ne.s32.totalorder %s115, %s129
      %p131 = scmp.eq.s32.totalorder %s49, 0
      %p132 = por %p130, %p131
      %s134 = sadd.s32 %s133, 1
      %p137 = scmp.eq.s32.totalorder %s43, 17
      %p138 = scmp.ne.s32.totalorder %s133, %s135
      %p139 = scmp.eq.s32.totalorder %s43, 0
      %p140 = por %p138, %p139
      %p141 = scmp.ne.s32.totalorder %s133, %s135
      %p142 = scmp.eq.s32.totalorder %s48, 17
      %p143 = por %p141, %p142
      %p144 = scmp.ne.s32.totalorder %s135, %s136
      %p145 = scmp.eq.s32.totalorder %s48, 0
      %p146 = por %p144, %p145
      %p147 = scmp.ne.s32.totalorder %s135, %s136
      %p148 = scmp.eq.s32.totalorder %s49, 17
      %p149 = por %p147, %p148
      %p151 = scmp.ne.s32.totalorder %s136, %s150
      %p152 = scmp.eq.s32.totalorder %s49, 0
      %p153 = por %p151, %p152
      %s155 = sadd.s32 %s154, 1
      %p158 = scmp.eq.s32.totalorder %s43, 17
      %p159 = scmp.ne.s32.totalorder %s154, %s156
      %p160 = scmp.eq.s32.totalorder %s43, 0
      %p161 = por %p159, %p160
      %p162 = scmp.ne.s32.totalorder %s154, %s156
      %p163 = scmp.eq.s32.totalorder %s48, 17
      %p164 = por %p162, %p163
      %p165 = scmp.ne.s32.totalorder %s156, %s157
      %p166 = scmp.eq.s32.totalorder %s48, 0
      %p167 = por %p165, %p166
      %p168 = scmp.ne.s32.totalorder %s156, %s157
      %p169 = scmp.eq.s32.totalorder %s49, 17
      %p170 = por %p168, %p169
      %p172 = scmp.ne.s32.totalorder %s157, %s171
      %p173 = scmp.eq.s32.totalorder %s49, 0
      %p174 = por %p172, %p173
      %s176 = sadd.s32 %s175, 1
      %p179 = scmp.eq.s32.totalorder %s43, 17
      %p180 = scmp.ne.s32.totalorder %s175, %s177
      %p181 = scmp.eq.s32.totalorder %s43, 0
      %p182 = por %p180, %p181
      %p183 = scmp.ne.s32.totalorder %s175, %s177
      %p184 = scmp.eq.s32.totalorder %s48, 17
      %p185 = por %p183, %p184
      %p186 = scmp.ne.s32.totalorder %s177, %s178
      %p187 = scmp.eq.s32.totalorder %s48, 0
      %p188 = por %p186, %p187
      %p189 = scmp.ne.s32.totalorder %s177, %s178
      %p190 = scmp.eq.s32.totalorder %s49, 17
      %p191 = por %p189, %p190
      %p193 = scmp.ne.s32.totalorder %s178, %s192
      %p194 = scmp.eq.s32.totalorder %s49, 0
      %p195 = por %p193, %p194
      %s197 = sadd.s32 %s196, 1
      %p200 = scmp.eq.s32.totalorder %s43, 17
      %p201 = scmp.ne.s32.totalorder %s196, %s198
      %p202 = scmp.eq.s32.totalorder %s43, 0
      %p203 = por %p201, %p202
      %p204 = scmp.ne.s32.totalorder %s196, %s198
      %p205 = scmp.eq.s32.totalorder %s48, 17
      %p206 = por %p204, %p205
      %p207 = scmp.ne.s32.totalorder %s198, %s199
      %p208 = scmp.eq.s32.totalorder %s48, 0
      %p209 = por %p207, %p208
      %p210 = scmp.ne.s32.totalorder %s198, %s199
      %p211 = scmp.eq.s32.totalorder %s49, 17
      %p212 = por %p210, %p211
      %p214 = scmp.ne.s32.totalorder %s199, %s213
      %p215 = scmp.eq.s32.totalorder %s49, 0
      %p216 = por %p214, %p215
      %s218 = sadd.s32 %s217, 1
      %p221 = scmp.eq.s32.totalorder %s43, 17
      %p222 = scmp.ne.s32.totalorder %s217, %s219
      %p223 = scmp.eq.s32.totalorder %s43, 0
      %p224 = por %p222, %p223
      %p225 = scmp.ne.s32.totalorder %s217, %s219
      %p226 = scmp.eq.s32.totalorder %s48, 17
      %p227 = por %p225, %p226
      %p228 = scmp.ne.s32.totalorder %s219, %s220
      %p229 = scmp.eq.s32.totalorder %s48, 0
      %p230 = por %p228, %p229
      %p231 = scmp.ne.s32.totalorder %s219, %s220
      %p232 = scmp.eq.s32.totalorder %s49, 17
      %p233 = por %p231, %p232
      %p235 = scmp.ne.s32.totalorder %s220, %s234
      %p236 = scmp.eq.s32.totalorder %s49, 0
      %p237 = por %p235, %p236
      %s239 = sadd.s32 %s238, 1
      %p242 = scmp.eq.s32.totalorder %s43, 17
      %p243 = scmp.ne.s32.totalorder %s238, %s240
      %p244 = scmp.eq.s32.totalorder %s43, 0
      %p245 = por %p243, %p244
      %p246 = scmp.ne.s32.totalorder %s238, %s240
      %p247 = scmp.eq.s32.totalorder %s48, 17
      %p248 = por %p246, %p247
      %p249 = scmp.ne.s32.totalorder %s240, %s241
      %p250 = scmp.eq.s32.totalorder %s48, 0
      %p251 = por %p249, %p250
      %p252 = scmp.ne.s32.totalorder %s240, %s241
      %p253 = scmp.eq.s32.totalorder %s49, 17
      %p254 = por %p252, %p253
      %p256 = scmp.ne.s32.totalorder %s241, %s255
      %p257 = scmp.eq.s32.totalorder %s49, 0
      %p258 = por %p256, %p257
      %s260 = sadd.s32 %s259, 1
      %p263 = scmp.eq.s32.totalorder %s43, 17
      %p264 = scmp.ne.s32.totalorder %s259, %s261
      %p265 = scmp.eq.s32.totalorder %s43, 0
      %p266 = por %p264, %p265
      %p267 = scmp.ne.s32.totalorder %s259, %s261
      %p268 = scmp.eq.s32.totalorder %s48, 17
      %p269 = por %p267, %p268
      %p270 = scmp.ne.s32.totalorder %s261, %s262
      %p271 = scmp.eq.s32.totalorder %s48, 0
      %p272 = por %p270, %p271
      %p273 = scmp.ne.s32.totalorder %s261, %s262
      %p274 = scmp.eq.s32.totalorder %s49, 17
      %p275 = por %p273, %p274
      %p277 = scmp.ne.s32.totalorder %s262, %s276
      %p278 = scmp.eq.s32.totalorder %s49, 0
      %p279 = por %p277, %p278
      %s281 = sadd.s32 %s280, 1
      %p284 = scmp.eq.s32.totalorder %s43, 17
      %p285 = scmp.ne.s32.totalorder %s280, %s282
      %p286 = scmp.eq.s32.totalorder %s43, 0
      %p287 = por %p285, %p286
      %p288 = scmp.ne.s32.totalorder %s280, %s282
      %p289 = scmp.eq.s32.totalorder %s48, 17
      %p290 = por %p288, %p289
      %p291 = scmp.ne.s32.totalorder %s282, %s283
      %p292 = scmp.eq.s32.totalorder %s48, 0
      %p293 = por %p291, %p292
      %p294 = scmp.ne.s32.totalorder %s282, %s283
      %p295 = scmp.eq.s32.totalorder %s49, 17
      %p296 = por %p294, %p295
      %p298 = scmp.ne.s32.totalorder %s283, %s297
      %p299 = scmp.eq.s32.totalorder %s49, 0
      %p300 = por %p298, %p299
      %s302 = sadd.s32 %s301, 1
      %p305 = scmp.eq.s32.totalorder %s43, 17
      %p306 = scmp.ne.s32.totalorder %s301, %s303
      %p307 = scmp.eq.s32.totalorder %s43, 0
      %p308 = por %p306, %p307
      %p309 = scmp.ne.s32.totalorder %s301, %s303
      %p310 = scmp.eq.s32.totalorder %s48, 17
      %p311 = por %p309, %p310
      %p312 = scmp.ne.s32.totalorder %s303, %s304
      %p313 = scmp.eq.s32.totalorder %s48, 0
      %p314 = por %p312, %p313
      %p315 = scmp.ne.s32.totalorder %s303, %s304
      %p316 = scmp.eq.s32.totalorder %s49, 17
      %p317 = por %p315, %p316
      %p319 = scmp.ne.s32.totalorder %s304, %s318
      %p320 = scmp.eq.s32.totalorder %s49, 0
      %p321 = por %p319, %p320
      %s323 = sadd.s32 %s322, 1
      %p326 = scmp.eq.s32.totalorder %s43, 17
      %p327 = scmp.ne.s32.totalorder %s322, %s324
      %p328 = scmp.eq.s32.totalorder %s43, 0
      %p329 = por %p327, %p328
      %p330 = scmp.ne.s32.totalorder %s322, %s324
      %p331 = scmp.eq.s32.totalorder %s48, 17
      %p332 = por %p330, %p331
      %p333 = scmp.ne.s32.totalorder %s324, %s325
      %p334 = scmp.eq.s32.totalorder %s48, 0
      %p335 = por %p333, %p334
      %p336 = scmp.ne.s32.totalorder %s324, %s325
      %p337 = scmp.eq.s32.totalorder %s49, 17
      %p338 = por %p336, %p337
      %p340 = scmp.ne.s32.totalorder %s325, %s339
      %p341 = scmp.eq.s32.totalorder %s49, 0
      %p342 = por %p340, %p341
      %s344 = sadd.s32 %s343, 1
      %p347 = scmp.eq.s32.totalorder %s43, 17
      %p348 = scmp.ne.s32.totalorder %s343, %s345
      %p349 = scmp.eq.s32.totalorder %s43, 0
      %p350 = por %p348, %p349
      %p351 = scmp.ne.s32.totalorder %s343, %s345
      %p352 = scmp.eq.s32.totalorder %s48, 17
      %p353 = por %p351, %p352
      %p354 = scmp.ne.s32.totalorder %s345, %s346
      %p355 = scmp.eq.s32.totalorder %s48, 0
      %p356 = por %p354, %p355
      %p357 = scmp.ne.s32.totalorder %s345, %s346
      %p358 = scmp.eq.s32.totalorder %s49, 17
      %p359 = por %p357, %p358
      %p361 = scmp.ne.s32.totalorder %s346, %s360
      %p362 = scmp.eq.s32.totalorder %s49, 0
      %p363 = por %p361, %p362
      %s365 = sadd.s32 %s364, 1
      %p368 = scmp.eq.s32.totalorder %s43, 17
      %p369 = scmp.ne.s32.totalorder %s364, %s366
      %p370 = scmp.eq.s32.totalorder %s43, 0
      %p371 = por %p369, %p370
      %p372 = scmp.ne.s32.totalorder %s364, %s366
      %p373 = scmp.eq.s32.totalorder %s48, 17
      %p374 = por %p372, %p373
      %p375 = scmp.ne.s32.totalorder %s366, %s367
      %p376 = scmp.eq.s32.totalorder %s48, 0
      %p377 = por %p375, %p376
      %p378 = scmp.ne.s32.totalorder %s366, %s367
      %p379 = scmp.eq.s32.totalorder %s49, 17
      %p380 = por %p378, %p379
      %p382 = scmp.ne.s32.totalorder %s367, %s381
      %p383 = scmp.eq.s32.totalorder %s49, 0
      %p384 = por %p382, %p383
      %s386 = sadd.s32 %s385, 1
      %p389 = scmp.eq.s32.totalorder %s43, 17
      %p390 = scmp.ne.s32.totalorder %s385, %s387
      %p391 = scmp.eq.s32.totalorder %s43, 0
      %p392 = por %p390, %p391
      %p393 = scmp.ne.s32.totalorder %s385, %s387
      %p394 = scmp.eq.s32.totalorder %s48, 17
      %p395 = por %p393, %p394
      %p396 = scmp.ne.s32.totalorder %s387, %s388
      %p397 = scmp.eq.s32.totalorder %s48, 0
      %p398 = por %p396, %p397
      %p399 = scmp.ne.s32.totalorder %s387, %s388
      %p400 = scmp.eq.s32.totalorder %s49, 17
      %p401 = por %p399, %p400
      %p403 = scmp.ne.s32.totalorder %s388, %s402
      %p404 = scmp.eq.s32.totalorder %s49, 0
      %p405 = por %p403, %p404
      %s407 = sadd.s32 %s406, 1
      %p410 = scmp.eq.s32.totalorder %s43, 17
      %p411 = scmp.ne.s32.totalorder %s406, %s408
      %p412 = scmp.eq.s32.totalorder %s43, 0
      %p413 = por %p411, %p412
      %p414 = scmp.ne.s32.totalorder %s406, %s408
      %p415 = scmp.eq.s32.totalorder %s48, 17
      %p416 = por %p414, %p415
      %p417 = scmp.ne.s32.totalorder %s408, %s409
      %p418 = scmp.eq.s32.totalorder %s48, 0
      %p419 = por %p417, %p418
      %p420 = scmp.ne.s32.totalorder %s408, %s409
      %p421 = scmp.eq.s32.totalorder %s49, 17
      %p422 = por %p420, %p421
      %p424 = scmp.ne.s32.totalorder %s409, %s423
      %p425 = scmp.eq.s32.totalorder %s49, 0
      %p426 = por %p424, %p425
      %s428 = sadd.s32 %s427, 1
      %p431 = scmp.eq.s32.totalorder %s43, 17
      %p432 = scmp.ne.s32.totalorder %s427, %s429
      %p433 = scmp.eq.s32.totalorder %s43, 0
      %p434 = por %p432, %p433
      %p435 = scmp.ne.s32.totalorder %s427, %s429
      %p436 = scmp.eq.s32.totalorder %s48, 17
      %p437 = por %p435, %p436
      %p438 = scmp.ne.s32.totalorder %s429, %s430
      %p439 = scmp.eq.s32.totalorder %s48, 0
      %p440 = por %p438, %p439
      %p441 = scmp.ne.s32.totalorder %s429, %s430
      %p442 = scmp.eq.s32.totalorder %s49, 17
      %p443 = por %p441, %p442
      %p445 = scmp.ne.s32.totalorder %s430, %s444
      %p446 = scmp.eq.s32.totalorder %s49, 0
      %p447 = por %p445, %p446
      %s449 = sadd.s32 %s448, 1
      %p452 = scmp.eq.s32.totalorder %s43, 17
      %p453 = scmp.ne.s32.totalorder %s448, %s450
      %p454 = scmp.eq.s32.totalorder %s43, 0
      %p455 = por %p453, %p454
      %p456 = scmp.ne.s32.totalorder %s448, %s450
      %p457 = scmp.eq.s32.totalorder %s48, 17
      %p458 = por %p456, %p457
      %p459 = scmp.ne.s32.totalorder %s450, %s451
      %p460 = scmp.eq.s32.totalorder %s48, 0
      %p461 = por %p459, %p460
      %p462 = scmp.ne.s32.totalorder %s450, %s451
      %p463 = scmp.eq.s32.totalorder %s49, 17
      %p464 = por %p462, %p463
      %p466 = scmp.ne.s32.totalorder %s451, %s465
      %p467 = scmp.eq.s32.totalorder %s49, 0
      %p468 = por %p466, %p467
      %s470 = sadd.s32 %s469, 1
      %p473 = scmp.eq.s32.totalorder %s43, 17
      %p474 = scmp.ne.s32.totalorder %s469, %s471
      %p475 = scmp.eq.s32.totalorder %s43, 0
      %p476 = por %p474, %p475
      %p477 = scmp.ne.s32.totalorder %s469, %s471
      %p478 = scmp.eq.s32.totalorder %s48, 17
      %p479 = por %p477, %p478
      %p480 = scmp.ne.s32.totalorder %s471, %s472
      %p481 = scmp.eq.s32.totalorder %s48, 0
      %p482 = por %p480, %p481
      %p483 = scmp.ne.s32.totalorder %s471, %s472
      %p484 = scmp.eq.s32.totalorder %s49, 17
      %p485 = por %p483, %p484
      %p487 = scmp.ne.s32.totalorder %s472, %s486
      %p488 = scmp.eq.s32.totalorder %s49, 0
      %p489 = por %p487, %p488
      %s491 = sadd.s32 %s490, 1
      %p494 = scmp.eq.s32.totalorder %s43, 17
      %p495 = scmp.ne.s32.totalorder %s490, %s492
      %p496 = scmp.eq.s32.totalorder %s43, 0
      %p497 = por %p495, %p496
      %p498 = scmp.ne.s32.totalorder %s490, %s492
      %p499 = scmp.eq.s32.totalorder %s48, 17
      %p500 = por %p498, %p499
      %p501 = scmp.ne.s32.totalorder %s492, %s493
      %p502 = scmp.eq.s32.totalorder %s48, 0
      %p503 = por %p501, %p502
      %p504 = scmp.ne.s32.totalorder %s492, %s493
      %p505 = scmp.eq.s32.totalorder %s49, 17
      %p506 = por %p504, %p505
      %p508 = scmp.ne.s32.totalorder %s493, %s507
      %p509 = scmp.eq.s32.totalorder %s49, 0
      %p510 = por %p508, %p509
      %s511 = ssub.s32 %s50, %s62
      %s512 = ssub.s32 %s51, %s58
      %s513 = sor.u32 %s511, %s512
      %p514 = scmp.eq.s32.totalorder %s513, 0
      %s516 = sadd.s32 %s515, 1
      %s517 = scalar_select %p514, %s515, %s516
      %p520 = pneg %p514
      %p521 = scmp.eq.s32.totalorder %s43, 17
      %p522 = por %p520, %p521
      %p523 = scmp.ne.s32.totalorder %s515, %s518
      %p524 = scmp.eq.s32.totalorder %s43, 0
      %p525 = por %p523, %p524
      %p526 = scmp.ne.s32.totalorder %s515, %s518
      %p527 = scmp.eq.s32.totalorder %s48, 17
      %p528 = por %p526, %p527
      %p529 = scmp.ne.s32.totalorder %s518, %s519
      %p530 = scmp.eq.s32.totalorder %s48, 0
      %p531 = por %p529, %p530
      %p532 = scmp.ne.s32.totalorder %s518, %s519
      %p533 = scmp.eq.s32.totalorder %s49, 17
      %p534 = por %p532, %p533
      %p536 = scmp.ne.s32.totalorder %s519, %s535
      %p537 = scmp.eq.s32.totalorder %s49, 0
      %p538 = por %p536, %p537
      %p539 = scmp.le.s32.totalorder 1, %s43
      %p540 = scmp.lt.s32.totalorder %s43, 19
      %p541 = pnand %p539, %p540
      %p542 = pneg %p541
      // Predicated region
      $region9: #{vit_clip_dualpath_forward.5} parent=5 // pred_check
        _
      $region10: #{vit_clip_dualpath_forward.5} parent=5 // pred_check_branch
        %544 = sbr.rel (%p541) target = $region12
      $region11: #{vit_clip_dualpath_forward.5} parent=5 // pred_region
        %s545 = ssub.s32 %s43, 1
        // Predicated region
        $region13: #{vit_clip_dualpath_forward.5} parent=11 // pred_check
          %p546 = pneg %p104
        $region14: #{vit_clip_dualpath_forward.5} parent=11 // pred_check_branch
          %548 = sbr.rel (%p546) target = $region16
        $region15: #{vit_clip_dualpath_forward.5} parent=11 // pred_region
          %s550 = ssub.s32 16, 16
          %551 = vsyncadd [#allocation6], %s550
          %s553 = sshll.u32 [#allocation5], 4
          %s554 = int_to_ptr.vmem [resolvable:$true] %s553
          %556 = dma.hbm_to_vmem [thread:$0]  %s1, 16, %s554, [#allocation6]
        $region16: #{vit_clip_dualpath_forward.5} parent=11 // pred_fallthru
          _
        // Predicated region
        $region17: #{vit_clip_dualpath_forward.5} parent=11 // pred_check
          %p557 = pneg %p125
        $region18: #{vit_clip_dualpath_forward.5} parent=11 // pred_check_branch
          %559 = sbr.rel (%p557) target = $region20
        $region19: #{vit_clip_dualpath_forward.5} parent=11 // pred_region
          %s561 = ssub.s32 16, 16
          %562 = vsyncadd [#allocation6], %s561
          %s564 = sshll.u32 [#allocation7], 4
          %s565 = int_to_ptr.vmem [resolvable:$true] %s564
          %567 = dma.hbm_to_vmem [thread:$0]  %s2, 16, %s565, [#allocation6]
        $region20: #{vit_clip_dualpath_forward.5} parent=11 // pred_fallthru
          _
        // Predicated region
        $region21: #{vit_clip_dualpath_forward.5} parent=11 // pred_check
          %p568 = pneg %p146
        $region22: #{vit_clip_dualpath_forward.5} parent=11 // pred_check_branch
          %570 = sbr.rel (%p568) target = $region24
        $region23: #{vit_clip_dualpath_forward.5} parent=11 // pred_region
          %s572 = ssub.s32 3072, 3072
          %573 = vsyncadd [#allocation9], %s572
          %s574 = sshll.u32 [#allocation8], 4
          %s575 = int_to_ptr.vmem [resolvable:$true] %s574
          %580 = dma.hbm_to_vmem [thread:$0]  %s3, 3072, %s575, [#allocation9], 192, 192, 12
        $region24: #{vit_clip_dualpath_forward.5} parent=11 // pred_fallthru
          _
        // Predicated region
        $region25: #{vit_clip_dualpath_forward.5} parent=11 // pred_check
          %p581 = pneg %p167
        $region26: #{vit_clip_dualpath_forward.5} parent=11 // pred_check_branch
          %583 = sbr.rel (%p581) target = $region28
        $region27: #{vit_clip_dualpath_forward.5} parent=11 // pred_region
          %s585 = ssub.s32 48, 48
          %586 = vsyncadd [#allocation9], %s585
          %s588 = sshll.u32 [#allocation10], 4
          %s589 = int_to_ptr.vmem [resolvable:$true] %s588
          %591 = dma.hbm_to_vmem [thread:$0]  %s4, 48, %s589, [#allocation9]
        $region28: #{vit_clip_dualpath_forward.5} parent=11 // pred_fallthru
          _
        // Predicated region
        $region29: #{vit_clip_dualpath_forward.5} parent=11 // pred_check
          %p592 = pneg %p188
        $region30: #{vit_clip_dualpath_forward.5} parent=11 // pred_check_branch
          %594 = sbr.rel (%p592) target = $region32
        $region31: #{vit_clip_dualpath_forward.5} parent=11 // pred_region
          %s596 = ssub.s32 1024, 1024
          %597 = vsyncadd [#allocation12], %s596
          %s598 = sshll.u32 [#allocation11], 4
          %s599 = int_to_ptr.vmem [resolvable:$true] %s598
          %604 = dma.hbm_to_vmem [thread:$0]  %s5, 1024, %s599, [#allocation12], 64, 64, 4
        $region32: #{vit_clip_dualpath_forward.5} parent=11 // pred_fallthru
          _
        // Predicated region
        $region33: #{vit_clip_dualpath_forward.5} parent=11 // pred_check
          %p605 = pneg %p209
        $region34: #{vit_clip_dualpath_forward.5} parent=11 // pred_check_branch
          %607 = sbr.rel (%p605) target = $region36
        $region35: #{vit_clip_dualpath_forward.5} parent=11 // pred_region
          %s609 = ssub.s32 16, 16
          %610 = vsyncadd [#allocation12], %s609
          %s612 = sshll.u32 [#allocation13], 4
          %s613 = int_to_ptr.vmem [resolvable:$true] %s612
          %615 = dma.hbm_to_vmem [thread:$0]  %s6, 16, %s613, [#allocation12]
        $region36: #{vit_clip_dualpath_forward.5} parent=11 // pred_fallthru
          _
        // Predicated region
        $region37: #{vit_clip_dualpath_forward.5} parent=11 // pred_check
          %p616 = pneg %p230
        $region38: #{vit_clip_dualpath_forward.5} parent=11 // pred_check_branch
          %618 = sbr.rel (%p616) target = $region40
        $region39: #{vit_clip_dualpath_forward.5} parent=11 // pred_region
          %s620 = ssub.s32 2048, 2048
          %621 = vsyncadd [#allocation15], %s620
          %s622 = sshll.u32 [#allocation14], 4
          %s623 = int_to_ptr.vmem [resolvable:$true] %s622
          %628 = dma.hbm_to_vmem [thread:$0]  %s7, 2048, %s623, [#allocation15], 64, 64, 4
        $region40: #{vit_clip_dualpath_forward.5} parent=11 // pred_fallthru
          _
        // Predicated region
        $region41: #{vit_clip_dualpath_forward.5} parent=11 // pred_check
          %p629 = pneg %p251
        $region42: #{vit_clip_dualpath_forward.5} parent=11 // pred_check_branch
          %631 = sbr.rel (%p629) target = $region44
        $region43: #{vit_clip_dualpath_forward.5} parent=11 // pred_region
          %s633 = ssub.s32 32, 32
          %634 = vsyncadd [#allocation15], %s633
          %s635 = sshll.u32 [#allocation16], 4
          %s636 = int_to_ptr.vmem [resolvable:$true] %s635
          %641 = dma.hbm_to_vmem [thread:$0]  %s8, 32, %s636, [#allocation15], 16, 16, 1
        $region44: #{vit_clip_dualpath_forward.5} parent=11 // pred_fallthru
          _
        // Predicated region
        $region45: #{vit_clip_dualpath_forward.5} parent=11 // pred_check
          %p642 = pneg %p272
        $region46: #{vit_clip_dualpath_forward.5} parent=11 // pred_check_branch
          %644 = sbr.rel (%p642) target = $region48
        $region47: #{vit_clip_dualpath_forward.5} parent=11 // pred_region
          %s646 = ssub.s32 1024, 1024
          %647 = vsyncadd [#allocation18], %s646
          %s648 = sshll.u32 [#allocation17], 4
          %s649 = int_to_ptr.vmem [resolvable:$true] %s648
          %654 = dma.hbm_to_vmem [thread:$0]  %s9, 1024, %s649, [#allocation18], 64, 64, 4
        $region48: #{vit_clip_dualpath_forward.5} parent=11 // pred_fallthru
          _
        // Predicated region
        $region49: #{vit_clip_dualpath_forward.5} parent=11 // pred_check
          %p655 = pneg %p293
        $region50: #{vit_clip_dualpath_forward.5} parent=11 // pred_check_branch
          %657 = sbr.rel (%p655) target = $region52
        $region51: #{vit_clip_dualpath_forward.5} parent=11 // pred_region
          %s659 = ssub.s32 32, 32
          %660 = vsyncadd [#allocation18], %s659
          %s661 = sshll.u32 [#allocation19], 4
          %s662 = int_to_ptr.vmem [resolvable:$true] %s661
          %667 = dma.hbm_to_vmem [thread:$0]  %s10, 32, %s662, [#allocation18], 16, 16, 1
        $region52: #{vit_clip_dualpath_forward.5} parent=11 // pred_fallthru
          _
        // Predicated region
        $region53: #{vit_clip_dualpath_forward.5} parent=11 // pred_check
          %p668 = pneg %p314
        $region54: #{vit_clip_dualpath_forward.5} parent=11 // pred_check_branch
          %670 = sbr.rel (%p668) target = $region56
        $region55: #{vit_clip_dualpath_forward.5} parent=11 // pred_region
          %s672 = ssub.s32 16, 16
          %673 = vsyncadd [#allocation21], %s672
          %s675 = sshll.u32 [#allocation20], 4
          %s676 = int_to_ptr.vmem [resolvable:$true] %s675
          %678 = dma.hbm_to_vmem [thread:$0]  %s11, 16, %s676, [#allocation21]
        $region56: #{vit_clip_dualpath_forward.5} parent=11 // pred_fallthru
          _
        // Predicated region
        $region57: #{vit_clip_dualpath_forward.5} parent=11 // pred_check
          %p679 = pneg %p335
        $region58: #{vit_clip_dualpath_forward.5} parent=11 // pred_check_branch
          %681 = sbr.rel (%p679) target = $region60
        $region59: #{vit_clip_dualpath_forward.5} parent=11 // pred_region
          %s683 = ssub.s32 16, 16
          %684 = vsyncadd [#allocation21], %s683
          %s686 = sshll.u32 [#allocation22], 4
          %s687 = int_to_ptr.vmem [resolvable:$true] %s686
          %689 = dma.hbm_to_vmem [thread:$0]  %s12, 16, %s687, [#allocation21]
        $region60: #{vit_clip_dualpath_forward.5} parent=11 // pred_fallthru
          _
        // Predicated region
        $region61: #{vit_clip_dualpath_forward.5} parent=11 // pred_check
          %p690 = pneg %p356
        $region62: #{vit_clip_dualpath_forward.5} parent=11 // pred_check_branch
          %692 = sbr.rel (%p690) target = $region64
        $region63: #{vit_clip_dualpath_forward.5} parent=11 // pred_region
          %s694 = ssub.s32 4096, 4096
          %695 = vsyncadd [#allocation24], %s694
          %s696 = sshll.u32 [#allocation23], 4
          %s697 = int_to_ptr.vmem [resolvable:$true] %s696
          %702 = dma.hbm_to_vmem [thread:$0]  %s13, 4096, %s697, [#allocation24], 256, 256, 16
        $region64: #{vit_clip_dualpath_forward.5} parent=11 // pred_fallthru
          _
        // Predicated region
        $region65: #{vit_clip_dualpath_forward.5} parent=11 // pred_check
          %p703 = pneg %p377
        $region66: #{vit_clip_dualpath_forward.5} parent=11 // pred_check_branch
          %705 = sbr.rel (%p703) target = $region68
        $region67: #{vit_clip_dualpath_forward.5} parent=11 // pred_region
          %s707 = ssub.s32 64, 64
          %708 = vsyncadd [#allocation24], %s707
          %s710 = sshll.u32 [#allocation25], 4
          %s711 = int_to_ptr.vmem [resolvable:$true] %s710
          %713 = dma.hbm_to_vmem [thread:$0]  %s14, 64, %s711, [#allocation24]
        $region68: #{vit_clip_dualpath_forward.5} parent=11 // pred_fallthru
          _
        // Predicated region
        $region69: #{vit_clip_dualpath_forward.5} parent=11 // pred_check
          %p714 = pneg %p398
        $region70: #{vit_clip_dualpath_forward.5} parent=11 // pred_check_branch
          %716 = sbr.rel (%p714) target = $region72
        $region71: #{vit_clip_dualpath_forward.5} parent=11 // pred_region
          %s718 = ssub.s32 4096, 4096
          %719 = vsyncadd [#allocation27], %s718
          %s720 = sshll.u32 [#allocation26], 4
          %s721 = int_to_ptr.vmem [resolvable:$true] %s720
          %726 = dma.hbm_to_vmem [thread:$0]  %s15, 4096, %s721, [#allocation27], 64, 64, 4
        $region72: #{vit_clip_dualpath_forward.5} parent=11 // pred_fallthru
          _
        // Predicated region
        $region73: #{vit_clip_dualpath_forward.5} parent=11 // pred_check
          %p727 = pneg %p419
        $region74: #{vit_clip_dualpath_forward.5} parent=11 // pred_check_branch
          %729 = sbr.rel (%p727) target = $region76
        $region75: #{vit_clip_dualpath_forward.5} parent=11 // pred_region
          %s731 = ssub.s32 16, 16
          %732 = vsyncadd [#allocation27], %s731
          %s734 = sshll.u32 [#allocation28], 4
          %s735 = int_to_ptr.vmem [resolvable:$true] %s734
          %737 = dma.hbm_to_vmem [thread:$0]  %s16, 16, %s735, [#allocation27]
        $region76: #{vit_clip_dualpath_forward.5} parent=11 // pred_fallthru
          _
        // Predicated region
        $region77: #{vit_clip_dualpath_forward.5} parent=11 // pred_check
          %p738 = pneg %p440
        $region78: #{vit_clip_dualpath_forward.5} parent=11 // pred_check_branch
          %740 = sbr.rel (%p738) target = $region80
        $region79: #{vit_clip_dualpath_forward.5} parent=11 // pred_region
          %s742 = ssub.s32 2048, 2048
          %743 = vsyncadd [#allocation30], %s742
          %s744 = sshll.u32 [#allocation29], 4
          %s745 = int_to_ptr.vmem [resolvable:$true] %s744
          %750 = dma.hbm_to_vmem [thread:$0]  %s17, 2048, %s745, [#allocation30], 64, 64, 4
        $region80: #{vit_clip_dualpath_forward.5} parent=11 // pred_fallthru
          _
        // Predicated region
        $region81: #{vit_clip_dualpath_forward.5} parent=11 // pred_check
          %p751 = pneg %p461
        $region82: #{vit_clip_dualpath_forward.5} parent=11 // pred_check_branch
          %753 = sbr.rel (%p751) target = $region84
        $region83: #{vit_clip_dualpath_forward.5} parent=11 // pred_region
          %s755 = ssub.s32 32, 32
          %756 = vsyncadd [#allocation30], %s755
          %s757 = sshll.u32 [#allocation31], 4
          %s758 = int_to_ptr.vmem [resolvable:$true] %s757
          %763 = dma.hbm_to_vmem [thread:$0]  %s18, 32, %s758, [#allocation30], 16, 16, 1
        $region84: #{vit_clip_dualpath_forward.5} parent=11 // pred_fallthru
          _
        // Predicated region
        $region85: #{vit_clip_dualpath_forward.5} parent=11 // pred_check
          %p764 = pneg %p482
        $region86: #{vit_clip_dualpath_forward.5} parent=11 // pred_check_branch
          %766 = sbr.rel (%p764) target = $region88
        $region87: #{vit_clip_dualpath_forward.5} parent=11 // pred_region
          %s768 = ssub.s32 1024, 1024
          %769 = vsyncadd [#allocation33], %s768
          %s770 = sshll.u32 [#allocation32], 4
          %s771 = int_to_ptr.vmem [resolvable:$true] %s770
          %776 = dma.hbm_to_vmem [thread:$0]  %s19, 1024, %s771, [#allocation33], 64, 64, 4
        $region88: #{vit_clip_dualpath_forward.5} parent=11 // pred_fallthru
          _
        // Predicated region
        $region89: #{vit_clip_dualpath_forward.5} parent=11 // pred_check
          %p777 = pneg %p503
        $region90: #{vit_clip_dualpath_forward.5} parent=11 // pred_check_branch
          %779 = sbr.rel (%p777) target = $region92
        $region91: #{vit_clip_dualpath_forward.5} parent=11 // pred_region
          %s781 = ssub.s32 32, 32
          %782 = vsyncadd [#allocation33], %s781
          %s783 = sshll.u32 [#allocation34], 4
          %s784 = int_to_ptr.vmem [resolvable:$true] %s783
          %789 = dma.hbm_to_vmem [thread:$0]  %s20, 32, %s784, [#allocation33], 16, 16, 1
        $region92: #{vit_clip_dualpath_forward.5} parent=11 // pred_fallthru
          _
      $region12: #{vit_clip_dualpath_forward.5} parent=5 // pred_fallthru
        _
      %p790 = scmp.lt.s32.totalorder %s43, 18
      // Predicated region
      $region93: #{vit_clip_dualpath_forward.5} parent=5 // pred_check
        %p791 = pneg %p790
      $region94: #{vit_clip_dualpath_forward.5} parent=5 // pred_check_branch
        %793 = sbr.rel (%p791) target = $region96
      $region95: #{vit_clip_dualpath_forward.5} parent=5 // pred_region
        // Predicated region
        $region97: #{vit_clip_dualpath_forward.5} parent=95 // pred_check
          %p794 = pneg %p77
        $region98: #{vit_clip_dualpath_forward.5} parent=95 // pred_check_branch
          %796 = sbr.rel (%p794) target = $region100
        $region99: #{vit_clip_dualpath_forward.5} parent=95 // pred_region
          %s797 = sand.u32 %s67, 1
          %s798 = scalar_lea.sflag [#allocation3], %s797
          %s799 = sand.u32 %s67, 1
          %s800 = smul.addr %s799, 8
          %s801 = scalar_lea.vmem [#allocation2], %s800
          %s803 = ssub.s32 128, 128
          %804 = vsyncadd %s798, %s803
          %s805 = smul.addr %s50, 9
          %s806 = sadd.s32 %s51, %s805
          %s807 = smul.addr %s806, 128
          %s808 = scalar_lea.hbm %s0, %s807
          %s810 = sshll.u32 %s801, 4
          %s811 = int_to_ptr.vmem [resolvable:$true] %s810
          %813 = dma.hbm_to_vmem [thread:$0]  %s808, 128, %s811, %s798
        $region100: #{vit_clip_dualpath_forward.5} parent=95 // pred_fallthru
          _
      $region96: #{vit_clip_dualpath_forward.5} parent=5 // pred_fallthru
        _
      %p814 = scmp.le.s32.totalorder 1, %s43
      %p815 = scmp.lt.s32.totalorder %s43, 19
      %p816 = pnand %p814, %p815
      %p817 = pneg %p816
      // Predicated region
      $region101: #{vit_clip_dualpath_forward.5} parent=5 // pred_check
        _
      $region102: #{vit_clip_dualpath_forward.5} parent=5 // pred_check_branch
        %819 = sbr.rel (%p816) target = $region104
      $region103: #{vit_clip_dualpath_forward.5} parent=5 // pred_region
        %s820 = ssub.s32 %s43, 1
        %s821 = sand.u32 %s70, 1
        %s822 = scalar_lea.sflag [#allocation3], %s821
        %s823 = sand.u32 %s70, 1
        %s824 = smul.addr %s823, 8
        %s825 = scalar_lea.vmem [#allocation2], %s824
        // Predicated region
        $region105: #{vit_clip_dualpath_forward.5} parent=103 // pred_check
          %p826 = pneg %p83
        $region106: #{vit_clip_dualpath_forward.5} parent=103 // pred_check_branch
          %828 = sbr.rel (%p826) target = $region108
        $region107: #{vit_clip_dualpath_forward.5} parent=103 // pred_region
          %829 = dma.done %s822, 128
        $region108: #{vit_clip_dualpath_forward.5} parent=103 // pred_fallthru
          _
        // Predicated region
        $region109: #{vit_clip_dualpath_forward.5} parent=103 // pred_check
          %p830 = pneg %p104
        $region110: #{vit_clip_dualpath_forward.5} parent=103 // pred_check_branch
          %832 = sbr.rel (%p830) target = $region112
        $region111: #{vit_clip_dualpath_forward.5} parent=103 // pred_region
          %833 = dma.done [#allocation6], 16
        $region112: #{vit_clip_dualpath_forward.5} parent=103 // pred_fallthru
          _
        // Predicated region
        $region113: #{vit_clip_dualpath_forward.5} parent=103 // pred_check
          %p834 = pneg %p125
        $region114: #{vit_clip_dualpath_forward.5} parent=103 // pred_check_branch
          %836 = sbr.rel (%p834) target = $region116
        $region115: #{vit_clip_dualpath_forward.5} parent=103 // pred_region
          %837 = dma.done [#allocation6], 16
        $region116: #{vit_clip_dualpath_forward.5} parent=103 // pred_fallthru
          _
        // Predicated region
        $region117: #{vit_clip_dualpath_forward.5} parent=103 // pred_check
          %p838 = pneg %p146
        $region118: #{vit_clip_dualpath_forward.5} parent=103 // pred_check_branch
          %840 = sbr.rel (%p838) target = $region120
        $region119: #{vit_clip_dualpath_forward.5} parent=103 // pred_region
          %841 = dma.done [#allocation9], 3072
        $region120: #{vit_clip_dualpath_forward.5} parent=103 // pred_fallthru
          _
        // Predicated region
        $region121: #{vit_clip_dualpath_forward.5} parent=103 // pred_check
          %p842 = pneg %p167
        $region122: #{vit_clip_dualpath_forward.5} parent=103 // pred_check_branch
          %844 = sbr.rel (%p842) target = $region124
        $region123: #{vit_clip_dualpath_forward.5} parent=103 // pred_region
          %845 = dma.done [#allocation9], 48
        $region124: #{vit_clip_dualpath_forward.5} parent=103 // pred_fallthru
          _
        // Predicated region
        $region125: #{vit_clip_dualpath_forward.5} parent=103 // pred_check
          %p846 = pneg %p188
        $region126: #{vit_clip_dualpath_forward.5} parent=103 // pred_check_branch
          %848 = sbr.rel (%p846) target = $region128
        $region127: #{vit_clip_dualpath_forward.5} parent=103 // pred_region
          %849 = dma.done [#allocation12], 1024
        $region128: #{vit_clip_dualpath_forward.5} parent=103 // pred_fallthru
          _
        // Predicated region
        $region129: #{vit_clip_dualpath_forward.5} parent=103 // pred_check
          %p850 = pneg %p209
        $region130: #{vit_clip_dualpath_forward.5} parent=103 // pred_check_branch
          %852 = sbr.rel (%p850) target = $region132
        $region131: #{vit_clip_dualpath_forward.5} parent=103 // pred_region
          %853 = dma.done [#allocation12], 16
        $region132: #{vit_clip_dualpath_forward.5} parent=103 // pred_fallthru
          _
        // Predicated region
        $region133: #{vit_clip_dualpath_forward.5} parent=103 // pred_check
          %p854 = pneg %p230
        $region134: #{vit_clip_dualpath_forward.5} parent=103 // pred_check_branch
          %856 = sbr.rel (%p854) target = $region136
        $region135: #{vit_clip_dualpath_forward.5} parent=103 // pred_region
          %857 = dma.done [#allocation15], 2048
        $region136: #{vit_clip_dualpath_forward.5} parent=103 // pred_fallthru
          _
        // Predicated region
        $region137: #{vit_clip_dualpath_forward.5} parent=103 // pred_check
          %p858 = pneg %p251
        $region138: #{vit_clip_dualpath_forward.5} parent=103 // pred_check_branch
          %860 = sbr.rel (%p858) target = $region140
        $region139: #{vit_clip_dualpath_forward.5} parent=103 // pred_region
          %861 = dma.done [#allocation15], 32
        $region140: #{vit_clip_dualpath_forward.5} parent=103 // pred_fallthru
          _
        // Predicated region
        $region141: #{vit_clip_dualpath_forward.5} parent=103 // pred_check
          %p862 = pneg %p272
        $region142: #{vit_clip_dualpath_forward.5} parent=103 // pred_check_branch
          %864 = sbr.rel (%p862) target = $region144
        $region143: #{vit_clip_dualpath_forward.5} parent=103 // pred_region
          %865 = dma.done [#allocation18], 1024
        $region144: #{vit_clip_dualpath_forward.5} parent=103 // pred_fallthru
          _
        // Predicated region
        $region145: #{vit_clip_dualpath_forward.5} parent=103 // pred_check
          %p866 = pneg %p293
        $region146: #{vit_clip_dualpath_forward.5} parent=103 // pred_check_branch
          %868 = sbr.rel (%p866) target = $region148
        $region147: #{vit_clip_dualpath_forward.5} parent=103 // pred_region
          %869 = dma.done [#allocation18], 32
        $region148: #{vit_clip_dualpath_forward.5} parent=103 // pred_fallthru
          _
        // Predicated region
        $region149: #{vit_clip_dualpath_forward.5} parent=103 // pred_check
          %p870 = pneg %p314
        $region150: #{vit_clip_dualpath_forward.5} parent=103 // pred_check_branch
          %872 = sbr.rel (%p870) target = $region152
        $region151: #{vit_clip_dualpath_forward.5} parent=103 // pred_region
          %873 = dma.done [#allocation21], 16
        $region152: #{vit_clip_dualpath_forward.5} parent=103 // pred_fallthru
          _
        // Predicated region
        $region153: #{vit_clip_dualpath_forward.5} parent=103 // pred_check
          %p874 = pneg %p335
        $region154: #{vit_clip_dualpath_forward.5} parent=103 // pred_check_branch
          %876 = sbr.rel (%p874) target = $region156
        $region155: #{vit_clip_dualpath_forward.5} parent=103 // pred_region
          %877 = dma.done [#allocation21], 16
        $region156: #{vit_clip_dualpath_forward.5} parent=103 // pred_fallthru
          _
        // Predicated region
        $region157: #{vit_clip_dualpath_forward.5} parent=103 // pred_check
          %p878 = pneg %p356
        $region158: #{vit_clip_dualpath_forward.5} parent=103 // pred_check_branch
          %880 = sbr.rel (%p878) target = $region160
        $region159: #{vit_clip_dualpath_forward.5} parent=103 // pred_region
          %881 = dma.done [#allocation24], 4096
        $region160: #{vit_clip_dualpath_forward.5} parent=103 // pred_fallthru
          _
        // Predicated region
        $region161: #{vit_clip_dualpath_forward.5} parent=103 // pred_check
          %p882 = pneg %p377
        $region162: #{vit_clip_dualpath_forward.5} parent=103 // pred_check_branch
          %884 = sbr.rel (%p882) target = $region164
        $region163: #{vit_clip_dualpath_forward.5} parent=103 // pred_region
          %885 = dma.done [#allocation24], 64
        $region164: #{vit_clip_dualpath_forward.5} parent=103 // pred_fallthru
          _
        // Predicated region
        $region165: #{vit_clip_dualpath_forward.5} parent=103 // pred_check
          %p886 = pneg %p398
        $region166: #{vit_clip_dualpath_forward.5} parent=103 // pred_check_branch
          %888 = sbr.rel (%p886) target = $region168
        $region167: #{vit_clip_dualpath_forward.5} parent=103 // pred_region
          %889 = dma.done [#allocation27], 4096
        $region168: #{vit_clip_dualpath_forward.5} parent=103 // pred_fallthru
          _
        // Predicated region
        $region169: #{vit_clip_dualpath_forward.5} parent=103 // pred_check
          %p890 = pneg %p419
        $region170: #{vit_clip_dualpath_forward.5} parent=103 // pred_check_branch
          %892 = sbr.rel (%p890) target = $region172
        $region171: #{vit_clip_dualpath_forward.5} parent=103 // pred_region
          %893 = dma.done [#allocation27], 16
        $region172: #{vit_clip_dualpath_forward.5} parent=103 // pred_fallthru
          _
        // Predicated region
        $region173: #{vit_clip_dualpath_forward.5} parent=103 // pred_check
          %p894 = pneg %p440
        $region174: #{vit_clip_dualpath_forward.5} parent=103 // pred_check_branch
          %896 = sbr.rel (%p894) target = $region176
        $region175: #{vit_clip_dualpath_forward.5} parent=103 // pred_region
          %897 = dma.done [#allocation30], 2048
        $region176: #{vit_clip_dualpath_forward.5} parent=103 // pred_fallthru
          _
        // Predicated region
        $region177: #{vit_clip_dualpath_forward.5} parent=103 // pred_check
          %p898 = pneg %p461
        $region178: #{vit_clip_dualpath_forward.5} parent=103 // pred_check_branch
          %900 = sbr.rel (%p898) target = $region180
        $region179: #{vit_clip_dualpath_forward.5} parent=103 // pred_region
          %901 = dma.done [#allocation30], 32
        $region180: #{vit_clip_dualpath_forward.5} parent=103 // pred_fallthru
          _
        // Predicated region
        $region181: #{vit_clip_dualpath_forward.5} parent=103 // pred_check
          %p902 = pneg %p482
        $region182: #{vit_clip_dualpath_forward.5} parent=103 // pred_check_branch
          %904 = sbr.rel (%p902) target = $region184
        $region183: #{vit_clip_dualpath_forward.5} parent=103 // pred_region
          %905 = dma.done [#allocation33], 1024
        $region184: #{vit_clip_dualpath_forward.5} parent=103 // pred_fallthru
          _
        // Predicated region
        $region185: #{vit_clip_dualpath_forward.5} parent=103 // pred_check
          %p906 = pneg %p503
        $region186: #{vit_clip_dualpath_forward.5} parent=103 // pred_check_branch
          %908 = sbr.rel (%p906) target = $region188
        $region187: #{vit_clip_dualpath_forward.5} parent=103 // pred_region
          %909 = dma.done [#allocation33], 32
        $region188: #{vit_clip_dualpath_forward.5} parent=103 // pred_fallthru
          _
        %s910 = sand.u32 %s70, 1
        %s911 = scalar_lea.sflag [#allocation3], %s910
        %s912 = sand.u32 %s70, 1
        %s913 = smul.addr %s912, 8
        %s914 = scalar_lea.vmem [#allocation2], %s913
        %p915 = pneg %p83
        %p916 = pneg %p80
        %p917 = pneg %p104
        %p918 = pneg %p101
        %p919 = pneg %p125
        %p920 = pneg %p122
        %p921 = pneg %p146
        %p922 = pneg %p143
        %p923 = pneg %p167
        %p924 = pneg %p164
        %p925 = pneg %p188
        %p926 = pneg %p185
        %p927 = pneg %p209
        %p928 = pneg %p206
        %p929 = pneg %p230
        %p930 = pneg %p227
        %p931 = pneg %p251
        %p932 = pneg %p248
        %p933 = pneg %p272
        %p934 = pneg %p269
        %p935 = pneg %p293
        %p936 = pneg %p290
        %p937 = pneg %p314
        %p938 = pneg %p311
        %p939 = pneg %p335
        %p940 = pneg %p332
        %p941 = pneg %p356
        %p942 = pneg %p353
        %p943 = pneg %p377
        %p944 = pneg %p374
        %p945 = pneg %p398
        %p946 = pneg %p395
        %p947 = pneg %p419
        %p948 = pneg %p416
        %p949 = pneg %p440
        %p950 = pneg %p437
        %p951 = pneg %p461
        %p952 = pneg %p458
        %p953 = pneg %p482
        %p954 = pneg %p479
        %p955 = pneg %p503
        %p956 = pneg %p500
        %p957 = pneg %p531
        %p958 = pneg %p528
        %s959 = sand.u32 %s518, 1
        %s960 = scalar_lea.sflag [#allocation4], %s959
        %s961 = sand.u32 %s518, 1
        %s962 = smul.addr %s961, 8
        %s963 = scalar_lea.vmem [#allocation35], %s962
        %v965 = vld [vmem:[%s825] sm:$0x1f]
        %p966 = scmp.lt.s32.totalorder %s53, 1
        %s967 = scalar_select %p966, 1, 0
        %s968 = scvt.s32.f32 %s967
        %p969 = scmp.ge.s32.totalorder %s53, 1
        %s970 = scalar_select %p969, 1, 0
        %v971 = vld [vmem:[#allocation5] sm:$0x1]
        %v972 = vld [vmem:[#allocation7] sm:$0x1]
        %vm973 = vcmask 1044480
        %v974 = vsel %vm973, %v965, 0.0
        %975 = vadd.xlane.f32.xlu0 %v974
        %v976 = vpop.xlane.xlu0 %975
        %v977 = vrcp.pop 128.0
        %v978 = vmul.f32 %v976, %v977
        %v979 = vsub.f32 %v965, %v978
        %v980 = vmul.f32 %v979, %v979
        %v981 = vsel %vm973, %v980, 0.0
        %982 = vadd.xlane.f32.xlu0 %v981
        %v983 = vpop.xlane.xlu0 %982
        %v984 = vmul.f32 %v983, %v977
        %v985 = vadd.f32 %v984, 1e-05
        %v986 = vrsqrt.pop %v985
        %v987 = vmul.f32 %v979, %v986
        %v989 = vlaneseq
        %v990 = vshrl.u32 %v989, 7
        %v991 = vsub.s32 0, %v990
        %v992 = vrot.slane %v971, %v991
        %v994 = vmul.f32 %v987, %v992
        %v996 = vlaneseq
        %v997 = vshrl.u32 %v996, 7
        %v998 = vsub.s32 0, %v997
        %v999 = vrot.slane %v972, %v998
        %v1001 = vadd.f32 %v994, %v999
        %v1002 = vpack.c.bf16 %v1001, %v1001
        %v1003 = vld [vmem:[#allocation8] sm:$0xff]
        %v1004 = vld [vmem:[#allocation8 + $0x8] sm:$0xf]
        %v1005 = vld [vmem:[#allocation8 + $0xc] sm:$0xff]
        %v1006 = vld [vmem:[#allocation8 + $0x14] sm:$0xf]
        %v1007 = vld [vmem:[#allocation8 + $0x18] sm:$0xff]
        %v1008 = vld [vmem:[#allocation8 + $0x20] sm:$0xf]
        %v1009 = vld [vmem:[#allocation8 + $0x24] sm:$0xff]
        %v1010 = vld [vmem:[#allocation8 + $0x2c] sm:$0xf]
        %v1011 = vld [vmem:[#allocation8 + $0x30] sm:$0xff]
        %v1012 = vld [vmem:[#allocation8 + $0x38] sm:$0xf]
        %v1013 = vld [vmem:[#allocation8 + $0x3c] sm:$0xff]
        %v1014 = vld [vmem:[#allocation8 + $0x44] sm:$0xf]
        %v1015 = vld [vmem:[#allocation8 + $0x48] sm:$0xff]
        %v1016 = vld [vmem:[#allocation8 + $0x50] sm:$0xf]
        %v1017 = vld [vmem:[#allocation8 + $0x54] sm:$0xff]
        %v1018 = vld [vmem:[#allocation8 + $0x5c] sm:$0xf]
        %v1019 = vld [vmem:[#allocation8 + $0x60] sm:$0xff]
        %v1020 = vld [vmem:[#allocation8 + $0x68] sm:$0xf]
        %v1021 = vld [vmem:[#allocation8 + $0x6c] sm:$0xff]
        %v1022 = vld [vmem:[#allocation8 + $0x74] sm:$0xf]
        %v1023 = vld [vmem:[#allocation8 + $0x78] sm:$0xff]
        %v1024 = vld [vmem:[#allocation8 + $0x80] sm:$0xf]
        %v1025 = vld [vmem:[#allocation8 + $0x84] sm:$0xff]
        %v1026 = vld [vmem:[#allocation8 + $0x8c] sm:$0xf]
        %v1027 = vld [vmem:[#allocation8 + $0x90] sm:$0xff]
        %v1028 = vld [vmem:[#allocation8 + $0x98] sm:$0xf]
        %v1029 = vld [vmem:[#allocation8 + $0x9c] sm:$0xff]
        %v1030 = vld [vmem:[#allocation8 + $0xa4] sm:$0xf]
        %v1031 = vld [vmem:[#allocation8 + $0xa8] sm:$0xff]
        %v1032 = vld [vmem:[#allocation8 + $0xb0] sm:$0xf]
        %v1033 = vld [vmem:[#allocation8 + $0xb4] sm:$0xff]
        %v1034 = vld [vmem:[#allocation8 + $0xbc] sm:$0xf]
        %v1035 = vld [vmem:[#allocation10] sm:$0x7]
        %v1037 = vlaneseq
        %v1038 = vshrl.u32 %v1037, 7
        %v1039 = vsub.s32 0, %v1038
        %v1040 = vrot.slane %v1035, %v1039
        %v1041 = vlaneseq
        %v1042 = vshrl.u32 %v1041, 7
        %v1043 = vsub.s32 1, %v1042
        %v1044 = vrot.slane %v1035, %v1043
        %v1045 = vlaneseq
        %v1046 = vshrl.u32 %v1045, 7
        %v1047 = vsub.s32 2, %v1046
        %v1048 = vrot.slane %v1035, %v1047
        %v1084 = vunpack.c.l.b16 %v1003
        %v1085 = vunpack.c.h.b16 %v1003
        %v1086 = vunpack.c.l.b16 %v1004
        %v1087 = vunpack.c.l.b16 %v1005
        %v1088 = vunpack.c.h.b16 %v1005
        %v1089 = vunpack.c.l.b16 %v1006
        %v1090 = vunpack.c.l.b16 %v1007
        %v1091 = vunpack.c.h.b16 %v1007
        %v1092 = vunpack.c.l.b16 %v1008
        %v1093 = vunpack.c.l.b16 %v1009
        %v1094 = vunpack.c.h.b16 %v1009
        %v1095 = vunpack.c.l.b16 %v1010
        %v1096 = vunpack.c.l.b16 %v1011
        %v1097 = vunpack.c.h.b16 %v1011
        %v1098 = vunpack.c.l.b16 %v1012
        %v1099 = vunpack.c.l.b16 %v1013
        %v1100 = vunpack.c.h.b16 %v1013
        %v1101 = vunpack.c.l.b16 %v1014
        %v1102 = vunpack.c.l.b16 %v1015
        %v1103 = vunpack.c.h.b16 %v1015
        %v1104 = vunpack.c.l.b16 %v1016
        %v1105 = vunpack.c.l.b16 %v1017
        %v1106 = vunpack.c.h.b16 %v1017
        %v1107 = vunpack.c.l.b16 %v1018
        %v1108 = vunpack.c.l.b16 %v1019
        %v1109 = vunpack.c.h.b16 %v1019
        %v1110 = vunpack.c.l.b16 %v1020
        %v1111 = vunpack.c.l.b16 %v1021
        %v1112 = vunpack.c.h.b16 %v1021
        %v1113 = vunpack.c.l.b16 %v1022
        %v1114 = vunpack.c.l.b16 %v1023
        %v1115 = vunpack.c.h.b16 %v1023
        %v1116 = vunpack.c.l.b16 %v1024
        %v1117 = vunpack.c.l.b16 %v1025
        %v1118 = vunpack.c.h.b16 %v1025
        %v1119 = vunpack.c.l.b16 %v1026
        %v1120 = vunpack.c.l.b16 %v1027
        %v1121 = vunpack.c.h.b16 %v1027
        %v1122 = vunpack.c.l.b16 %v1028
        %v1123 = vunpack.c.l.b16 %v1029
        %v1124 = vunpack.c.h.b16 %v1029
        %v1125 = vunpack.c.l.b16 %v1030
        %v1126 = vunpack.c.l.b16 %v1031
        %v1127 = vunpack.c.h.b16 %v1031
        %v1128 = vunpack.c.l.b16 %v1032
        %v1129 = vunpack.c.l.b16 %v1033
        %v1130 = vunpack.c.h.b16 %v1033
        %v1131 = vunpack.c.l.b16 %v1034
        %v1132 = vpack.c.b16 %v1087, %v1084
        %v1133 = vpack.c.b16 %v1088, %v1085
        %v1134 = vpack.c.b16 %v1089, %v1086
        %v1135 = vpack.c.b16 %v1093, %v1090
        %v1136 = vpack.c.b16 %v1094, %v1091
        %v1137 = vpack.c.b16 %v1095, %v1092
        %v1138 = vpack.c.b16 %v1099, %v1096
        %v1139 = vpack.c.b16 %v1100, %v1097
        %v1140 = vpack.c.b16 %v1101, %v1098
        %v1141 = vpack.c.b16 %v1105, %v1102
        %v1142 = vpack.c.b16 %v1106, %v1103
        %v1143 = vpack.c.b16 %v1107, %v1104
        %v1144 = vpack.c.b16 %v1111, %v1108
        %v1145 = vpack.c.b16 %v1112, %v1109
        %v1146 = vpack.c.b16 %v1113, %v1110
        %v1147 = vpack.c.b16 %v1117, %v1114
        %v1148 = vpack.c.b16 %v1118, %v1115
        %v1149 = vpack.c.b16 %v1119, %v1116
        %v1150 = vpack.c.b16 %v1123, %v1120
        %v1151 = vpack.c.b16 %v1124, %v1121
        %v1152 = vpack.c.b16 %v1125, %v1122
        %v1153 = vpack.c.b16 %v1129, %v1126
        %v1154 = vpack.c.b16 %v1130, %v1127
        %v1155 = vpack.c.b16 %v1131, %v1128
        %1180 = vmatprep.subr.bf16.mxu0 %v1133
        %1181 = vmatpush1.bf16.msra.mxu0 %v1132
        %1182 = vmatprep.subr.bf16.mxu0 %v1136
        %1183 = vmatpush1.bf16.msra.mxu0 %v1135
        %1184 = vmatprep.subr.bf16.mxu0 %v1139
        %1185 = vmatpush1.bf16.msra.mxu0 %v1138
        %1186 = vmatprep.subr.bf16.mxu0 %v1142
        %1187 = vmatpush1.bf16.msra.mxu0 %v1141
        %1188 = vmatprep.subr.bf16.mxu0 %v1145
        %1189 = vmatpush1.bf16.msra.mxu0 %v1144
        %1190 = vmatprep.subr.bf16.mxu0 %v1148
        %1191 = vmatpush1.bf16.msra.mxu0 %v1147
        %1192 = vmatprep.subr.bf16.mxu0 %v1151
        %1193 = vmatpush1.bf16.msra.mxu0 %v1150
        %1194 = vmatprep.subr.bf16.mxu0 %v1154
        %1195 = vmatpush1.bf16.msra.mxu0 %v1153
        %1196 = vmatprep.subr.bf16.mxu0 0
        %1197 = vmatpush1.bf16.msra.mxu0 0
        %1198 = vmatprep.subr.bf16.mxu0 0
        %1199 = vmatpush1.bf16.msra.mxu0 0
        %1200 = vmatprep.subr.bf16.mxu0 0
        %1201 = vmatpush1.bf16.msra.mxu0 0
        %1202 = vmatprep.subr.bf16.mxu0 0
        %1203 = vmatpush1.bf16.msra.mxu0 0
        %1204 = vmatprep.subr.bf16.mxu0 0
        %1205 = vmatpush1.bf16.msra.mxu0 0
        %1206 = vmatprep.subr.bf16.mxu0 0
        %1207 = vmatpush1.bf16.msra.mxu0 0
        %1208 = vmatprep.subr.bf16.mxu0 0
        %1209 = vmatpush1.bf16.msra.mxu0 0
        %1210 = vmatprep.subr.bf16.mxu0 0
        %1211 = vmatpush1.bf16.msra.mxu0 0
        %1212 = vmatprep.mubr.bf16.mxu0 0
        %1213 = vmatmul.mubr.bf16.gmra.mrb[0].mxu0 %v1002
        %v1214 = vpop.f32.mrb[0].mxu0
        %v1215 = vadd.f32 %v1040, %v1214
        %v1216 = vpop.f32.mrb[0].mxu0
        %v1217 = vadd.f32 %v1044, %v1216
        %v1218 = vpop.f32.mrb[0].mxu0
        %v1219 = vpop.f32.mrb[0].mxu0
        %1220 = vdwg.mxu0
        %1221 = vmatprep.subr.bf16.mxu0 0
        %1222 = vmatpush1.bf16.msra.mxu0 %v1134
        %1223 = vmatprep.subr.bf16.mxu0 0
        %1224 = vmatpush1.bf16.msra.mxu0 %v1137
        %1225 = vmatprep.subr.bf16.mxu0 0
        %1226 = vmatpush1.bf16.msra.mxu0 %v1140
        %1227 = vmatprep.subr.bf16.mxu0 0
        %1228 = vmatpush1.bf16.msra.mxu0 %v1143
        %1229 = vmatprep.subr.bf16.mxu0 0
        %1230 = vmatpush1.bf16.msra.mxu0 %v1146
        %1231 = vmatprep.subr.bf16.mxu0 0
        %1232 = vmatpush1.bf16.msra.mxu0 %v1149
        %1233 = vmatprep.subr.bf16.mxu0 0
        %1234 = vmatpush1.bf16.msra.mxu0 %v1152
        %1235 = vmatprep.subr.bf16.mxu0 0
        %1236 = vmatpush1.bf16.msra.mxu0 %v1155
        %1237 = vmatprep.subr.bf16.mxu0 0
        %1238 = vmatpush1.bf16.msra.mxu0 0
        %1239 = vmatprep.subr.bf16.mxu0 0
        %1240 = vmatpush1.bf16.msra.mxu0 0
        %1241 = vmatprep.subr.bf16.mxu0 0
        %1242 = vmatpush1.bf16.msra.mxu0 0
        %1243 = vmatprep.subr.bf16.mxu0 0
        %1244 = vmatpush1.bf16.msra.mxu0 0
        %1245 = vmatprep.subr.bf16.mxu0 0
        %1246 = vmatpush1.bf16.msra.mxu0 0
        %1247 = vmatprep.subr.bf16.mxu0 0
        %1248 = vmatpush1.bf16.msra.mxu0 0
        %1249 = vmatprep.subr.bf16.mxu0 0
        %1250 = vmatpush1.bf16.msra.mxu0 0
        %1251 = vmatprep.subr.bf16.mxu0 0
        %1252 = vmatpush1.bf16.msra.mxu0 0
        %1253 = vmatprep.mubr.bf16.mxu0 0
        %1254 = vmatmul.mubr.bf16.gmra.mrb[0].mxu0 %v1002
        %v1255 = vpop.f32.mrb[0].mxu0
        %v1256 = vadd.f32 %v1048, %v1255
        %v1257 = vpop.f32.mrb[0].mxu0
        %v1258 = vpop.f32.mrb[0].mxu0
        %v1259 = vpop.f32.mrb[0].mxu0
        %1260 = vdwg.mxu0
        %v1261 = vpack.c.bf16 %v1215, %v1215
        %v1262 = vpack.c.bf16 %v1217, %v1217
        %v1263 = vpack.c.bf16 %v1256, %v1256
        %vm1264 = vcmask 261120
        %v1266 = vsel %vm1264, %v1261, 0
        %v1269 = vsel %vm1264, %v1262, 0
        %1271 = vmatprep.subr.bf16.mxu0 0
        %1272 = vmatpush1.bf16.xpose.msra.mxu0 %v1269
        %1273 = vmatprep.subr.bf16.mxu0 0
        %1274 = vmatpush1.bf16.xpose.msra.mxu0 0
        %1275 = vmatprep.subr.bf16.mxu0 0
        %1276 = vmatpush1.bf16.xpose.msra.mxu0 0
        %1277 = vmatprep.subr.bf16.mxu0 0
        %1278 = vmatpush1.bf16.xpose.msra.mxu0 0
        %1279 = vmatprep.subr.bf16.mxu0 0
        %1280 = vmatpush1.bf16.xpose.msra.mxu0 0
        %1281 = vmatprep.subr.bf16.mxu0 0
        %1282 = vmatpush1.bf16.xpose.msra.mxu0 0
        %1283 = vmatprep.subr.bf16.mxu0 0
        %1284 = vmatpush1.bf16.xpose.msra.mxu0 0
        %1285 = vmatprep.subr.bf16.mxu0 0
        %1286 = vmatpush1.bf16.xpose.msra.mxu0 0
        %1287 = vmatprep.subr.bf16.mxu0 0
        %1288 = vmatpush1.bf16.xpose.msra.mxu0 0
        %1289 = vmatprep.subr.bf16.mxu0 0
        %1290 = vmatpush1.bf16.xpose.msra.mxu0 0
        %1291 = vmatprep.subr.bf16.mxu0 0
        %1292 = vmatpush1.bf16.xpose.msra.mxu0 0
        %1293 = vmatprep.subr.bf16.mxu0 0
        %1294 = vmatpush1.bf16.xpose.msra.mxu0 0
        %1295 = vmatprep.subr.bf16.mxu0 0
        %1296 = vmatpush1.bf16.xpose.msra.mxu0 0
        %1297 = vmatprep.subr.bf16.mxu0 0
        %1298 = vmatpush1.bf16.xpose.msra.mxu0 0
        %1299 = vmatprep.subr.bf16.mxu0 0
        %1300 = vmatpush1.bf16.xpose.msra.mxu0 0
        %1301 = vmatprep.subr.bf16.mxu0 0
        %1302 = vmatpush1.bf16.xpose.msra.mxu0 0
        %1303 = vmatprep.mubr.bf16.mxu0 0
        %1304 = vmatmul.mubr.bf16.gmra.mrb[0].mxu0 %v1266
        %v1305 = vpop.f32.mrb[0].mxu0
        %v1306 = vadd.f32 0.0, %v1305
        %v1307 = vpop.f32.mrb[0].mxu0
        %v1308 = vpop.f32.mrb[0].mxu0
        %v1309 = vpop.f32.mrb[0].mxu0
        %1310 = vdwg.mxu0
        %v1311 = vmul.f32 %v1306, 0.17677669
        %vm1312 = vcmask 36864
        %v1313 = vsel %vm1312, %v1311, -inf
        %1314 = vmax.xlane.f32.xlu0 %v1313
        %v1315 = vpop.xlane.xlu0 %1314
        %v1316 = vsub.f32 %v1311, %v1315
        %v1317 = vmul.f32 %v1316, 1.442695
        %v1318 = vpow.pop %v1317
        %v1319 = vsel %vm1312, %v1318, 0.0
        %1320 = vadd.xlane.f32.xlu0 %v1319
        %v1321 = vpop.xlane.xlu0 %1320
        %v1322 = vrcp.pop %v1321
        %v1323 = vmul.f32 %v1318, %v1322
        %v1324 = vpack.c.bf16 %v1323, %v1323
        %vm1325 = vcmask 39936
        %v1327 = vsel %vm1325, %v1324, 0
        %vm1329 = vcmask 1041408
        %vm1330 = vcmask 1042432
        %v1331 = vsel %vm1329, 4294967295, 65535
        %v1332 = vsel %vm1330, %v1331, 0
        %v1334 = vand.u32 %v1263, %v1332
        %1336 = vmatprep.subr.bf16.mxu0 0
        %1337 = vmatpush1.bf16.msra.mxu0 %v1334
        %1338 = vmatprep.subr.bf16.mxu0 0
        %1339 = vmatpush1.bf16.msra.mxu0 0
        %1340 = vmatprep.subr.bf16.mxu0 0
        %1341 = vmatpush1.bf16.msra.mxu0 0
        %1342 = vmatprep.subr.bf16.mxu0 0
        %1343 = vmatpush1.bf16.msra.mxu0 0
        %1344 = vmatprep.subr.bf16.mxu0 0
        %1345 = vmatpush1.bf16.msra.mxu0 0
        %1346 = vmatprep.subr.bf16.mxu0 0
        %1347 = vmatpush1.bf16.msra.mxu0 0
        %1348 = vmatprep.subr.bf16.mxu0 0
        %1349 = vmatpush1.bf16.msra.mxu0 0
        %1350 = vmatprep.subr.bf16.mxu0 0
        %1351 = vmatpush1.bf16.msra.mxu0 0
        %1352 = vmatprep.subr.bf16.mxu0 0
        %1353 = vmatpush1.bf16.msra.mxu0 0
        %1354 = vmatprep.subr.bf16.mxu0 0
        %1355 = vmatpush1.bf16.msra.mxu0 0
        %1356 = vmatprep.subr.bf16.mxu0 0
        %1357 = vmatpush1.bf16.msra.mxu0 0
        %1358 = vmatprep.subr.bf16.mxu0 0
        %1359 = vmatpush1.bf16.msra.mxu0 0
        %1360 = vmatprep.subr.bf16.mxu0 0
        %1361 = vmatpush1.bf16.msra.mxu0 0
        %1362 = vmatprep.subr.bf16.mxu0 0
        %1363 = vmatpush1.bf16.msra.mxu0 0
        %1364 = vmatprep.subr.bf16.mxu0 0
        %1365 = vmatpush1.bf16.msra.mxu0 0
        %1366 = vmatprep.subr.bf16.mxu0 0
        %1367 = vmatpush1.bf16.msra.mxu0 0
        %1368 = vmatprep.mubr.bf16.mxu0 0
        %1369 = vmatmul.mubr.bf16.gmra.mrb[0].mxu0 %v1327
        %v1370 = vpop.f32.mrb[0].mxu0
        %v1371 = vadd.f32 0.0, %v1370
        %v1372 = vpop.f32.mrb[0].mxu0
        %v1373 = vpop.f32.mrb[0].mxu0
        %v1374 = vpop.f32.mrb[0].mxu0
        %1375 = vdwg.mxu0
        %1377 = vrot.lane.b32.xlu0 %v1261, 96
        %v1378 = vpop.permute.xlu0 %1377
        %1380 = vrot.lane.b32.xlu0 %v1262, 96
        %v1381 = vpop.permute.xlu0 %1380
        %v1383 = vsel %vm1264, %v1378, 0
        %v1386 = vsel %vm1264, %v1381, 0
        %1388 = vmatprep.subr.bf16.mxu0 0
        %1389 = vmatpush1.bf16.xpose.msra.mxu0 %v1386
        %1390 = vmatprep.subr.bf16.mxu0 0
        %1391 = vmatpush1.bf16.xpose.msra.mxu0 0
        %1392 = vmatprep.subr.bf16.mxu0 0
        %1393 = vmatpush1.bf16.xpose.msra.mxu0 0
        %1394 = vmatprep.subr.bf16.mxu0 0
        %1395 = vmatpush1.bf16.xpose.msra.mxu0 0
        %1396 = vmatprep.subr.bf16.mxu0 0
        %1397 = vmatpush1.bf16.xpose.msra.mxu0 0
        %1398 = vmatprep.subr.bf16.mxu0 0
        %1399 = vmatpush1.bf16.xpose.msra.mxu0 0
        %1400 = vmatprep.subr.bf16.mxu0 0
        %1401 = vmatpush1.bf16.xpose.msra.mxu0 0
        %1402 = vmatprep.subr.bf16.mxu0 0
        %1403 = vmatpush1.bf16.xpose.msra.mxu0 0
        %1404 = vmatprep.subr.bf16.mxu0 0
        %1405 = vmatpush1.bf16.xpose.msra.mxu0 0
        %1406 = vmatprep.subr.bf16.mxu0 0
        %1407 = vmatpush1.bf16.xpose.msra.mxu0 0
        %1408 = vmatprep.subr.bf16.mxu0 0
        %1409 = vmatpush1.bf16.xpose.msra.mxu0 0
        %1410 = vmatprep.subr.bf16.mxu0 0
        %1411 = vmatpush1.bf16.xpose.msra.mxu0 0
        %1412 = vmatprep.subr.bf16.mxu0 0
        %1413 = vmatpush1.bf16.xpose.msra.mxu0 0
        %1414 = vmatprep.subr.bf16.mxu0 0
        %1415 = vmatpush1.bf16.xpose.msra.mxu0 0
        %1416 = vmatprep.subr.bf16.mxu0 0
        %1417 = vmatpush1.bf16.xpose.msra.mxu0 0
        %1418 = vmatprep.subr.bf16.mxu0 0
        %1419 = vmatpush1.bf16.xpose.msra.mxu0 0
        %1420 = vmatprep.mubr.bf16.mxu0 0
        %1421 = vmatmul.mubr.bf16.gmra.mrb[0].mxu0 %v1383
        %v1422 = vpop.f32.mrb[0].mxu0
        %v1423 = vadd.f32 0.0, %v1422
        %v1424 = vpop.f32.mrb[0].mxu0
        %v1425 = vpop.f32.mrb[0].mxu0
        %v1426 = vpop.f32.mrb[0].mxu0
        %1427 = vdwg.mxu0
        %v1428 = vmul.f32 %v1423, 0.17677669
        %v1429 = vsel %vm1312, %v1428, -inf
        %1430 = vmax.xlane.f32.xlu0 %v1429
        %v1431 = vpop.xlane.xlu0 %1430
        %v1432 = vsub.f32 %v1428, %v1431
        %v1433 = vmul.f32 %v1432, 1.442695
        %v1434 = vpow.pop %v1433
        %v1435 = vsel %vm1312, %v1434, 0.0
        %1436 = vadd.xlane.f32.xlu0 %v1435
        %v1437 = vpop.xlane.xlu0 %1436
        %v1438 = vrcp.pop %v1437
        %v1439 = vmul.f32 %v1434, %v1438
        %v1440 = vpack.c.bf16 %v1439, %v1439
        %1442 = vrot.lane.b32.xlu0 %v1263, 96
        %v1443 = vpop.permute.xlu0 %1442
        %v1445 = vsel %vm1325, %v1440, 0
        %v1448 = vand.u32 %v1443, %v1332
        %1450 = vmatprep.subr.bf16.mxu0 0
        %1451 = vmatpush1.bf16.msra.mxu0 %v1448
        %1452 = vmatprep.subr.bf16.mxu0 0
        %1453 = vmatpush1.bf16.msra.mxu0 0
        %1454 = vmatprep.subr.bf16.mxu0 0
        %1455 = vmatpush1.bf16.msra.mxu0 0
        %1456 = vmatprep.subr.bf16.mxu0 0
        %1457 = vmatpush1.bf16.msra.mxu0 0
        %1458 = vmatprep.subr.bf16.mxu0 0
        %1459 = vmatpush1.bf16.msra.mxu0 0
        %1460 = vmatprep.subr.bf16.mxu0 0
        %1461 = vmatpush1.bf16.msra.mxu0 0
        %1462 = vmatprep.subr.bf16.mxu0 0
        %1463 = vmatpush1.bf16.msra.mxu0 0
        %1464 = vmatprep.subr.bf16.mxu0 0
        %1465 = vmatpush1.bf16.msra.mxu0 0
        %1466 = vmatprep.subr.bf16.mxu0 0
        %1467 = vmatpush1.bf16.msra.mxu0 0
        %1468 = vmatprep.subr.bf16.mxu0 0
        %1469 = vmatpush1.bf16.msra.mxu0 0
        %1470 = vmatprep.subr.bf16.mxu0 0
        %1471 = vmatpush1.bf16.msra.mxu0 0
        %1472 = vmatprep.subr.bf16.mxu0 0
        %1473 = vmatpush1.bf16.msra.mxu0 0
        %1474 = vmatprep.subr.bf16.mxu0 0
        %1475 = vmatpush1.bf16.msra.mxu0 0
        %1476 = vmatprep.subr.bf16.mxu0 0
        %1477 = vmatpush1.bf16.msra.mxu0 0
        %1478 = vmatprep.subr.bf16.mxu0 0
        %1479 = vmatpush1.bf16.msra.mxu0 0
        %1480 = vmatprep.subr.bf16.mxu0 0
        %1481 = vmatpush1.bf16.msra.mxu0 0
        %1482 = vmatprep.mubr.bf16.mxu0 0
        %1483 = vmatmul.mubr.bf16.gmra.mrb[0].mxu0 %v1445
        %v1484 = vpop.f32.mrb[0].mxu0
        %v1485 = vadd.f32 0.0, %v1484
        %v1486 = vpop.f32.mrb[0].mxu0
        %v1487 = vpop.f32.mrb[0].mxu0
        %v1488 = vpop.f32.mrb[0].mxu0
        %1489 = vdwg.mxu0
        %1490 = vrot.lane.b32.xlu0 %v1261, 64
        %v1491 = vpop.permute.xlu0 %1490
        %1492 = vrot.lane.b32.xlu0 %v1262, 64
        %v1493 = vpop.permute.xlu0 %1492
        %v1495 = vsel %vm1264, %v1491, 0
        %v1498 = vsel %vm1264, %v1493, 0
        %1500 = vmatprep.subr.bf16.mxu0 0
        %1501 = vmatpush1.bf16.xpose.msra.mxu0 %v1498
        %1502 = vmatprep.subr.bf16.mxu0 0
        %1503 = vmatpush1.bf16.xpose.msra.mxu0 0
        %1504 = vmatprep.subr.bf16.mxu0 0
        %1505 = vmatpush1.bf16.xpose.msra.mxu0 0
        %1506 = vmatprep.subr.bf16.mxu0 0
        %1507 = vmatpush1.bf16.xpose.msra.mxu0 0
        %1508 = vmatprep.subr.bf16.mxu0 0
        %1509 = vmatpush1.bf16.xpose.msra.mxu0 0
        %1510 = vmatprep.subr.bf16.mxu0 0
        %1511 = vmatpush1.bf16.xpose.msra.mxu0 0
        %1512 = vmatprep.subr.bf16.mxu0 0
        %1513 = vmatpush1.bf16.xpose.msra.mxu0 0
        %1514 = vmatprep.subr.bf16.mxu0 0
        %1515 = vmatpush1.bf16.xpose.msra.mxu0 0
        %1516 = vmatprep.subr.bf16.mxu0 0
        %1517 = vmatpush1.bf16.xpose.msra.mxu0 0
        %1518 = vmatprep.subr.bf16.mxu0 0
        %1519 = vmatpush1.bf16.xpose.msra.mxu0 0
        %1520 = vmatprep.subr.bf16.mxu0 0
        %1521 = vmatpush1.bf16.xpose.msra.mxu0 0
        %1522 = vmatprep.subr.bf16.mxu0 0
        %1523 = vmatpush1.bf16.xpose.msra.mxu0 0
        %1524 = vmatprep.subr.bf16.mxu0 0
        %1525 = vmatpush1.bf16.xpose.msra.mxu0 0
        %1526 = vmatprep.subr.bf16.mxu0 0
        %1527 = vmatpush1.bf16.xpose.msra.mxu0 0
        %1528 = vmatprep.subr.bf16.mxu0 0
        %1529 = vmatpush1.bf16.xpose.msra.mxu0 0
        %1530 = vmatprep.subr.bf16.mxu0 0
        %1531 = vmatpush1.bf16.xpose.msra.mxu0 0
        %1532 = vmatprep.mubr.bf16.mxu0 0
        %1533 = vmatmul.mubr.bf16.gmra.mrb[0].mxu0 %v1495
        %v1534 = vpop.f32.mrb[0].mxu0
        %v1535 = vadd.f32 0.0, %v1534
        %v1536 = vpop.f32.mrb[0].mxu0
        %v1537 = vpop.f32.mrb[0].mxu0
        %v1538 = vpop.f32.mrb[0].mxu0
        %1539 = vdwg.mxu0
        %v1540 = vmul.f32 %v1535, 0.17677669
        %v1541 = vsel %vm1312, %v1540, -inf
        %1542 = vmax.xlane.f32.xlu0 %v1541
        %v1543 = vpop.xlane.xlu0 %1542
        %v1544 = vsub.f32 %v1540, %v1543
        %v1545 = vmul.f32 %v1544, 1.442695
        %v1546 = vpow.pop %v1545
        %v1547 = vsel %vm1312, %v1546, 0.0
        %1548 = vadd.xlane.f32.xlu0 %v1547
        %v1549 = vpop.xlane.xlu0 %1548
        %v1550 = vrcp.pop %v1549
        %v1551 = vmul.f32 %v1546, %v1550
        %v1552 = vpack.c.bf16 %v1551, %v1551
        %1553 = vrot.lane.b32.xlu0 %v1263, 64
        %v1554 = vpop.permute.xlu0 %1553
        %v1556 = vsel %vm1325, %v1552, 0
        %v1559 = vand.u32 %v1554, %v1332
        %1561 = vmatprep.subr.bf16.mxu0 0
        %1562 = vmatpush1.bf16.msra.mxu0 %v1559
        %1563 = vmatprep.subr.bf16.mxu0 0
        %1564 = vmatpush1.bf16.msra.mxu0 0
        %1565 = vmatprep.subr.bf16.mxu0 0
        %1566 = vmatpush1.bf16.msra.mxu0 0
        %1567 = vmatprep.subr.bf16.mxu0 0
        %1568 = vmatpush1.bf16.msra.mxu0 0
        %1569 = vmatprep.subr.bf16.mxu0 0
        %1570 = vmatpush1.bf16.msra.mxu0 0
        %1571 = vmatprep.subr.bf16.mxu0 0
        %1572 = vmatpush1.bf16.msra.mxu0 0
        %1573 = vmatprep.subr.bf16.mxu0 0
        %1574 = vmatpush1.bf16.msra.mxu0 0
        %1575 = vmatprep.subr.bf16.mxu0 0
        %1576 = vmatpush1.bf16.msra.mxu0 0
        %1577 = vmatprep.subr.bf16.mxu0 0
        %1578 = vmatpush1.bf16.msra.mxu0 0
        %1579 = vmatprep.subr.bf16.mxu0 0
        %1580 = vmatpush1.bf16.msra.mxu0 0
        %1581 = vmatprep.subr.bf16.mxu0 0
        %1582 = vmatpush1.bf16.msra.mxu0 0
        %1583 = vmatprep.subr.bf16.mxu0 0
        %1584 = vmatpush1.bf16.msra.mxu0 0
        %1585 = vmatprep.subr.bf16.mxu0 0
        %1586 = vmatpush1.bf16.msra.mxu0 0
        %1587 = vmatprep.subr.bf16.mxu0 0
        %1588 = vmatpush1.bf16.msra.mxu0 0
        %1589 = vmatprep.subr.bf16.mxu0 0
        %1590 = vmatpush1.bf16.msra.mxu0 0
        %1591 = vmatprep.subr.bf16.mxu0 0
        %1592 = vmatpush1.bf16.msra.mxu0 0
        %1593 = vmatprep.mubr.bf16.mxu0 0
        %1594 = vmatmul.mubr.bf16.gmra.mrb[0].mxu0 %v1556
        %v1595 = vpop.f32.mrb[0].mxu0
        %v1596 = vadd.f32 0.0, %v1595
        %v1597 = vpop.f32.mrb[0].mxu0
        %v1598 = vpop.f32.mrb[0].mxu0
        %v1599 = vpop.f32.mrb[0].mxu0
        %1600 = vdwg.mxu0
        %1601 = vrot.lane.b32.xlu0 %v1261, 32
        %v1602 = vpop.permute.xlu0 %1601
        %1603 = vrot.lane.b32.xlu0 %v1262, 32
        %v1604 = vpop.permute.xlu0 %1603
        %v1606 = vsel %vm1264, %v1602, 0
        %v1609 = vsel %vm1264, %v1604, 0
        %1611 = vmatprep.subr.bf16.mxu0 0
        %1612 = vmatpush1.bf16.xpose.msra.mxu0 %v1609
        %1613 = vmatprep.subr.bf16.mxu0 0
        %1614 = vmatpush1.bf16.xpose.msra.mxu0 0
        %1615 = vmatprep.subr.bf16.mxu0 0
        %1616 = vmatpush1.bf16.xpose.msra.mxu0 0
        %1617 = vmatprep.subr.bf16.mxu0 0
        %1618 = vmatpush1.bf16.xpose.msra.mxu0 0
        %1619 = vmatprep.subr.bf16.mxu0 0
        %1620 = vmatpush1.bf16.xpose.msra.mxu0 0
        %1621 = vmatprep.subr.bf16.mxu0 0
        %1622 = vmatpush1.bf16.xpose.msra.mxu0 0
        %1623 = vmatprep.subr.bf16.mxu0 0
        %1624 = vmatpush1.bf16.xpose.msra.mxu0 0
        %1625 = vmatprep.subr.bf16.mxu0 0
        %1626 = vmatpush1.bf16.xpose.msra.mxu0 0
        %1627 = vmatprep.subr.bf16.mxu0 0
        %1628 = vmatpush1.bf16.xpose.msra.mxu0 0
        %1629 = vmatprep.subr.bf16.mxu0 0
        %1630 = vmatpush1.bf16.xpose.msra.mxu0 0
        %1631 = vmatprep.subr.bf16.mxu0 0
        %1632 = vmatpush1.bf16.xpose.msra.mxu0 0
        %1633 = vmatprep.subr.bf16.mxu0 0
        %1634 = vmatpush1.bf16.xpose.msra.mxu0 0
        %1635 = vmatprep.subr.bf16.mxu0 0
        %1636 = vmatpush1.bf16.xpose.msra.mxu0 0
        %1637 = vmatprep.subr.bf16.mxu0 0
        %1638 = vmatpush1.bf16.xpose.msra.mxu0 0
        %1639 = vmatprep.subr.bf16.mxu0 0
        %1640 = vmatpush1.bf16.xpose.msra.mxu0 0
        %1641 = vmatprep.subr.bf16.mxu0 0
        %1642 = vmatpush1.bf16.xpose.msra.mxu0 0
        %1643 = vmatprep.mubr.bf16.mxu0 0
        %1644 = vmatmul.mubr.bf16.gmra.mrb[0].mxu0 %v1606
        %v1645 = vpop.f32.mrb[0].mxu0
        %v1646 = vadd.f32 0.0, %v1645
        %v1647 = vpop.f32.mrb[0].mxu0
        %v1648 = vpop.f32.mrb[0].mxu0
        %v1649 = vpop.f32.mrb[0].mxu0
        %1650 = vdwg.mxu0
        %v1651 = vmul.f32 %v1646, 0.17677669
        %v1652 = vsel %vm1312, %v1651, -inf
        %1653 = vmax.xlane.f32.xlu0 %v1652
        %v1654 = vpop.xlane.xlu0 %1653
        %v1655 = vsub.f32 %v1651, %v1654
        %v1656 = vmul.f32 %v1655, 1.442695
        %v1657 = vpow.pop %v1656
        %v1658 = vsel %vm1312, %v1657, 0.0
        %1659 = vadd.xlane.f32.xlu0 %v1658
        %v1660 = vpop.xlane.xlu0 %1659
        %v1661 = vrcp.pop %v1660
        %v1662 = vmul.f32 %v1657, %v1661
        %v1663 = vpack.c.bf16 %v1662, %v1662
        %1664 = vrot.lane.b32.xlu0 %v1263, 32
        %v1665 = vpop.permute.xlu0 %1664
        %v1667 = vsel %vm1325, %v1663, 0
        %v1670 = vand.u32 %v1665, %v1332
        %1672 = vmatprep.subr.bf16.mxu0 0
        %1673 = vmatpush1.bf16.msra.mxu0 %v1670
        %1674 = vmatprep.subr.bf16.mxu0 0
        %1675 = vmatpush1.bf16.msra.mxu0 0
        %1676 = vmatprep.subr.bf16.mxu0 0
        %1677 = vmatpush1.bf16.msra.mxu0 0
        %1678 = vmatprep.subr.bf16.mxu0 0
        %1679 = vmatpush1.bf16.msra.mxu0 0
        %1680 = vmatprep.subr.bf16.mxu0 0
        %1681 = vmatpush1.bf16.msra.mxu0 0
        %1682 = vmatprep.subr.bf16.mxu0 0
        %1683 = vmatpush1.bf16.msra.mxu0 0
        %1684 = vmatprep.subr.bf16.mxu0 0
        %1685 = vmatpush1.bf16.msra.mxu0 0
        %1686 = vmatprep.subr.bf16.mxu0 0
        %1687 = vmatpush1.bf16.msra.mxu0 0
        %1688 = vmatprep.subr.bf16.mxu0 0
        %1689 = vmatpush1.bf16.msra.mxu0 0
        %1690 = vmatprep.subr.bf16.mxu0 0
        %1691 = vmatpush1.bf16.msra.mxu0 0
        %1692 = vmatprep.subr.bf16.mxu0 0
        %1693 = vmatpush1.bf16.msra.mxu0 0
        %1694 = vmatprep.subr.bf16.mxu0 0
        %1695 = vmatpush1.bf16.msra.mxu0 0
        %1696 = vmatprep.subr.bf16.mxu0 0
        %1697 = vmatpush1.bf16.msra.mxu0 0
        %1698 = vmatprep.subr.bf16.mxu0 0
        %1699 = vmatpush1.bf16.msra.mxu0 0
        %1700 = vmatprep.subr.bf16.mxu0 0
        %1701 = vmatpush1.bf16.msra.mxu0 0
        %1702 = vmatprep.subr.bf16.mxu0 0
        %1703 = vmatpush1.bf16.msra.mxu0 0
        %1704 = vmatprep.mubr.bf16.mxu0 0
        %1705 = vmatmul.mubr.bf16.gmra.mrb[0].mxu0 %v1667
        %v1706 = vpop.f32.mrb[0].mxu0
        %v1707 = vadd.f32 0.0, %v1706
        %v1708 = vpop.f32.mrb[0].mxu0
        %v1709 = vpop.f32.mrb[0].mxu0
        %v1710 = vpop.f32.mrb[0].mxu0
        %1711 = vdwg.mxu0
        %1713 = vrot.lane.b32.xlu0 %v1485, 32
        %v1714 = vpop.permute.xlu0 %1713
        %1717 = vrot.lane.b32.xlu0 %v1596, 64
        %v1718 = vpop.permute.xlu0 %1717
        %1721 = vrot.lane.b32.xlu0 %v1707, 96
        %v1722 = vpop.permute.xlu0 %1721
        %v1724 = vsel %vm1264, %v1371, %v1714
        %vm1725 = vcmask 523264
        %v1726 = vsel %vm1725, %v1724, %v1718
        %vm1727 = vcmask 785408
        %v1728 = vsel %vm1727, %v1726, %v1722
        %v1729 = vld [vmem:[#allocation11] sm:$0xf]
        %v1730 = vld [vmem:[#allocation11 + $0x4] sm:$0xf]
        %v1731 = vld [vmem:[#allocation11 + $0x8] sm:$0xf]
        %v1732 = vld [vmem:[#allocation11 + $0xc] sm:$0xf]
        %v1733 = vld [vmem:[#allocation11 + $0x10] sm:$0xf]
        %v1734 = vld [vmem:[#allocation11 + $0x14] sm:$0xf]
        %v1735 = vld [vmem:[#allocation11 + $0x18] sm:$0xf]
        %v1736 = vld [vmem:[#allocation11 + $0x1c] sm:$0xf]
        %v1737 = vld [vmem:[#allocation11 + $0x20] sm:$0xf]
        %v1738 = vld [vmem:[#allocation11 + $0x24] sm:$0xf]
        %v1739 = vld [vmem:[#allocation11 + $0x28] sm:$0xf]
        %v1740 = vld [vmem:[#allocation11 + $0x2c] sm:$0xf]
        %v1741 = vld [vmem:[#allocation11 + $0x30] sm:$0xf]
        %v1742 = vld [vmem:[#allocation11 + $0x34] sm:$0xf]
        %v1743 = vld [vmem:[#allocation11 + $0x38] sm:$0xf]
        %v1744 = vld [vmem:[#allocation11 + $0x3c] sm:$0xf]
        %v1745 = vpack.c.bf16 %v1728, %v1728
        %v1746 = vld [vmem:[#allocation13] sm:$0x1]
        %v1748 = vlaneseq
        %v1749 = vshrl.u32 %v1748, 7
        %v1750 = vsub.s32 0, %v1749
        %v1751 = vrot.slane %v1746, %v1750
        %v1769 = vunpack.c.l.b16 %v1729
        %v1770 = vunpack.c.l.b16 %v1730
        %v1771 = vunpack.c.l.b16 %v1731
        %v1772 = vunpack.c.l.b16 %v1732
        %v1773 = vunpack.c.l.b16 %v1733
        %v1774 = vunpack.c.l.b16 %v1734
        %v1775 = vunpack.c.l.b16 %v1735
        %v1776 = vunpack.c.l.b16 %v1736
        %v1777 = vunpack.c.l.b16 %v1737
        %v1778 = vunpack.c.l.b16 %v1738
        %v1779 = vunpack.c.l.b16 %v1739
        %v1780 = vunpack.c.l.b16 %v1740
        %v1781 = vunpack.c.l.b16 %v1741
        %v1782 = vunpack.c.l.b16 %v1742
        %v1783 = vunpack.c.l.b16 %v1743
        %v1784 = vunpack.c.l.b16 %v1744
        %v1785 = vpack.c.b16 %v1770, %v1769
        %v1786 = vpack.c.b16 %v1772, %v1771
        %v1787 = vpack.c.b16 %v1774, %v1773
        %v1788 = vpack.c.b16 %v1776, %v1775
        %v1789 = vpack.c.b16 %v1778, %v1777
        %v1790 = vpack.c.b16 %v1780, %v1779
        %v1791 = vpack.c.b16 %v1782, %v1781
        %v1792 = vpack.c.b16 %v1784, %v1783
        %1801 = vmatprep.subr.bf16.mxu0 0
        %1802 = vmatpush1.bf16.msra.mxu0 %v1785
        %1803 = vmatprep.subr.bf16.mxu0 0
        %1804 = vmatpush1.bf16.msra.mxu0 %v1786
        %1805 = vmatprep.subr.bf16.mxu0 0
        %1806 = vmatpush1.bf16.msra.mxu0 %v1787
        %1807 = vmatprep.subr.bf16.mxu0 0
        %1808 = vmatpush1.bf16.msra.mxu0 %v1788
        %1809 = vmatprep.subr.bf16.mxu0 0
        %1810 = vmatpush1.bf16.msra.mxu0 %v1789
        %1811 = vmatprep.subr.bf16.mxu0 0
        %1812 = vmatpush1.bf16.msra.mxu0 %v1790
        %1813 = vmatprep.subr.bf16.mxu0 0
        %1814 = vmatpush1.bf16.msra.mxu0 %v1791
        %1815 = vmatprep.subr.bf16.mxu0 0
        %1816 = vmatpush1.bf16.msra.mxu0 %v1792
        %1817 = vmatprep.subr.bf16.mxu0 0
        %1818 = vmatpush1.bf16.msra.mxu0 0
        %1819 = vmatprep.subr.bf16.mxu0 0
        %1820 = vmatpush1.bf16.msra.mxu0 0
        %1821 = vmatprep.subr.bf16.mxu0 0
        %1822 = vmatpush1.bf16.msra.mxu0 0
        %1823 = vmatprep.subr.bf16.mxu0 0
        %1824 = vmatpush1.bf16.msra.mxu0 0
        %1825 = vmatprep.subr.bf16.mxu0 0
        %1826 = vmatpush1.bf16.msra.mxu0 0
        %1827 = vmatprep.subr.bf16.mxu0 0
        %1828 = vmatpush1.bf16.msra.mxu0 0
        %1829 = vmatprep.subr.bf16.mxu0 0
        %1830 = vmatpush1.bf16.msra.mxu0 0
        %1831 = vmatprep.subr.bf16.mxu0 0
        %1832 = vmatpush1.bf16.msra.mxu0 0
        %1833 = vmatprep.mubr.bf16.mxu0 0
        %1834 = vmatmul.mubr.bf16.gmra.mrb[0].mxu0 %v1745
        %v1835 = vpop.f32.mrb[0].mxu0
        %v1836 = vadd.f32 %v1751, %v1835
        %v1837 = vpop.f32.mrb[0].mxu0
        %v1838 = vpop.f32.mrb[0].mxu0
        %v1839 = vpop.f32.mrb[0].mxu0
        %1840 = vdwg.mxu0
        %v1841 = vstv %s968
        %v1842 = vmul.f32 %v1841, %v1836
        %s1843 = ssub.f32 1.0, %s968
        %v1844 = vstv %s1843
        %v1845 = vmul.f32 %v1844, %v1001
        %v1846 = vadd.f32 %v1842, %v1845
        %s1847 = smul.u32 %s970, 16
        %s1848 = smul.addr %s1847, 4
        %s1849 = scalar_lea.vmem [#allocation14], %s1848
        %v1850 = vld [vmem:[%s1849] sm:$0xf]
        %v1851 = vld [vmem:[%s1849 + $0x4] sm:$0xf]
        %v1852 = vld [vmem:[%s1849 + $0x8] sm:$0xf]
        %v1853 = vld [vmem:[%s1849 + $0xc] sm:$0xf]
        %v1854 = vld [vmem:[%s1849 + $0x10] sm:$0xf]
        %v1855 = vld [vmem:[%s1849 + $0x14] sm:$0xf]
        %v1856 = vld [vmem:[%s1849 + $0x18] sm:$0xf]
        %v1857 = vld [vmem:[%s1849 + $0x1c] sm:$0xf]
        %v1858 = vld [vmem:[%s1849 + $0x20] sm:$0xf]
        %v1859 = vld [vmem:[%s1849 + $0x24] sm:$0xf]
        %v1860 = vld [vmem:[%s1849 + $0x28] sm:$0xf]
        %v1861 = vld [vmem:[%s1849 + $0x2c] sm:$0xf]
        %v1862 = vld [vmem:[%s1849 + $0x30] sm:$0xf]
        %v1863 = vld [vmem:[%s1849 + $0x34] sm:$0xf]
        %v1864 = vld [vmem:[%s1849 + $0x38] sm:$0xf]
        %v1865 = vld [vmem:[%s1849 + $0x3c] sm:$0xf]
        %s1866 = scalar_lea.vmem [#allocation16], %s970
        %v1867 = vld [vmem:[%s1866] sm:$0x1]
        %s1868 = smul.u32 %s970, 8
        %s1869 = smul.addr %s1868, 4
        %s1870 = scalar_lea.vmem [#allocation17], %s1869
        %v1871 = vld [vmem:[%s1870] sm:$0xf]
        %v1872 = vld [vmem:[%s1870 + $0x4] sm:$0xf]
        %v1873 = vld [vmem:[%s1870 + $0x8] sm:$0xf]
        %v1874 = vld [vmem:[%s1870 + $0xc] sm:$0xf]
        %v1875 = vld [vmem:[%s1870 + $0x10] sm:$0xf]
        %v1876 = vld [vmem:[%s1870 + $0x14] sm:$0xf]
        %v1877 = vld [vmem:[%s1870 + $0x18] sm:$0xf]
        %v1878 = vld [vmem:[%s1870 + $0x1c] sm:$0xf]
        %s1879 = scalar_lea.vmem [#allocation19], %s970
        %v1880 = vld [vmem:[%s1879] sm:$0x1]
        %v1881 = vpack.c.bf16 %v1846, %v1846
        %v1883 = vlaneseq
        %v1884 = vshrl.u32 %v1883, 7
        %v1885 = vsub.s32 0, %v1884
        %v1886 = vrot.slane %v1867, %v1885
        %v1904 = vunpack.c.l.b16 %v1850
        %v1905 = vunpack.c.l.b16 %v1851
        %v1906 = vunpack.c.l.b16 %v1852
        %v1907 = vunpack.c.l.b16 %v1853
        %v1908 = vunpack.c.l.b16 %v1854
        %v1909 = vunpack.c.l.b16 %v1855
        %v1910 = vunpack.c.l.b16 %v1856
        %v1911 = vunpack.c.l.b16 %v1857
        %v1912 = vunpack.c.l.b16 %v1858
        %v1913 = vunpack.c.l.b16 %v1859
        %v1914 = vunpack.c.l.b16 %v1860
        %v1915 = vunpack.c.l.b16 %v1861
        %v1916 = vunpack.c.l.b16 %v1862
        %v1917 = vunpack.c.l.b16 %v1863
        %v1918 = vunpack.c.l.b16 %v1864
        %v1919 = vunpack.c.l.b16 %v1865
        %v1920 = vpack.c.b16 %v1905, %v1904
        %v1921 = vpack.c.b16 %v1907, %v1906
        %v1922 = vpack.c.b16 %v1909, %v1908
        %v1923 = vpack.c.b16 %v1911, %v1910
        %v1924 = vpack.c.b16 %v1913, %v1912
        %v1925 = vpack.c.b16 %v1915, %v1914
        %v1926 = vpack.c.b16 %v1917, %v1916
        %v1927 = vpack.c.b16 %v1919, %v1918
        %1936 = vmatprep.subr.bf16.mxu0 0
        %1937 = vmatpush1.bf16.msra.mxu0 %v1920
        %1938 = vmatprep.subr.bf16.mxu0 0
        %1939 = vmatpush1.bf16.msra.mxu0 %v1921
        %1940 = vmatprep.subr.bf16.mxu0 0
        %1941 = vmatpush1.bf16.msra.mxu0 %v1922
        %1942 = vmatprep.subr.bf16.mxu0 0
        %1943 = vmatpush1.bf16.msra.mxu0 %v1923
        %1944 = vmatprep.subr.bf16.mxu0 0
        %1945 = vmatpush1.bf16.msra.mxu0 %v1924
        %1946 = vmatprep.subr.bf16.mxu0 0
        %1947 = vmatpush1.bf16.msra.mxu0 %v1925
        %1948 = vmatprep.subr.bf16.mxu0 0
        %1949 = vmatpush1.bf16.msra.mxu0 %v1926
        %1950 = vmatprep.subr.bf16.mxu0 0
        %1951 = vmatpush1.bf16.msra.mxu0 %v1927
        %1952 = vmatprep.subr.bf16.mxu0 0
        %1953 = vmatpush1.bf16.msra.mxu0 0
        %1954 = vmatprep.subr.bf16.mxu0 0
        %1955 = vmatpush1.bf16.msra.mxu0 0
        %1956 = vmatprep.subr.bf16.mxu0 0
        %1957 = vmatpush1.bf16.msra.mxu0 0
        %1958 = vmatprep.subr.bf16.mxu0 0
        %1959 = vmatpush1.bf16.msra.mxu0 0
        %1960 = vmatprep.subr.bf16.mxu0 0
        %1961 = vmatpush1.bf16.msra.mxu0 0
        %1962 = vmatprep.subr.bf16.mxu0 0
        %1963 = vmatpush1.bf16.msra.mxu0 0
        %1964 = vmatprep.subr.bf16.mxu0 0
        %1965 = vmatpush1.bf16.msra.mxu0 0
        %1966 = vmatprep.subr.bf16.mxu0 0
        %1967 = vmatpush1.bf16.msra.mxu0 0
        %1968 = vmatprep.mubr.bf16.mxu0 0
        %1969 = vmatmul.mubr.bf16.gmra.mrb[0].mxu0 %v1881
        %v1970 = vpop.f32.mrb[0].mxu0
        %v1971 = vadd.f32 %v1886, %v1970
        %v1972 = vpop.f32.mrb[0].mxu0
        %v1973 = vpop.f32.mrb[0].mxu0
        %v1974 = vpop.f32.mrb[0].mxu0
        %1975 = vdwg.mxu0
        %v1976 = vmul.f32 %v1971, 0.5
        %v1977 = vmul.f32 %v1971, 0.044715
        %v1978 = vmul.f32 %v1977, %v1971
        %v1979 = vmul.f32 %v1978, %v1971
        %v1980 = vadd.f32 %v1971, %v1979
        %v1981 = vmul.f32 %v1980, 0.7978846
        %v1982 = vtanh.pop %v1981
        %v1983 = vadd.f32 %v1982, 1.0
        %v1984 = vmul.f32 %v1976, %v1983
        %v1985 = vpack.c.bf16 %v1984, %v1984
        %v1987 = vlaneseq
        %v1988 = vshrl.u32 %v1987, 7
        %v1989 = vsub.s32 0, %v1988
        %v1990 = vrot.slane %v1880, %v1989
        %v2000 = vunpack.c.l.b16 %v1871
        %v2001 = vunpack.c.l.b16 %v1872
        %v2002 = vunpack.c.l.b16 %v1873
        %v2003 = vunpack.c.l.b16 %v1874
        %v2004 = vunpack.c.l.b16 %v1875
        %v2005 = vunpack.c.l.b16 %v1876
        %v2006 = vunpack.c.l.b16 %v1877
        %v2007 = vunpack.c.l.b16 %v1878
        %v2008 = vpack.c.b16 %v2001, %v2000
        %v2009 = vpack.c.b16 %v2003, %v2002
        %v2010 = vpack.c.b16 %v2005, %v2004
        %v2011 = vpack.c.b16 %v2007, %v2006
        %v2017 = vsel %vm1725, %v1985, 0
        %2019 = vmatprep.subr.bf16.mxu0 0
        %2020 = vmatpush1.bf16.msra.mxu0 %v2008
        %2021 = vmatprep.subr.bf16.mxu0 0
        %2022 = vmatpush1.bf16.msra.mxu0 %v2009
        %2023 = vmatprep.subr.bf16.mxu0 0
        %2024 = vmatpush1.bf16.msra.mxu0 %v2010
        %2025 = vmatprep.subr.bf16.mxu0 0
        %2026 = vmatpush1.bf16.msra.mxu0 %v2011
        %2027 = vmatprep.subr.bf16.mxu0 0
        %2028 = vmatpush1.bf16.msra.mxu0 0
        %2029 = vmatprep.subr.bf16.mxu0 0
        %2030 = vmatpush1.bf16.msra.mxu0 0
        %2031 = vmatprep.subr.bf16.mxu0 0
        %2032 = vmatpush1.bf16.msra.mxu0 0
        %2033 = vmatprep.subr.bf16.mxu0 0
        %2034 = vmatpush1.bf16.msra.mxu0 0
        %2035 = vmatprep.subr.bf16.mxu0 0
        %2036 = vmatpush1.bf16.msra.mxu0 0
        %2037 = vmatprep.subr.bf16.mxu0 0
        %2038 = vmatpush1.bf16.msra.mxu0 0
        %2039 = vmatprep.subr.bf16.mxu0 0
        %2040 = vmatpush1.bf16.msra.mxu0 0
        %2041 = vmatprep.subr.bf16.mxu0 0
        %2042 = vmatpush1.bf16.msra.mxu0 0
        %2043 = vmatprep.subr.bf16.mxu0 0
        %2044 = vmatpush1.bf16.msra.mxu0 0
        %2045 = vmatprep.subr.bf16.mxu0 0
        %2046 = vmatpush1.bf16.msra.mxu0 0
        %2047 = vmatprep.subr.bf16.mxu0 0
        %2048 = vmatpush1.bf16.msra.mxu0 0
        %2049 = vmatprep.subr.bf16.mxu0 0
        %2050 = vmatpush1.bf16.msra.mxu0 0
        %2051 = vmatprep.mubr.bf16.mxu0 0
        %2052 = vmatmul.mubr.bf16.gmra.mrb[0].mxu0 %v2017
        %v2053 = vpop.f32.mrb[0].mxu0
        %v2054 = vadd.f32 %v1990, %v2053
        %v2055 = vpop.f32.mrb[0].mxu0
        %v2056 = vpop.f32.mrb[0].mxu0
        %v2057 = vpop.f32.mrb[0].mxu0
        %2058 = vdwg.mxu0
        %v2059 = vadd.f32 %v965, %v2054
        %v2060 = vmul.f32 %v1844, %v1836
        %v2061 = vadd.f32 %v2059, %v2060
        %v2062 = vld [vmem:[#allocation20] sm:$0x1]
        %v2063 = vld [vmem:[#allocation22] sm:$0x1]
        %v2064 = vsel %vm973, %v2061, 0.0
        %2065 = vadd.xlane.f32.xlu0 %v2064
        %v2066 = vpop.xlane.xlu0 %2065
        %v2067 = vmul.f32 %v2066, %v977
        %v2068 = vsub.f32 %v2061, %v2067
        %v2069 = vmul.f32 %v2068, %v2068
        %v2070 = vsel %vm973, %v2069, 0.0
        %2071 = vadd.xlane.f32.xlu0 %v2070
        %v2072 = vpop.xlane.xlu0 %2071
        %v2073 = vmul.f32 %v2072, %v977
        %v2074 = vadd.f32 %v2073, 1e-05
        %v2075 = vrsqrt.pop %v2074
        %v2076 = vmul.f32 %v2068, %v2075
        %v2078 = vlaneseq
        %v2079 = vshrl.u32 %v2078, 7
        %v2080 = vsub.s32 0, %v2079
        %v2081 = vrot.slane %v2062, %v2080
        %v2083 = vmul.f32 %v2076, %v2081
        %v2085 = vlaneseq
        %v2086 = vshrl.u32 %v2085, 7
        %v2087 = vsub.s32 0, %v2086
        %v2088 = vrot.slane %v2063, %v2087
        %v2090 = vadd.f32 %v2083, %v2088
        %v2091 = vld [vmem:[#allocation23] sm:$0xff]
        %v2092 = vld [vmem:[#allocation23 + $0x8] sm:$0xff]
        %v2093 = vld [vmem:[#allocation23 + $0x10] sm:$0xff]
        %v2094 = vld [vmem:[#allocation23 + $0x18] sm:$0xff]
        %v2095 = vld [vmem:[#allocation23 + $0x20] sm:$0xff]
        %v2096 = vld [vmem:[#allocation23 + $0x28] sm:$0xff]
        %v2097 = vld [vmem:[#allocation23 + $0x30] sm:$0xff]
        %v2098 = vld [vmem:[#allocation23 + $0x38] sm:$0xff]
        %v2099 = vld [vmem:[#allocation23 + $0x40] sm:$0xff]
        %v2100 = vld [vmem:[#allocation23 + $0x48] sm:$0xff]
        %v2101 = vld [vmem:[#allocation23 + $0x50] sm:$0xff]
        %v2102 = vld [vmem:[#allocation23 + $0x58] sm:$0xff]
        %v2103 = vld [vmem:[#allocation23 + $0x60] sm:$0xff]
        %v2104 = vld [vmem:[#allocation23 + $0x68] sm:$0xff]
        %v2105 = vld [vmem:[#allocation23 + $0x70] sm:$0xff]
        %v2106 = vld [vmem:[#allocation23 + $0x78] sm:$0xff]
        %v2107 = vld [vmem:[#allocation23 + $0x80] sm:$0xff]
        %v2108 = vld [vmem:[#allocation23 + $0x88] sm:$0xff]
        %v2109 = vld [vmem:[#allocation23 + $0x90] sm:$0xff]
        %v2110 = vld [vmem:[#allocation23 + $0x98] sm:$0xff]
        %v2111 = vld [vmem:[#allocation23 + $0xa0] sm:$0xff]
        %v2112 = vld [vmem:[#allocation23 + $0xa8] sm:$0xff]
        %v2113 = vld [vmem:[#allocation23 + $0xb0] sm:$0xff]
        %v2114 = vld [vmem:[#allocation23 + $0xb8] sm:$0xff]
        %v2115 = vld [vmem:[#allocation23 + $0xc0] sm:$0xff]
        %v2116 = vld [vmem:[#allocation23 + $0xc8] sm:$0xff]
        %v2117 = vld [vmem:[#allocation23 + $0xd0] sm:$0xff]
        %v2118 = vld [vmem:[#allocation23 + $0xd8] sm:$0xff]
        %v2119 = vld [vmem:[#allocation23 + $0xe0] sm:$0xff]
        %v2120 = vld [vmem:[#allocation23 + $0xe8] sm:$0xff]
        %v2121 = vld [vmem:[#allocation23 + $0xf0] sm:$0xff]
        %v2122 = vld [vmem:[#allocation23 + $0xf8] sm:$0xff]
        %v2123 = vpack.c.bf16 %v2090, %v2090
        %v2124 = vld [vmem:[#allocation25] sm:$0xf]
        %v2126 = vlaneseq
        %v2127 = vshrl.u32 %v2126, 7
        %v2128 = vsub.s32 0, %v2127
        %v2129 = vrot.slane %v2124, %v2128
        %v2130 = vlaneseq
        %v2131 = vshrl.u32 %v2130, 7
        %v2132 = vsub.s32 1, %v2131
        %v2133 = vrot.slane %v2124, %v2132
        %v2134 = vlaneseq
        %v2135 = vshrl.u32 %v2134, 7
        %v2136 = vsub.s32 2, %v2135
        %v2137 = vrot.slane %v2124, %v2136
        %v2138 = vlaneseq
        %v2139 = vshrl.u32 %v2138, 7
        %v2140 = vsub.s32 3, %v2139
        %v2141 = vrot.slane %v2124, %v2140
        %v2178 = vunpack.c.l.b16 %v2091
        %v2179 = vunpack.c.h.b16 %v2091
        %v2180 = vunpack.c.l.b16 %v2092
        %v2181 = vunpack.c.h.b16 %v2092
        %v2182 = vunpack.c.l.b16 %v2093
        %v2183 = vunpack.c.h.b16 %v2093
        %v2184 = vunpack.c.l.b16 %v2094
        %v2185 = vunpack.c.h.b16 %v2094
        %v2186 = vunpack.c.l.b16 %v2095
        %v2187 = vunpack.c.h.b16 %v2095
        %v2188 = vunpack.c.l.b16 %v2096
        %v2189 = vunpack.c.h.b16 %v2096
        %v2190 = vunpack.c.l.b16 %v2097
        %v2191 = vunpack.c.h.b16 %v2097
        %v2192 = vunpack.c.l.b16 %v2098
        %v2193 = vunpack.c.h.b16 %v2098
        %v2194 = vunpack.c.l.b16 %v2099
        %v2195 = vunpack.c.h.b16 %v2099
        %v2196 = vunpack.c.l.b16 %v2100
        %v2197 = vunpack.c.h.b16 %v2100
        %v2198 = vunpack.c.l.b16 %v2101
        %v2199 = vunpack.c.h.b16 %v2101
        %v2200 = vunpack.c.l.b16 %v2102
        %v2201 = vunpack.c.h.b16 %v2102
        %v2202 = vunpack.c.l.b16 %v2103
        %v2203 = vunpack.c.h.b16 %v2103
        %v2204 = vunpack.c.l.b16 %v2104
        %v2205 = vunpack.c.h.b16 %v2104
        %v2206 = vunpack.c.l.b16 %v2105
        %v2207 = vunpack.c.h.b16 %v2105
        %v2208 = vunpack.c.l.b16 %v2106
        %v2209 = vunpack.c.h.b16 %v2106
        %v2210 = vunpack.c.l.b16 %v2107
        %v2211 = vunpack.c.h.b16 %v2107
        %v2212 = vunpack.c.l.b16 %v2108
        %v2213 = vunpack.c.h.b16 %v2108
        %v2214 = vunpack.c.l.b16 %v2109
        %v2215 = vunpack.c.h.b16 %v2109
        %v2216 = vunpack.c.l.b16 %v2110
        %v2217 = vunpack.c.h.b16 %v2110
        %v2218 = vunpack.c.l.b16 %v2111
        %v2219 = vunpack.c.h.b16 %v2111
        %v2220 = vunpack.c.l.b16 %v2112
        %v2221 = vunpack.c.h.b16 %v2112
        %v2222 = vunpack.c.l.b16 %v2113
        %v2223 = vunpack.c.h.b16 %v2113
        %v2224 = vunpack.c.l.b16 %v2114
        %v2225 = vunpack.c.h.b16 %v2114
        %v2226 = vunpack.c.l.b16 %v2115
        %v2227 = vunpack.c.h.b16 %v2115
        %v2228 = vunpack.c.l.b16 %v2116
        %v2229 = vunpack.c.h.b16 %v2116
        %v2230 = vunpack.c.l.b16 %v2117
        %v2231 = vunpack.c.h.b16 %v2117
        %v2232 = vunpack.c.l.b16 %v2118
        %v2233 = vunpack.c.h.b16 %v2118
        %v2234 = vunpack.c.l.b16 %v2119
        %v2235 = vunpack.c.h.b16 %v2119
        %v2236 = vunpack.c.l.b16 %v2120
        %v2237 = vunpack.c.h.b16 %v2120
        %v2238 = vunpack.c.l.b16 %v2121
        %v2239 = vunpack.c.h.b16 %v2121
        %v2240 = vunpack.c.l.b16 %v2122
        %v2241 = vunpack.c.h.b16 %v2122
        %v2242 = vpack.c.b16 %v2182, %v2178
        %v2243 = vpack.c.b16 %v2183, %v2179
        %v2244 = vpack.c.b16 %v2184, %v2180
        %v2245 = vpack.c.b16 %v2185, %v2181
        %v2246 = vpack.c.b16 %v2190, %v2186
        %v2247 = vpack.c.b16 %v2191, %v2187
        %v2248 = vpack.c.b16 %v2192, %v2188
        %v2249 = vpack.c.b16 %v2193, %v2189
        %v2250 = vpack.c.b16 %v2198, %v2194
        %v2251 = vpack.c.b16 %v2199, %v2195
        %v2252 = vpack.c.b16 %v2200, %v2196
        %v2253 = vpack.c.b16 %v2201, %v2197
        %v2254 = vpack.c.b16 %v2206, %v2202
        %v2255 = vpack.c.b16 %v2207, %v2203
        %v2256 = vpack.c.b16 %v2208, %v2204
        %v2257 = vpack.c.b16 %v2209, %v2205
        %v2258 = vpack.c.b16 %v2214, %v2210
        %v2259 = vpack.c.b16 %v2215, %v2211
        %v2260 = vpack.c.b16 %v2216, %v2212
        %v2261 = vpack.c.b16 %v2217, %v2213
        %v2262 = vpack.c.b16 %v2222, %v2218
        %v2263 = vpack.c.b16 %v2223, %v2219
        %v2264 = vpack.c.b16 %v2224, %v2220
        %v2265 = vpack.c.b16 %v2225, %v2221
        %v2266 = vpack.c.b16 %v2230, %v2226
        %v2267 = vpack.c.b16 %v2231, %v2227
        %v2268 = vpack.c.b16 %v2232, %v2228
        %v2269 = vpack.c.b16 %v2233, %v2229
        %v2270 = vpack.c.b16 %v2238, %v2234
        %v2271 = vpack.c.b16 %v2239, %v2235
        %v2272 = vpack.c.b16 %v2240, %v2236
        %v2273 = vpack.c.b16 %v2241, %v2237
        %2306 = vmatprep.subr.bf16.mxu0 %v2243
        %2307 = vmatpush1.bf16.msra.mxu0 %v2242
        %2308 = vmatprep.subr.bf16.mxu0 %v2247
        %2309 = vmatpush1.bf16.msra.mxu0 %v2246
        %2310 = vmatprep.subr.bf16.mxu0 %v2251
        %2311 = vmatpush1.bf16.msra.mxu0 %v2250
        %2312 = vmatprep.subr.bf16.mxu0 %v2255
        %2313 = vmatpush1.bf16.msra.mxu0 %v2254
        %2314 = vmatprep.subr.bf16.mxu0 %v2259
        %2315 = vmatpush1.bf16.msra.mxu0 %v2258
        %2316 = vmatprep.subr.bf16.mxu0 %v2263
        %2317 = vmatpush1.bf16.msra.mxu0 %v2262
        %2318 = vmatprep.subr.bf16.mxu0 %v2267
        %2319 = vmatpush1.bf16.msra.mxu0 %v2266
        %2320 = vmatprep.subr.bf16.mxu0 %v2271
        %2321 = vmatpush1.bf16.msra.mxu0 %v2270
        %2322 = vmatprep.subr.bf16.mxu0 0
        %2323 = vmatpush1.bf16.msra.mxu0 0
        %2324 = vmatprep.subr.bf16.mxu0 0
        %2325 = vmatpush1.bf16.msra.mxu0 0
        %2326 = vmatprep.subr.bf16.mxu0 0
        %2327 = vmatpush1.bf16.msra.mxu0 0
        %2328 = vmatprep.subr.bf16.mxu0 0
        %2329 = vmatpush1.bf16.msra.mxu0 0
        %2330 = vmatprep.subr.bf16.mxu0 0
        %2331 = vmatpush1.bf16.msra.mxu0 0
        %2332 = vmatprep.subr.bf16.mxu0 0
        %2333 = vmatpush1.bf16.msra.mxu0 0
        %2334 = vmatprep.subr.bf16.mxu0 0
        %2335 = vmatpush1.bf16.msra.mxu0 0
        %2336 = vmatprep.subr.bf16.mxu0 0
        %2337 = vmatpush1.bf16.msra.mxu0 0
        %2338 = vmatprep.mubr.bf16.mxu0 0
        %2339 = vmatmul.mubr.bf16.gmra.mrb[0].mxu0 %v2123
        %v2340 = vpop.f32.mrb[0].mxu0
        %v2341 = vadd.f32 %v2129, %v2340
        %v2342 = vpop.f32.mrb[0].mxu0
        %v2343 = vadd.f32 %v2133, %v2342
        %v2344 = vpop.f32.mrb[0].mxu0
        %v2345 = vpop.f32.mrb[0].mxu0
        %2346 = vdwg.mxu0
        %2347 = vmatprep.subr.bf16.mxu0 %v2245
        %2348 = vmatpush1.bf16.msra.mxu0 %v2244
        %2349 = vmatprep.subr.bf16.mxu0 %v2249
        %2350 = vmatpush1.bf16.msra.mxu0 %v2248
        %2351 = vmatprep.subr.bf16.mxu0 %v2253
        %2352 = vmatpush1.bf16.msra.mxu0 %v2252
        %2353 = vmatprep.subr.bf16.mxu0 %v2257
        %2354 = vmatpush1.bf16.msra.mxu0 %v2256
        %2355 = vmatprep.subr.bf16.mxu0 %v2261
        %2356 = vmatpush1.bf16.msra.mxu0 %v2260
        %2357 = vmatprep.subr.bf16.mxu0 %v2265
        %2358 = vmatpush1.bf16.msra.mxu0 %v2264
        %2359 = vmatprep.subr.bf16.mxu0 %v2269
        %2360 = vmatpush1.bf16.msra.mxu0 %v2268
        %2361 = vmatprep.subr.bf16.mxu0 %v2273
        %2362 = vmatpush1.bf16.msra.mxu0 %v2272
        %2363 = vmatprep.subr.bf16.mxu0 0
        %2364 = vmatpush1.bf16.msra.mxu0 0
        %2365 = vmatprep.subr.bf16.mxu0 0
        %2366 = vmatpush1.bf16.msra.mxu0 0
        %2367 = vmatprep.subr.bf16.mxu0 0
        %2368 = vmatpush1.bf16.msra.mxu0 0
        %2369 = vmatprep.subr.bf16.mxu0 0
        %2370 = vmatpush1.bf16.msra.mxu0 0
        %2371 = vmatprep.subr.bf16.mxu0 0
        %2372 = vmatpush1.bf16.msra.mxu0 0
        %2373 = vmatprep.subr.bf16.mxu0 0
        %2374 = vmatpush1.bf16.msra.mxu0 0
        %2375 = vmatprep.subr.bf16.mxu0 0
        %2376 = vmatpush1.bf16.msra.mxu0 0
        %2377 = vmatprep.subr.bf16.mxu0 0
        %2378 = vmatpush1.bf16.msra.mxu0 0
        %2379 = vmatprep.mubr.bf16.mxu0 0
        %2380 = vmatmul.mubr.bf16.gmra.mrb[0].mxu0 %v2123
        %v2381 = vpop.f32.mrb[0].mxu0
        %v2382 = vadd.f32 %v2137, %v2381
        %v2383 = vpop.f32.mrb[0].mxu0
        %v2384 = vadd.f32 %v2141, %v2383
        %v2385 = vpop.f32.mrb[0].mxu0
        %v2386 = vpop.f32.mrb[0].mxu0
        %2387 = vdwg.mxu0
        %v2388 = vmul.f32 %v2341, 1.702
        %v2389 = vmul.f32 %v2343, 1.702
        %v2390 = vmul.f32 %v2382, 1.702
        %v2391 = vmul.f32 %v2384, 1.702
        %v2392 = vxor.u32 %v2388, 2147483648
        %v2393 = vxor.u32 %v2389, 2147483648
        %v2394 = vxor.u32 %v2390, 2147483648
        %v2395 = vxor.u32 %v2391, 2147483648
        %v2396 = vmul.f32 %v2392, 1.442695
        %v2397 = vpow.pop %v2396
        %v2398 = vmul.f32 %v2393, 1.442695
        %v2399 = vpow.pop %v2398
        %v2400 = vmul.f32 %v2394, 1.442695
        %v2401 = vpow.pop %v2400
        %v2402 = vmul.f32 %v2395, 1.442695
        %v2403 = vpow.pop %v2402
        %v2404 = vadd.f32 %v2397, 1.0
        %v2405 = vadd.f32 %v2399, 1.0
        %v2406 = vadd.f32 %v2401, 1.0
        %v2407 = vadd.f32 %v2403, 1.0
        %v2408 = vrcp.pop %v2404
        %v2409 = vmul.f32 1.0, %v2408
        %v2410 = vrcp.pop %v2405
        %v2411 = vmul.f32 1.0, %v2410
        %v2412 = vrcp.pop %v2406
        %v2413 = vmul.f32 1.0, %v2412
        %v2414 = vrcp.pop %v2407
        %v2415 = vmul.f32 1.0, %v2414
        %v2416 = vmul.f32 %v2341, %v2409
        %v2417 = vmul.f32 %v2343, %v2411
        %v2418 = vmul.f32 %v2382, %v2413
        %v2419 = vmul.f32 %v2384, %v2415
        %v2420 = vld [vmem:[#allocation26] sm:$0xf]
        %v2421 = vld [vmem:[#allocation26 + $0x4] sm:$0xf]
        %v2422 = vld [vmem:[#allocation26 + $0x8] sm:$0xf]
        %v2423 = vld [vmem:[#allocation26 + $0xc] sm:$0xf]
        %v2424 = vld [vmem:[#allocation26 + $0x10] sm:$0xf]
        %v2425 = vld [vmem:[#allocation26 + $0x14] sm:$0xf]
        %v2426 = vld [vmem:[#allocation26 + $0x18] sm:$0xf]
        %v2427 = vld [vmem:[#allocation26 + $0x1c] sm:$0xf]
        %v2428 = vld [vmem:[#allocation26 + $0x20] sm:$0xf]
        %v2429 = vld [vmem:[#allocation26 + $0x24] sm:$0xf]
        %v2430 = vld [vmem:[#allocation26 + $0x28] sm:$0xf]
        %v2431 = vld [vmem:[#allocation26 + $0x2c] sm:$0xf]
        %v2432 = vld [vmem:[#allocation26 + $0x30] sm:$0xf]
        %v2433 = vld [vmem:[#allocation26 + $0x34] sm:$0xf]
        %v2434 = vld [vmem:[#allocation26 + $0x38] sm:$0xf]
        %v2435 = vld [vmem:[#allocation26 + $0x3c] sm:$0xf]
        %v2436 = vld [vmem:[#allocation26 + $0x40] sm:$0xf]
        %v2437 = vld [vmem:[#allocation26 + $0x44] sm:$0xf]
        %v2438 = vld [vmem:[#allocation26 + $0x48] sm:$0xf]
        %v2439 = vld [vmem:[#allocation26 + $0x4c] sm:$0xf]
        %v2440 = vld [vmem:[#allocation26 + $0x50] sm:$0xf]
        %v2441 = vld [vmem:[#allocation26 + $0x54] sm:$0xf]
        %v2442 = vld [vmem:[#allocation26 + $0x58] sm:$0xf]
        %v2443 = vld [vmem:[#allocation26 + $0x5c] sm:$0xf]
        %v2444 = vld [vmem:[#allocation26 + $0x60] sm:$0xf]
        %v2445 = vld [vmem:[#allocation26 + $0x64] sm:$0xf]
        %v2446 = vld [vmem:[#allocation26 + $0x68] sm:$0xf]
        %v2447 = vld [vmem:[#allocation26 + $0x6c] sm:$0xf]
        %v2448 = vld [vmem:[#allocation26 + $0x70] sm:$0xf]
        %v2449 = vld [vmem:[#allocation26 + $0x74] sm:$0xf]
        %v2450 = vld [vmem:[#allocation26 + $0x78] sm:$0xf]
        %v2451 = vld [vmem:[#allocation26 + $0x7c] sm:$0xf]
        %v2452 = vld [vmem:[#allocation26 + $0x80] sm:$0xf]
        %v2453 = vld [vmem:[#allocation26 + $0x84] sm:$0xf]
        %v2454 = vld [vmem:[#allocation26 + $0x88] sm:$0xf]
        %v2455 = vld [vmem:[#allocation26 + $0x8c] sm:$0xf]
        %v2456 = vld [vmem:[#allocation26 + $0x90] sm:$0xf]
        %v2457 = vld [vmem:[#allocation26 + $0x94] sm:$0xf]
        %v2458 = vld [vmem:[#allocation26 + $0x98] sm:$0xf]
        %v2459 = vld [vmem:[#allocation26 + $0x9c] sm:$0xf]
        %v2460 = vld [vmem:[#allocation26 + $0xa0] sm:$0xf]
        %v2461 = vld [vmem:[#allocation26 + $0xa4] sm:$0xf]
        %v2462 = vld [vmem:[#allocation26 + $0xa8] sm:$0xf]
        %v2463 = vld [vmem:[#allocation26 + $0xac] sm:$0xf]
        %v2464 = vld [vmem:[#allocation26 + $0xb0] sm:$0xf]
        %v2465 = vld [vmem:[#allocation26 + $0xb4] sm:$0xf]
        %v2466 = vld [vmem:[#allocation26 + $0xb8] sm:$0xf]
        %v2467 = vld [vmem:[#allocation26 + $0xbc] sm:$0xf]
        %v2468 = vld [vmem:[#allocation26 + $0xc0] sm:$0xf]
        %v2469 = vld [vmem:[#allocation26 + $0xc4] sm:$0xf]
        %v2470 = vld [vmem:[#allocation26 + $0xc8] sm:$0xf]
        %v2471 = vld [vmem:[#allocation26 + $0xcc] sm:$0xf]
        %v2472 = vld [vmem:[#allocation26 + $0xd0] sm:$0xf]
        %v2473 = vld [vmem:[#allocation26 + $0xd4] sm:$0xf]
        %v2474 = vld [vmem:[#allocation26 + $0xd8] sm:$0xf]
        %v2475 = vld [vmem:[#allocation26 + $0xdc] sm:$0xf]
        %v2476 = vld [vmem:[#allocation26 + $0xe0] sm:$0xf]
        %v2477 = vld [vmem:[#allocation26 + $0xe4] sm:$0xf]
        %v2478 = vld [vmem:[#allocation26 + $0xe8] sm:$0xf]
        %v2479 = vld [vmem:[#allocation26 + $0xec] sm:$0xf]
        %v2480 = vld [vmem:[#allocation26 + $0xf0] sm:$0xf]
        %v2481 = vld [vmem:[#allocation26 + $0xf4] sm:$0xf]
        %v2482 = vld [vmem:[#allocation26 + $0xf8] sm:$0xf]
        %v2483 = vld [vmem:[#allocation26 + $0xfc] sm:$0xf]
        %v2484 = vpack.c.bf16 %v2416, %v2416
        %v2485 = vpack.c.bf16 %v2417, %v2417
        %v2486 = vpack.c.bf16 %v2418, %v2418
        %v2487 = vpack.c.bf16 %v2419, %v2419
        %v2488 = vld [vmem:[#allocation28] sm:$0x1]
        %v2490 = vlaneseq
        %v2491 = vshrl.u32 %v2490, 7
        %v2492 = vsub.s32 0, %v2491
        %v2493 = vrot.slane %v2488, %v2492
        %v2559 = vunpack.c.l.b16 %v2420
        %v2560 = vunpack.c.l.b16 %v2421
        %v2561 = vunpack.c.l.b16 %v2422
        %v2562 = vunpack.c.l.b16 %v2423
        %v2563 = vunpack.c.l.b16 %v2424
        %v2564 = vunpack.c.l.b16 %v2425
        %v2565 = vunpack.c.l.b16 %v2426
        %v2566 = vunpack.c.l.b16 %v2427
        %v2567 = vunpack.c.l.b16 %v2428
        %v2568 = vunpack.c.l.b16 %v2429
        %v2569 = vunpack.c.l.b16 %v2430
        %v2570 = vunpack.c.l.b16 %v2431
        %v2571 = vunpack.c.l.b16 %v2432
        %v2572 = vunpack.c.l.b16 %v2433
        %v2573 = vunpack.c.l.b16 %v2434
        %v2574 = vunpack.c.l.b16 %v2435
        %v2575 = vunpack.c.l.b16 %v2436
        %v2576 = vunpack.c.l.b16 %v2437
        %v2577 = vunpack.c.l.b16 %v2438
        %v2578 = vunpack.c.l.b16 %v2439
        %v2579 = vunpack.c.l.b16 %v2440
        %v2580 = vunpack.c.l.b16 %v2441
        %v2581 = vunpack.c.l.b16 %v2442
        %v2582 = vunpack.c.l.b16 %v2443
        %v2583 = vunpack.c.l.b16 %v2444
        %v2584 = vunpack.c.l.b16 %v2445
        %v2585 = vunpack.c.l.b16 %v2446
        %v2586 = vunpack.c.l.b16 %v2447
        %v2587 = vunpack.c.l.b16 %v2448
        %v2588 = vunpack.c.l.b16 %v2449
        %v2589 = vunpack.c.l.b16 %v2450
        %v2590 = vunpack.c.l.b16 %v2451
        %v2591 = vunpack.c.l.b16 %v2452
        %v2592 = vunpack.c.l.b16 %v2453
        %v2593 = vunpack.c.l.b16 %v2454
        %v2594 = vunpack.c.l.b16 %v2455
        %v2595 = vunpack.c.l.b16 %v2456
        %v2596 = vunpack.c.l.b16 %v2457
        %v2597 = vunpack.c.l.b16 %v2458
        %v2598 = vunpack.c.l.b16 %v2459
        %v2599 = vunpack.c.l.b16 %v2460
        %v2600 = vunpack.c.l.b16 %v2461
        %v2601 = vunpack.c.l.b16 %v2462
        %v2602 = vunpack.c.l.b16 %v2463
        %v2603 = vunpack.c.l.b16 %v2464
        %v2604 = vunpack.c.l.b16 %v2465
        %v2605 = vunpack.c.l.b16 %v2466
        %v2606 = vunpack.c.l.b16 %v2467
        %v2607 = vunpack.c.l.b16 %v2468
        %v2608 = vunpack.c.l.b16 %v2469
        %v2609 = vunpack.c.l.b16 %v2470
        %v2610 = vunpack.c.l.b16 %v2471
        %v2611 = vunpack.c.l.b16 %v2472
        %v2612 = vunpack.c.l.b16 %v2473
        %v2613 = vunpack.c.l.b16 %v2474
        %v2614 = vunpack.c.l.b16 %v2475
        %v2615 = vunpack.c.l.b16 %v2476
        %v2616 = vunpack.c.l.b16 %v2477
        %v2617 = vunpack.c.l.b16 %v2478
        %v2618 = vunpack.c.l.b16 %v2479
        %v2619 = vunpack.c.l.b16 %v2480
        %v2620 = vunpack.c.l.b16 %v2481
        %v2621 = vunpack.c.l.b16 %v2482
        %v2622 = vunpack.c.l.b16 %v2483
        %v2623 = vpack.c.b16 %v2560, %v2559
        %v2624 = vpack.c.b16 %v2562, %v2561
        %v2625 = vpack.c.b16 %v2564, %v2563
        %v2626 = vpack.c.b16 %v2566, %v2565
        %v2627 = vpack.c.b16 %v2568, %v2567
        %v2628 = vpack.c.b16 %v2570, %v2569
        %v2629 = vpack.c.b16 %v2572, %v2571
        %v2630 = vpack.c.b16 %v2574, %v2573
        %v2631 = vpack.c.b16 %v2576, %v2575
        %v2632 = vpack.c.b16 %v2578, %v2577
        %v2633 = vpack.c.b16 %v2580, %v2579
        %v2634 = vpack.c.b16 %v2582, %v2581
        %v2635 = vpack.c.b16 %v2584, %v2583
        %v2636 = vpack.c.b16 %v2586, %v2585
        %v2637 = vpack.c.b16 %v2588, %v2587
        %v2638 = vpack.c.b16 %v2590, %v2589
        %v2639 = vpack.c.b16 %v2592, %v2591
        %v2640 = vpack.c.b16 %v2594, %v2593
        %v2641 = vpack.c.b16 %v2596, %v2595
        %v2642 = vpack.c.b16 %v2598, %v2597
        %v2643 = vpack.c.b16 %v2600, %v2599
        %v2644 = vpack.c.b16 %v2602, %v2601
        %v2645 = vpack.c.b16 %v2604, %v2603
        %v2646 = vpack.c.b16 %v2606, %v2605
        %v2647 = vpack.c.b16 %v2608, %v2607
        %v2648 = vpack.c.b16 %v2610, %v2609
        %v2649 = vpack.c.b16 %v2612, %v2611
        %v2650 = vpack.c.b16 %v2614, %v2613
        %v2651 = vpack.c.b16 %v2616, %v2615
        %v2652 = vpack.c.b16 %v2618, %v2617
        %v2653 = vpack.c.b16 %v2620, %v2619
        %v2654 = vpack.c.b16 %v2622, %v2621
        %2687 = vmatprep.subr.bf16.mxu0 0
        %2688 = vmatpush1.bf16.msra.mxu0 %v2623
        %2689 = vmatprep.subr.bf16.mxu0 0
        %2690 = vmatpush1.bf16.msra.mxu0 %v2624
        %2691 = vmatprep.subr.bf16.mxu0 0
        %2692 = vmatpush1.bf16.msra.mxu0 %v2625
        %2693 = vmatprep.subr.bf16.mxu0 0
        %2694 = vmatpush1.bf16.msra.mxu0 %v2626
        %2695 = vmatprep.subr.bf16.mxu0 0
        %2696 = vmatpush1.bf16.msra.mxu0 %v2627
        %2697 = vmatprep.subr.bf16.mxu0 0
        %2698 = vmatpush1.bf16.msra.mxu0 %v2628
        %2699 = vmatprep.subr.bf16.mxu0 0
        %2700 = vmatpush1.bf16.msra.mxu0 %v2629
        %2701 = vmatprep.subr.bf16.mxu0 0
        %2702 = vmatpush1.bf16.msra.mxu0 %v2630
        %2703 = vmatprep.subr.bf16.mxu0 0
        %2704 = vmatpush1.bf16.msra.mxu0 %v2631
        %2705 = vmatprep.subr.bf16.mxu0 0
        %2706 = vmatpush1.bf16.msra.mxu0 %v2632
        %2707 = vmatprep.subr.bf16.mxu0 0
        %2708 = vmatpush1.bf16.msra.mxu0 %v2633
        %2709 = vmatprep.subr.bf16.mxu0 0
        %2710 = vmatpush1.bf16.msra.mxu0 %v2634
        %2711 = vmatprep.subr.bf16.mxu0 0
        %2712 = vmatpush1.bf16.msra.mxu0 %v2635
        %2713 = vmatprep.subr.bf16.mxu0 0
        %2714 = vmatpush1.bf16.msra.mxu0 %v2636
        %2715 = vmatprep.subr.bf16.mxu0 0
        %2716 = vmatpush1.bf16.msra.mxu0 %v2637
        %2717 = vmatprep.subr.bf16.mxu0 0
        %2718 = vmatpush1.bf16.msra.mxu0 %v2638
        %2719 = vmatprep.mubr.bf16.mxu0 %v2485
        %2720 = vmatmul.mubr.bf16.gmra.mrb[0].mxu0 %v2484
        %v2721 = vpop.f32.mrb[0].mxu0
        %v2722 = vadd.f32 %v2493, %v2721
        %v2723 = vpop.f32.mrb[0].mxu0
        %v2724 = vpop.f32.mrb[0].mxu0
        %v2725 = vpop.f32.mrb[0].mxu0
        %2726 = vdwg.mxu0
        %2727 = vmatprep.subr.bf16.mxu0 0
        %2728 = vmatpush1.bf16.msra.mxu0 %v2639
        %2729 = vmatprep.subr.bf16.mxu0 0
        %2730 = vmatpush1.bf16.msra.mxu0 %v2640
        %2731 = vmatprep.subr.bf16.mxu0 0
        %2732 = vmatpush1.bf16.msra.mxu0 %v2641
        %2733 = vmatprep.subr.bf16.mxu0 0
        %2734 = vmatpush1.bf16.msra.mxu0 %v2642
        %2735 = vmatprep.subr.bf16.mxu0 0
        %2736 = vmatpush1.bf16.msra.mxu0 %v2643
        %2737 = vmatprep.subr.bf16.mxu0 0
        %2738 = vmatpush1.bf16.msra.mxu0 %v2644
        %2739 = vmatprep.subr.bf16.mxu0 0
        %2740 = vmatpush1.bf16.msra.mxu0 %v2645
        %2741 = vmatprep.subr.bf16.mxu0 0
        %2742 = vmatpush1.bf16.msra.mxu0 %v2646
        %2743 = vmatprep.subr.bf16.mxu0 0
        %2744 = vmatpush1.bf16.msra.mxu0 %v2647
        %2745 = vmatprep.subr.bf16.mxu0 0
        %2746 = vmatpush1.bf16.msra.mxu0 %v2648
        %2747 = vmatprep.subr.bf16.mxu0 0
        %2748 = vmatpush1.bf16.msra.mxu0 %v2649
        %2749 = vmatprep.subr.bf16.mxu0 0
        %2750 = vmatpush1.bf16.msra.mxu0 %v2650
        %2751 = vmatprep.subr.bf16.mxu0 0
        %2752 = vmatpush1.bf16.msra.mxu0 %v2651
        %2753 = vmatprep.subr.bf16.mxu0 0
        %2754 = vmatpush1.bf16.msra.mxu0 %v2652
        %2755 = vmatprep.subr.bf16.mxu0 0
        %2756 = vmatpush1.bf16.msra.mxu0 %v2653
        %2757 = vmatprep.subr.bf16.mxu0 0
        %2758 = vmatpush1.bf16.msra.mxu0 %v2654
        %2759 = vmatprep.mubr.bf16.mxu0 %v2487
        %2760 = vmatmul.mubr.bf16.gmra.mrb[0].mxu0 %v2486
        %v2761 = vpop.f32.mrb[0].mxu0
        %v2762 = vadd.f32 %v2722, %v2761
        %v2763 = vpop.f32.mrb[0].mxu0
        %v2764 = vpop.f32.mrb[0].mxu0
        %v2765 = vpop.f32.mrb[0].mxu0
        %2766 = vdwg.mxu0
        %v2767 = vmul.f32 %v1841, %v2762
        %v2768 = vmul.f32 %v1844, %v2090
        %v2769 = vadd.f32 %v2767, %v2768
        %s2770 = smul.addr %s1847, 4
        %s2771 = scalar_lea.vmem [#allocation29], %s2770
        %v2772 = vld [vmem:[%s2771] sm:$0xf]
        %v2773 = vld [vmem:[%s2771 + $0x4] sm:$0xf]
        %v2774 = vld [vmem:[%s2771 + $0x8] sm:$0xf]
        %v2775 = vld [vmem:[%s2771 + $0xc] sm:$0xf]
        %v2776 = vld [vmem:[%s2771 + $0x10] sm:$0xf]
        %v2777 = vld [vmem:[%s2771 + $0x14] sm:$0xf]
        %v2778 = vld [vmem:[%s2771 + $0x18] sm:$0xf]
        %v2779 = vld [vmem:[%s2771 + $0x1c] sm:$0xf]
        %v2780 = vld [vmem:[%s2771 + $0x20] sm:$0xf]
        %v2781 = vld [vmem:[%s2771 + $0x24] sm:$0xf]
        %v2782 = vld [vmem:[%s2771 + $0x28] sm:$0xf]
        %v2783 = vld [vmem:[%s2771 + $0x2c] sm:$0xf]
        %v2784 = vld [vmem:[%s2771 + $0x30] sm:$0xf]
        %v2785 = vld [vmem:[%s2771 + $0x34] sm:$0xf]
        %v2786 = vld [vmem:[%s2771 + $0x38] sm:$0xf]
        %v2787 = vld [vmem:[%s2771 + $0x3c] sm:$0xf]
        %s2788 = scalar_lea.vmem [#allocation31], %s970
        %v2789 = vld [vmem:[%s2788] sm:$0x1]
        %s2790 = smul.addr %s1868, 4
        %s2791 = scalar_lea.vmem [#allocation32], %s2790
        %v2792 = vld [vmem:[%s2791] sm:$0xf]
        %v2793 = vld [vmem:[%s2791 + $0x4] sm:$0xf]
        %v2794 = vld [vmem:[%s2791 + $0x8] sm:$0xf]
        %v2795 = vld [vmem:[%s2791 + $0xc] sm:$0xf]
        %v2796 = vld [vmem:[%s2791 + $0x10] sm:$0xf]
        %v2797 = vld [vmem:[%s2791 + $0x14] sm:$0xf]
        %v2798 = vld [vmem:[%s2791 + $0x18] sm:$0xf]
        %v2799 = vld [vmem:[%s2791 + $0x1c] sm:$0xf]
        %s2800 = scalar_lea.vmem [#allocation34], %s970
        %v2801 = vld [vmem:[%s2800] sm:$0x1]
        %v2802 = vpack.c.bf16 %v2769, %v2769
        %v2804 = vlaneseq
        %v2805 = vshrl.u32 %v2804, 7
        %v2806 = vsub.s32 0, %v2805
        %v2807 = vrot.slane %v2789, %v2806
        %v2825 = vunpack.c.l.b16 %v2772
        %v2826 = vunpack.c.l.b16 %v2773
        %v2827 = vunpack.c.l.b16 %v2774
        %v2828 = vunpack.c.l.b16 %v2775
        %v2829 = vunpack.c.l.b16 %v2776
        %v2830 = vunpack.c.l.b16 %v2777
        %v2831 = vunpack.c.l.b16 %v2778
        %v2832 = vunpack.c.l.b16 %v2779
        %v2833 = vunpack.c.l.b16 %v2780
        %v2834 = vunpack.c.l.b16 %v2781
        %v2835 = vunpack.c.l.b16 %v2782
        %v2836 = vunpack.c.l.b16 %v2783
        %v2837 = vunpack.c.l.b16 %v2784
        %v2838 = vunpack.c.l.b16 %v2785
        %v2839 = vunpack.c.l.b16 %v2786
        %v2840 = vunpack.c.l.b16 %v2787
        %v2841 = vpack.c.b16 %v2826, %v2825
        %v2842 = vpack.c.b16 %v2828, %v2827
        %v2843 = vpack.c.b16 %v2830, %v2829
        %v2844 = vpack.c.b16 %v2832, %v2831
        %v2845 = vpack.c.b16 %v2834, %v2833
        %v2846 = vpack.c.b16 %v2836, %v2835
        %v2847 = vpack.c.b16 %v2838, %v2837
        %v2848 = vpack.c.b16 %v2840, %v2839
        %2857 = vmatprep.subr.bf16.mxu0 0
        %2858 = vmatpush1.bf16.msra.mxu0 %v2841
        %2859 = vmatprep.subr.bf16.mxu0 0
        %2860 = vmatpush1.bf16.msra.mxu0 %v2842
        %2861 = vmatprep.subr.bf16.mxu0 0
        %2862 = vmatpush1.bf16.msra.mxu0 %v2843
        %2863 = vmatprep.subr.bf16.mxu0 0
        %2864 = vmatpush1.bf16.msra.mxu0 %v2844
        %2865 = vmatprep.subr.bf16.mxu0 0
        %2866 = vmatpush1.bf16.msra.mxu0 %v2845
        %2867 = vmatprep.subr.bf16.mxu0 0
        %2868 = vmatpush1.bf16.msra.mxu0 %v2846
        %2869 = vmatprep.subr.bf16.mxu0 0
        %2870 = vmatpush1.bf16.msra.mxu0 %v2847
        %2871 = vmatprep.subr.bf16.mxu0 0
        %2872 = vmatpush1.bf16.msra.mxu0 %v2848
        %2873 = vmatprep.subr.bf16.mxu0 0
        %2874 = vmatpush1.bf16.msra.mxu0 0
        %2875 = vmatprep.subr.bf16.mxu0 0
        %2876 = vmatpush1.bf16.msra.mxu0 0
        %2877 = vmatprep.subr.bf16.mxu0 0
        %2878 = vmatpush1.bf16.msra.mxu0 0
        %2879 = vmatprep.subr.bf16.mxu0 0
        %2880 = vmatpush1.bf16.msra.mxu0 0
        %2881 = vmatprep.subr.bf16.mxu0 0
        %2882 = vmatpush1.bf16.msra.mxu0 0
        %2883 = vmatprep.subr.bf16.mxu0 0
        %2884 = vmatpush1.bf16.msra.mxu0 0
        %2885 = vmatprep.subr.bf16.mxu0 0
        %2886 = vmatpush1.bf16.msra.mxu0 0
        %2887 = vmatprep.subr.bf16.mxu0 0
        %2888 = vmatpush1.bf16.msra.mxu0 0
        %2889 = vmatprep.mubr.bf16.mxu0 0
        %2890 = vmatmul.mubr.bf16.gmra.mrb[0].mxu0 %v2802
        %v2891 = vpop.f32.mrb[0].mxu0
        %v2892 = vadd.f32 %v2807, %v2891
        %v2893 = vpop.f32.mrb[0].mxu0
        %v2894 = vpop.f32.mrb[0].mxu0
        %v2895 = vpop.f32.mrb[0].mxu0
        %2896 = vdwg.mxu0
        %v2897 = vmul.f32 %v2892, 0.5
        %v2898 = vmul.f32 %v2892, 0.044715
        %v2899 = vmul.f32 %v2898, %v2892
        %v2900 = vmul.f32 %v2899, %v2892
        %v2901 = vadd.f32 %v2892, %v2900
        %v2902 = vmul.f32 %v2901, 0.7978846
        %v2903 = vtanh.pop %v2902
        %v2904 = vadd.f32 %v2903, 1.0
        %v2905 = vmul.f32 %v2897, %v2904
        %v2906 = vpack.c.bf16 %v2905, %v2905
        %v2908 = vlaneseq
        %v2909 = vshrl.u32 %v2908, 7
        %v2910 = vsub.s32 0, %v2909
        %v2911 = vrot.slane %v2801, %v2910
        %v2921 = vunpack.c.l.b16 %v2792
        %v2922 = vunpack.c.l.b16 %v2793
        %v2923 = vunpack.c.l.b16 %v2794
        %v2924 = vunpack.c.l.b16 %v2795
        %v2925 = vunpack.c.l.b16 %v2796
        %v2926 = vunpack.c.l.b16 %v2797
        %v2927 = vunpack.c.l.b16 %v2798
        %v2928 = vunpack.c.l.b16 %v2799
        %v2929 = vpack.c.b16 %v2922, %v2921
        %v2930 = vpack.c.b16 %v2924, %v2923
        %v2931 = vpack.c.b16 %v2926, %v2925
        %v2932 = vpack.c.b16 %v2928, %v2927
        %v2938 = vsel %vm1725, %v2906, 0
        %2940 = vmatprep.subr.bf16.mxu0 0
        %2941 = vmatpush1.bf16.msra.mxu0 %v2929
        %2942 = vmatprep.subr.bf16.mxu0 0
        %2943 = vmatpush1.bf16.msra.mxu0 %v2930
        %2944 = vmatprep.subr.bf16.mxu0 0
        %2945 = vmatpush1.bf16.msra.mxu0 %v2931
        %2946 = vmatprep.subr.bf16.mxu0 0
        %2947 = vmatpush1.bf16.msra.mxu0 %v2932
        %2948 = vmatprep.subr.bf16.mxu0 0
        %2949 = vmatpush1.bf16.msra.mxu0 0
        %2950 = vmatprep.subr.bf16.mxu0 0
        %2951 = vmatpush1.bf16.msra.mxu0 0
        %2952 = vmatprep.subr.bf16.mxu0 0
        %2953 = vmatpush1.bf16.msra.mxu0 0
        %2954 = vmatprep.subr.bf16.mxu0 0
        %2955 = vmatpush1.bf16.msra.mxu0 0
        %2956 = vmatprep.subr.bf16.mxu0 0
        %2957 = vmatpush1.bf16.msra.mxu0 0
        %2958 = vmatprep.subr.bf16.mxu0 0
        %2959 = vmatpush1.bf16.msra.mxu0 0
        %2960 = vmatprep.subr.bf16.mxu0 0
        %2961 = vmatpush1.bf16.msra.mxu0 0
        %2962 = vmatprep.subr.bf16.mxu0 0
        %2963 = vmatpush1.bf16.msra.mxu0 0
        %2964 = vmatprep.subr.bf16.mxu0 0
        %2965 = vmatpush1.bf16.msra.mxu0 0
        %2966 = vmatprep.subr.bf16.mxu0 0
        %2967 = vmatpush1.bf16.msra.mxu0 0
        %2968 = vmatprep.subr.bf16.mxu0 0
        %2969 = vmatpush1.bf16.msra.mxu0 0
        %2970 = vmatprep.subr.bf16.mxu0 0
        %2971 = vmatpush1.bf16.msra.mxu0 0
        %2972 = vmatprep.mubr.bf16.mxu0 0
        %2973 = vmatmul.mubr.bf16.gmra.mrb[0].mxu0 %v2938
        %v2974 = vpop.f32.mrb[0].mxu0
        %v2975 = vadd.f32 %v2911, %v2974
        %v2976 = vpop.f32.mrb[0].mxu0
        %v2977 = vpop.f32.mrb[0].mxu0
        %v2978 = vpop.f32.mrb[0].mxu0
        %2979 = vdwg.mxu0
        %v2980 = vadd.f32 %v2061, %v2975
        %v2981 = vmul.f32 %v1844, %v2762
        %v2982 = vadd.f32 %v2980, %v2981
        %2983 = vst [vmem:[%s963] sm:$0x1f] %v2982
        %s2984 = sand.u32 %s518, 1
        %s2985 = scalar_lea.sflag [#allocation4], %s2984
        %s2986 = sand.u32 %s518, 1
        %s2987 = smul.addr %s2986, 8
        %s2988 = scalar_lea.vmem [#allocation35], %s2987
        // Predicated region
        $region189: #{vit_clip_dualpath_forward.5} parent=103 // pred_check
          %p2989 = pneg %p528
        $region190: #{vit_clip_dualpath_forward.5} parent=103 // pred_check_branch
          %2991 = sbr.rel (%p2989) target = $region192
        $region191: #{vit_clip_dualpath_forward.5} parent=103 // pred_region
          %s2993 = ssub.s32 128, 128
          %2994 = vsyncadd %s2985, %s2993
          %s2995 = smul.addr %s52, 9
          %s2996 = sadd.s32 %s53, %s2995
          %s2997 = smul.addr %s2996, 128
          %s2998 = scalar_lea.hbm %s21, %s2997
          %s3000 = sshll.u32 %s2988, 4
          %s3001 = int_to_ptr.vmem [resolvable:$true] %s3000
          %3003 = dma.vmem_to_hbm [thread:$0]  %s3001, 128, %s2998, %s2985
        $region192: #{vit_clip_dualpath_forward.5} parent=103 // pred_fallthru
          _
      $region104: #{vit_clip_dualpath_forward.5} parent=5 // pred_fallthru
        _
      %p3004 = scmp.le.s32.totalorder 2, %s43
      // Predicated region
      $region193: #{vit_clip_dualpath_forward.5} parent=5 // pred_check
        %p3005 = pneg %p3004
      $region194: #{vit_clip_dualpath_forward.5} parent=5 // pred_check_branch
        %3007 = sbr.rel (%p3005) target = $region196
      $region195: #{vit_clip_dualpath_forward.5} parent=5 // pred_region
        %s3008 = ssub.s32 %s43, 2
        // Predicated region
        $region197: #{vit_clip_dualpath_forward.5} parent=195 // pred_check
          %p3009 = pneg %p534
        $region198: #{vit_clip_dualpath_forward.5} parent=195 // pred_check_branch
          %3011 = sbr.rel (%p3009) target = $region200
        $region199: #{vit_clip_dualpath_forward.5} parent=195 // pred_region
          %s3012 = sand.u32 %s519, 1
          %s3013 = scalar_lea.sflag [#allocation4], %s3012
          %s3014 = sand.u32 %s519, 1
          %s3015 = smul.addr %s3014, 8
          %s3016 = scalar_lea.vmem [#allocation35], %s3015
          %3017 = dma.done %s3013, 128
        $region200: #{vit_clip_dualpath_forward.5} parent=195 // pred_fallthru
          _
      $region196: #{vit_clip_dualpath_forward.5} parent=5 // pred_fallthru
        _
    $region6: #{vit_clip_dualpath_forward.5} parent=1 // loop_footer
      %s47 = sadd.s32 1, %s43
    $region7: #{vit_clip_dualpath_forward.5} parent=1 // loop_footer_branch
      %42 = sbr.rel target = $region3
    $region8: #{vit_clip_dualpath_forward.5} parent=1 // loop_exit
      _
    %3018 = vsyncpa [#allocation3], 1
    %s3019 = scalar_lea.sflag [#allocation3], 1
    %3020 = vsyncpa %s3019, 1
    %3021 = vsyncpa [#allocation6], 1
    %3022 = vsyncpa [#allocation9], 1
    %3023 = vsyncpa [#allocation12], 1
    %3024 = vsyncpa [#allocation15], 1
    %3025 = vsyncpa [#allocation18], 1
    %3026 = vsyncpa [#allocation21], 1
    %3027 = vsyncpa [#allocation24], 1
    %3028 = vsyncpa [#allocation27], 1
    %3029 = vsyncpa [#allocation30], 1
    %3030 = vsyncpa [#allocation33], 1
    %3031 = vsyncpa [#allocation4], 1
    %s3032 = scalar_lea.sflag [#allocation4], 1
    %3033 = vsyncpa %s3032, 1

// kernel: vit_clip_dualpath_forward.7
$region0: #{vit_clip_dualpath_forward.7}
  #allocation0 [shape = 'u32[]', space=smem, size = 0x4, offset = 0x4, fixed_abs, tag = 'smem constant byte address 0x4 - core index']
  #allocation1 [shape = 'u32[144,128]{1,0:T(1,128)}', space=vmem, size = 0x12000, scoped, tag = 'internal scratch']
  %s0 = inlined_call_operand.hbm [shape: f32[2,9,128], index: 0, kind: input, shape index: {}]
  %s1 = inlined_call_operand.hbm [shape: f32[1,128], index: 1, kind: input, shape index: {}]
  %s2 = inlined_call_operand.hbm [shape: f32[1,128], index: 2, kind: input, shape index: {}]
  %s3 = inlined_call_operand.hbm [shape: bf16[128,128], index: 3, kind: input, shape index: {}]
  %s4 = inlined_call_operand.hbm [shape: bf16[128,128], index: 4, kind: input, shape index: {}]
  %s5 = inlined_call_operand.hbm [shape: bf16[128,128], index: 5, kind: input, shape index: {}]
  %s6 = inlined_call_operand.hbm [shape: f32[1,128], index: 6, kind: input, shape index: {}]
  %s7 = inlined_call_operand.hbm [shape: f32[2,1,128], index: 7, kind: output, shape index: {}]
  %s8 = sld [smem:[#allocation0]]
  $region89: #{vit_clip_dualpath_forward.7} parent=0
    _
  %s10 = ssub.s32 1, %s8
  %s11 = scalar_select 0, %s10, %s8
  $region1: #{vit_clip_dualpath_forward.7} parent=0
    #allocation2 [shape = 'u8[16384]{0}', space=vmem, size = 0x4000, scoped, tag = 'input window, operand 0']
    #allocation3 [shape = 's32[2]{0}', space=sflag, size = 0x8, scoped, tag = 'scoped memory for vit_clip_dualpath_forward.7']
    #allocation4 [shape = 's32[2]{0}', space=sflag, size = 0x8, scoped, tag = 'scoped memory for vit_clip_dualpath_forward.7']
    #allocation5 [shape = 'u8[512]{0}', space=vmem, size = 0x400, scoped, tag = 'input window, operand 1, single buffered']
    #allocation6 [shape = 's32[1]{0}', space=sflag, size = 0x4, scoped, tag = 'scoped memory for vit_clip_dualpath_forward.7']
    #allocation7 [shape = 'u8[512]{0}', space=vmem, size = 0x400, scoped, tag = 'input window, operand 2, single buffered']
    #allocation8 [shape = 'u8[32768]{0}', space=vmem, size = 0x8000, scoped, tag = 'input window, operand 3, single buffered']
    #allocation9 [shape = 's32[1]{0}', space=sflag, size = 0x4, scoped, tag = 'scoped memory for vit_clip_dualpath_forward.7']
    #allocation10 [shape = 'u8[32768]{0}', space=vmem, size = 0x8000, scoped, tag = 'input window, operand 4, single buffered']
    #allocation11 [shape = 'u8[32768]{0}', space=vmem, size = 0x8000, scoped, tag = 'input window, operand 5, single buffered']
    #allocation12 [shape = 's32[1]{0}', space=sflag, size = 0x4, scoped, tag = 'scoped memory for vit_clip_dualpath_forward.7']
    #allocation13 [shape = 'u8[512]{0}', space=vmem, size = 0x400, scoped, tag = 'input window, operand 6, single buffered']
    #allocation14 [shape = 'u8[1024]{0}', space=vmem, size = 0x400, scoped, tag = 'output window, operand 0']
    %12 = vsyncpa [#allocation3], 0
    %s13 = scalar_lea.sflag [#allocation3], 1
    %14 = vsyncpa %s13, 0
    %15 = vsyncpa [#allocation6], 0
    %16 = vsyncpa [#allocation9], 0
    %17 = vsyncpa [#allocation12], 0
    %18 = vsyncpa [#allocation4], 0
    %s19 = scalar_lea.sflag [#allocation4], 1
    %20 = vsyncpa %s19, 0
    loop: start=0, step=1, limit=4
    $region2: #{vit_clip_dualpath_forward.7} parent=1 // loop_pre_header
      _
    $region3: #{vit_clip_dualpath_forward.7} parent=1 // loop_header
      %s22 = sphi 0, %s26
      %p23 = scmp.ge.s32.totalorder %s22, 4
      %s32 = sphi 0, %s34
      %s35 = sphi 0, %s32
      %s36 = sphi 0, %s35
      %s52 = sphi 0, %s36
      %s56 = sphi 0, %s56
      %s58 = sphi 0, %s56
      %s59 = sphi 0, %s58
      %s73 = sphi 0, %s59
      %s77 = sphi 0, %s77
      %s79 = sphi 0, %s77
      %s80 = sphi 0, %s79
      %s94 = sphi 0, %s80
      %s98 = sphi 0, %s98
      %s100 = sphi 0, %s98
      %s101 = sphi 0, %s100
      %s115 = sphi 0, %s101
      %s119 = sphi 0, %s119
      %s121 = sphi 0, %s119
      %s122 = sphi 0, %s121
      %s136 = sphi 0, %s122
      %s140 = sphi 0, %s140
      %s142 = sphi 0, %s140
      %s143 = sphi 0, %s142
      %s157 = sphi 0, %s143
      %s161 = sphi 0, %s161
      %s163 = sphi 0, %s161
      %s164 = sphi 0, %s163
      %s178 = sphi 0, %s164
      %s184 = sphi 0, %s186
      %s187 = sphi 0, %s184
      %s188 = sphi 0, %s187
      %s204 = sphi 0, %s188
    $region4: #{vit_clip_dualpath_forward.7} parent=1 // loop_header_branch
      %25 = sbr.rel (%p23) target = $region8
    $region5: #{vit_clip_dualpath_forward.7} parent=1 // loop_body
      %s27 = ssub.s32 %s22, 1
      %s28 = ssub.s32 %s22, 2
      %s29 = sadd.s32 %s22, 1
      %s30 = ssub.s32 %s22, %s29
      %p31 = scmp.eq.s32.totalorder %s30, 0
      %s33 = sadd.s32 %s32, 1
      %s34 = scalar_select %p31, %s32, %s33
      %p37 = pneg %p31
      %p38 = scmp.eq.s32.totalorder %s22, 1
      %p39 = por %p37, %p38
      %p40 = scmp.ne.s32.totalorder %s32, %s35
      %p41 = scmp.eq.s32.totalorder %s22, 0
      %p42 = por %p40, %p41
      %p43 = scmp.ne.s32.totalorder %s32, %s35
      %p44 = scmp.eq.s32.totalorder %s27, 1
      %p45 = por %p43, %p44
      %p46 = scmp.ne.s32.totalorder %s35, %s36
      %p47 = scmp.eq.s32.totalorder %s27, 0
      %p48 = por %p46, %p47
      %p49 = scmp.ne.s32.totalorder %s35, %s36
      %p50 = scmp.eq.s32.totalorder %s28, 1
      %p51 = por %p49, %p50
      %p53 = scmp.ne.s32.totalorder %s36, %s52
      %p54 = scmp.eq.s32.totalorder %s28, 0
      %p55 = por %p53, %p54
      %s57 = sadd.s32 %s56, 1
      %p60 = scmp.eq.s32.totalorder %s22, 1
      %p61 = scmp.ne.s32.totalorder %s56, %s58
      %p62 = scmp.eq.s32.totalorder %s22, 0
      %p63 = por %p61, %p62
      %p64 = scmp.ne.s32.totalorder %s56, %s58
      %p65 = scmp.eq.s32.totalorder %s27, 1
      %p66 = por %p64, %p65
      %p67 = scmp.ne.s32.totalorder %s58, %s59
      %p68 = scmp.eq.s32.totalorder %s27, 0
      %p69 = por %p67, %p68
      %p70 = scmp.ne.s32.totalorder %s58, %s59
      %p71 = scmp.eq.s32.totalorder %s28, 1
      %p72 = por %p70, %p71
      %p74 = scmp.ne.s32.totalorder %s59, %s73
      %p75 = scmp.eq.s32.totalorder %s28, 0
      %p76 = por %p74, %p75
      %s78 = sadd.s32 %s77, 1
      %p81 = scmp.eq.s32.totalorder %s22, 1
      %p82 = scmp.ne.s32.totalorder %s77, %s79
      %p83 = scmp.eq.s32.totalorder %s22, 0
      %p84 = por %p82, %p83
      %p85 = scmp.ne.s32.totalorder %s77, %s79
      %p86 = scmp.eq.s32.totalorder %s27, 1
      %p87 = por %p85, %p86
      %p88 = scmp.ne.s32.totalorder %s79, %s80
      %p89 = scmp.eq.s32.totalorder %s27, 0
      %p90 = por %p88, %p89
      %p91 = scmp.ne.s32.totalorder %s79, %s80
      %p92 = scmp.eq.s32.totalorder %s28, 1
      %p93 = por %p91, %p92
      %p95 = scmp.ne.s32.totalorder %s80, %s94
      %p96 = scmp.eq.s32.totalorder %s28, 0
      %p97 = por %p95, %p96
      %s99 = sadd.s32 %s98, 1
      %p102 = scmp.eq.s32.totalorder %s22, 1
      %p103 = scmp.ne.s32.totalorder %s98, %s100
      %p104 = scmp.eq.s32.totalorder %s22, 0
      %p105 = por %p103, %p104
      %p106 = scmp.ne.s32.totalorder %s98, %s100
      %p107 = scmp.eq.s32.totalorder %s27, 1
      %p108 = por %p106, %p107
      %p109 = scmp.ne.s32.totalorder %s100, %s101
      %p110 = scmp.eq.s32.totalorder %s27, 0
      %p111 = por %p109, %p110
      %p112 = scmp.ne.s32.totalorder %s100, %s101
      %p113 = scmp.eq.s32.totalorder %s28, 1
      %p114 = por %p112, %p113
      %p116 = scmp.ne.s32.totalorder %s101, %s115
      %p117 = scmp.eq.s32.totalorder %s28, 0
      %p118 = por %p116, %p117
      %s120 = sadd.s32 %s119, 1
      %p123 = scmp.eq.s32.totalorder %s22, 1
      %p124 = scmp.ne.s32.totalorder %s119, %s121
      %p125 = scmp.eq.s32.totalorder %s22, 0
      %p126 = por %p124, %p125
      %p127 = scmp.ne.s32.totalorder %s119, %s121
      %p128 = scmp.eq.s32.totalorder %s27, 1
      %p129 = por %p127, %p128
      %p130 = scmp.ne.s32.totalorder %s121, %s122
      %p131 = scmp.eq.s32.totalorder %s27, 0
      %p132 = por %p130, %p131
      %p133 = scmp.ne.s32.totalorder %s121, %s122
      %p134 = scmp.eq.s32.totalorder %s28, 1
      %p135 = por %p133, %p134
      %p137 = scmp.ne.s32.totalorder %s122, %s136
      %p138 = scmp.eq.s32.totalorder %s28, 0
      %p139 = por %p137, %p138
      %s141 = sadd.s32 %s140, 1
      %p144 = scmp.eq.s32.totalorder %s22, 1
      %p145 = scmp.ne.s32.totalorder %s140, %s142
      %p146 = scmp.eq.s32.totalorder %s22, 0
      %p147 = por %p145, %p146
      %p148 = scmp.ne.s32.totalorder %s140, %s142
      %p149 = scmp.eq.s32.totalorder %s27, 1
      %p150 = por %p148, %p149
      %p151 = scmp.ne.s32.totalorder %s142, %s143
      %p152 = scmp.eq.s32.totalorder %s27, 0
      %p153 = por %p151, %p152
      %p154 = scmp.ne.s32.totalorder %s142, %s143
      %p155 = scmp.eq.s32.totalorder %s28, 1
      %p156 = por %p154, %p155
      %p158 = scmp.ne.s32.totalorder %s143, %s157
      %p159 = scmp.eq.s32.totalorder %s28, 0
      %p160 = por %p158, %p159
      %s162 = sadd.s32 %s161, 1
      %p165 = scmp.eq.s32.totalorder %s22, 1
      %p166 = scmp.ne.s32.totalorder %s161, %s163
      %p167 = scmp.eq.s32.totalorder %s22, 0
      %p168 = por %p166, %p167
      %p169 = scmp.ne.s32.totalorder %s161, %s163
      %p170 = scmp.eq.s32.totalorder %s27, 1
      %p171 = por %p169, %p170
      %p172 = scmp.ne.s32.totalorder %s163, %s164
      %p173 = scmp.eq.s32.totalorder %s27, 0
      %p174 = por %p172, %p173
      %p175 = scmp.ne.s32.totalorder %s163, %s164
      %p176 = scmp.eq.s32.totalorder %s28, 1
      %p177 = por %p175, %p176
      %p179 = scmp.ne.s32.totalorder %s164, %s178
      %p180 = scmp.eq.s32.totalorder %s28, 0
      %p181 = por %p179, %p180
      %s182 = ssub.s32 %s22, %s29
      %p183 = scmp.eq.s32.totalorder %s182, 0
      %s185 = sadd.s32 %s184, 1
      %s186 = scalar_select %p183, %s184, %s185
      %p189 = pneg %p183
      %p190 = scmp.eq.s32.totalorder %s22, 1
      %p191 = por %p189, %p190
      %p192 = scmp.ne.s32.totalorder %s184, %s187
      %p193 = scmp.eq.s32.totalorder %s22, 0
      %p194 = por %p192, %p193
      %p195 = scmp.ne.s32.totalorder %s184, %s187
      %p196 = scmp.eq.s32.totalorder %s27, 1
      %p197 = por %p195, %p196
      %p198 = scmp.ne.s32.totalorder %s187, %s188
      %p199 = scmp.eq.s32.totalorder %s27, 0
      %p200 = por %p198, %p199
      %p201 = scmp.ne.s32.totalorder %s187, %s188
      %p202 = scmp.eq.s32.totalorder %s28, 1
      %p203 = por %p201, %p202
      %p205 = scmp.ne.s32.totalorder %s188, %s204
      %p206 = scmp.eq.s32.totalorder %s28, 0
      %p207 = por %p205, %p206
      %p208 = scmp.le.s32.totalorder 1, %s22
      %p209 = scmp.lt.s32.totalorder %s22, 3
      %p210 = pnand %p208, %p209
      %p211 = pneg %p210
      // Predicated region
      $region9: #{vit_clip_dualpath_forward.7} parent=5 // pred_check
        _
      $region10: #{vit_clip_dualpath_forward.7} parent=5 // pred_check_branch
        %213 = sbr.rel (%p210) target = $region12
      $region11: #{vit_clip_dualpath_forward.7} parent=5 // pred_region
        %s214 = ssub.s32 %s22, 1
        // Predicated region
        $region13: #{vit_clip_dualpath_forward.7} parent=11 // pred_check
          %p215 = pneg %p69
        $region14: #{vit_clip_dualpath_forward.7} parent=11 // pred_check_branch
          %217 = sbr.rel (%p215) target = $region16
        $region15: #{vit_clip_dualpath_forward.7} parent=11 // pred_region
          %s219 = ssub.s32 16, 16
          %220 = vsyncadd [#allocation6], %s219
          %s222 = sshll.u32 [#allocation5], 4
          %s223 = int_to_ptr.vmem [resolvable:$true] %s222
          %225 = dma.hbm_to_vmem [thread:$0]  %s1, 16, %s223, [#allocation6]
        $region16: #{vit_clip_dualpath_forward.7} parent=11 // pred_fallthru
          _
        // Predicated region
        $region17: #{vit_clip_dualpath_forward.7} parent=11 // pred_check
          %p226 = pneg %p90
        $region18: #{vit_clip_dualpath_forward.7} parent=11 // pred_check_branch
          %228 = sbr.rel (%p226) target = $region20
        $region19: #{vit_clip_dualpath_forward.7} parent=11 // pred_region
          %s230 = ssub.s32 16, 16
          %231 = vsyncadd [#allocation6], %s230
          %s233 = sshll.u32 [#allocation7], 4
          %s234 = int_to_ptr.vmem [resolvable:$true] %s233
          %236 = dma.hbm_to_vmem [thread:$0]  %s2, 16, %s234, [#allocation6]
        $region20: #{vit_clip_dualpath_forward.7} parent=11 // pred_fallthru
          _
        // Predicated region
        $region21: #{vit_clip_dualpath_forward.7} parent=11 // pred_check
          %p237 = pneg %p111
        $region22: #{vit_clip_dualpath_forward.7} parent=11 // pred_check_branch
          %239 = sbr.rel (%p237) target = $region24
        $region23: #{vit_clip_dualpath_forward.7} parent=11 // pred_region
          %s241 = ssub.s32 1024, 1024
          %242 = vsyncadd [#allocation9], %s241
          %s243 = sshll.u32 [#allocation8], 4
          %s244 = int_to_ptr.vmem [resolvable:$true] %s243
          %249 = dma.hbm_to_vmem [thread:$0]  %s3, 1024, %s244, [#allocation9], 64, 64, 4
        $region24: #{vit_clip_dualpath_forward.7} parent=11 // pred_fallthru
          _
        // Predicated region
        $region25: #{vit_clip_dualpath_forward.7} parent=11 // pred_check
          %p250 = pneg %p132
        $region26: #{vit_clip_dualpath_forward.7} parent=11 // pred_check_branch
          %252 = sbr.rel (%p250) target = $region28
        $region27: #{vit_clip_dualpath_forward.7} parent=11 // pred_region
          %s254 = ssub.s32 1024, 1024
          %255 = vsyncadd [#allocation9], %s254
          %s256 = sshll.u32 [#allocation10], 4
          %s257 = int_to_ptr.vmem [resolvable:$true] %s256
          %262 = dma.hbm_to_vmem [thread:$0]  %s4, 1024, %s257, [#allocation9], 64, 64, 4
        $region28: #{vit_clip_dualpath_forward.7} parent=11 // pred_fallthru
          _
        // Predicated region
        $region29: #{vit_clip_dualpath_forward.7} parent=11 // pred_check
          %p263 = pneg %p153
        $region30: #{vit_clip_dualpath_forward.7} parent=11 // pred_check_branch
          %265 = sbr.rel (%p263) target = $region32
        $region31: #{vit_clip_dualpath_forward.7} parent=11 // pred_region
          %s267 = ssub.s32 1024, 1024
          %268 = vsyncadd [#allocation12], %s267
          %s269 = sshll.u32 [#allocation11], 4
          %s270 = int_to_ptr.vmem [resolvable:$true] %s269
          %275 = dma.hbm_to_vmem [thread:$0]  %s5, 1024, %s270, [#allocation12], 64, 64, 4
        $region32: #{vit_clip_dualpath_forward.7} parent=11 // pred_fallthru
          _
        // Predicated region
        $region33: #{vit_clip_dualpath_forward.7} parent=11 // pred_check
          %p276 = pneg %p174
        $region34: #{vit_clip_dualpath_forward.7} parent=11 // pred_check_branch
          %278 = sbr.rel (%p276) target = $region36
        $region35: #{vit_clip_dualpath_forward.7} parent=11 // pred_region
          %s280 = ssub.s32 16, 16
          %281 = vsyncadd [#allocation12], %s280
          %s283 = sshll.u32 [#allocation13], 4
          %s284 = int_to_ptr.vmem [resolvable:$true] %s283
          %286 = dma.hbm_to_vmem [thread:$0]  %s6, 16, %s284, [#allocation12]
        $region36: #{vit_clip_dualpath_forward.7} parent=11 // pred_fallthru
          _
      $region12: #{vit_clip_dualpath_forward.7} parent=5 // pred_fallthru
        _
      %p287 = scmp.lt.s32.totalorder %s22, 2
      // Predicated region
      $region37: #{vit_clip_dualpath_forward.7} parent=5 // pred_check
        %p288 = pneg %p287
      $region38: #{vit_clip_dualpath_forward.7} parent=5 // pred_check_branch
        %290 = sbr.rel (%p288) target = $region40
      $region39: #{vit_clip_dualpath_forward.7} parent=5 // pred_region
        // Predicated region
        $region41: #{vit_clip_dualpath_forward.7} parent=39 // pred_check
          %p291 = pneg %p42
        $region42: #{vit_clip_dualpath_forward.7} parent=39 // pred_check_branch
          %293 = sbr.rel (%p291) target = $region44
        $region43: #{vit_clip_dualpath_forward.7} parent=39 // pred_region
          %s294 = sand.u32 %s32, 1
          %s295 = scalar_lea.sflag [#allocation3], %s294
          %s296 = sand.u32 %s32, 1
          %s297 = smul.addr %s296, 16
          %s298 = scalar_lea.vmem [#allocation2], %s297
          %s300 = ssub.s32 256, 256
          %301 = vsyncadd %s295, %s300
          %s302 = smul.addr %s22, 2
          %s303 = smul.addr %s302, 128
          %s304 = scalar_lea.hbm %s0, %s303
          %s305 = sshll.u32 %s298, 4
          %s306 = int_to_ptr.vmem [resolvable:$true] %s305
          %311 = dma.hbm_to_vmem [thread:$0]  %s304, 256, %s306, %s295, 128, 128, 8
        $region44: #{vit_clip_dualpath_forward.7} parent=39 // pred_fallthru
          _
      $region40: #{vit_clip_dualpath_forward.7} parent=5 // pred_fallthru
        _
      %p312 = scmp.le.s32.totalorder 1, %s22
      %p313 = scmp.lt.s32.totalorder %s22, 3
      %p314 = pnand %p312, %p313
      %p315 = pneg %p314
      // Predicated region
      $region45: #{vit_clip_dualpath_forward.7} parent=5 // pred_check
        _
      $region46: #{vit_clip_dualpath_forward.7} parent=5 // pred_check_branch
        %317 = sbr.rel (%p314) target = $region48
      $region47: #{vit_clip_dualpath_forward.7} parent=5 // pred_region
        %s318 = ssub.s32 %s22, 1
        %s319 = sand.u32 %s35, 1
        %s320 = scalar_lea.sflag [#allocation3], %s319
        %s321 = sand.u32 %s35, 1
        %s322 = smul.addr %s321, 16
        %s323 = scalar_lea.vmem [#allocation2], %s322
        // Predicated region
        $region49: #{vit_clip_dualpath_forward.7} parent=47 // pred_check
          %p324 = pneg %p48
        $region50: #{vit_clip_dualpath_forward.7} parent=47 // pred_check_branch
          %326 = sbr.rel (%p324) target = $region52
        $region51: #{vit_clip_dualpath_forward.7} parent=47 // pred_region
          %327 = dma.done %s320, 256
        $region52: #{vit_clip_dualpath_forward.7} parent=47 // pred_fallthru
          _
        // Predicated region
        $region53: #{vit_clip_dualpath_forward.7} parent=47 // pred_check
          %p328 = pneg %p69
        $region54: #{vit_clip_dualpath_forward.7} parent=47 // pred_check_branch
          %330 = sbr.rel (%p328) target = $region56
        $region55: #{vit_clip_dualpath_forward.7} parent=47 // pred_region
          %331 = dma.done [#allocation6], 16
        $region56: #{vit_clip_dualpath_forward.7} parent=47 // pred_fallthru
          _
        // Predicated region
        $region57: #{vit_clip_dualpath_forward.7} parent=47 // pred_check
          %p332 = pneg %p90
        $region58: #{vit_clip_dualpath_forward.7} parent=47 // pred_check_branch
          %334 = sbr.rel (%p332) target = $region60
        $region59: #{vit_clip_dualpath_forward.7} parent=47 // pred_region
          %335 = dma.done [#allocation6], 16
        $region60: #{vit_clip_dualpath_forward.7} parent=47 // pred_fallthru
          _
        // Predicated region
        $region61: #{vit_clip_dualpath_forward.7} parent=47 // pred_check
          %p336 = pneg %p111
        $region62: #{vit_clip_dualpath_forward.7} parent=47 // pred_check_branch
          %338 = sbr.rel (%p336) target = $region64
        $region63: #{vit_clip_dualpath_forward.7} parent=47 // pred_region
          %339 = dma.done [#allocation9], 1024
        $region64: #{vit_clip_dualpath_forward.7} parent=47 // pred_fallthru
          _
        // Predicated region
        $region65: #{vit_clip_dualpath_forward.7} parent=47 // pred_check
          %p340 = pneg %p132
        $region66: #{vit_clip_dualpath_forward.7} parent=47 // pred_check_branch
          %342 = sbr.rel (%p340) target = $region68
        $region67: #{vit_clip_dualpath_forward.7} parent=47 // pred_region
          %343 = dma.done [#allocation9], 1024
        $region68: #{vit_clip_dualpath_forward.7} parent=47 // pred_fallthru
          _
        // Predicated region
        $region69: #{vit_clip_dualpath_forward.7} parent=47 // pred_check
          %p344 = pneg %p153
        $region70: #{vit_clip_dualpath_forward.7} parent=47 // pred_check_branch
          %346 = sbr.rel (%p344) target = $region72
        $region71: #{vit_clip_dualpath_forward.7} parent=47 // pred_region
          %347 = dma.done [#allocation12], 1024
        $region72: #{vit_clip_dualpath_forward.7} parent=47 // pred_fallthru
          _
        // Predicated region
        $region73: #{vit_clip_dualpath_forward.7} parent=47 // pred_check
          %p348 = pneg %p174
        $region74: #{vit_clip_dualpath_forward.7} parent=47 // pred_check_branch
          %350 = sbr.rel (%p348) target = $region76
        $region75: #{vit_clip_dualpath_forward.7} parent=47 // pred_region
          %351 = dma.done [#allocation12], 16
        $region76: #{vit_clip_dualpath_forward.7} parent=47 // pred_fallthru
          _
        %s352 = sand.u32 %s35, 1
        %s353 = scalar_lea.sflag [#allocation3], %s352
        %s354 = sand.u32 %s35, 1
        %s355 = smul.addr %s354, 16
        %s356 = scalar_lea.vmem [#allocation2], %s355
        %p357 = pneg %p48
        %p358 = pneg %p45
        %p359 = pneg %p69
        %p360 = pneg %p66
        %p361 = pneg %p90
        %p362 = pneg %p87
        %p363 = pneg %p111
        %p364 = pneg %p108
        %p365 = pneg %p132
        %p366 = pneg %p129
        %p367 = pneg %p153
        %p368 = pneg %p150
        %p369 = pneg %p174
        %p370 = pneg %p171
        %p371 = pneg %p200
        %p372 = pneg %p197
        %s373 = sand.u32 %s187, 1
        %s374 = scalar_lea.sflag [#allocation4], %s373
        %s375 = sand.u32 %s187, 1
        %s376 = scalar_lea.vmem [#allocation14], %s375
        %v378 = vld [vmem:[%s323] sm:$0xff]
        %v379 = vld [vmem:[%s323 + $0x8] sm:$0x1]
        %v380 = vld [vmem:[#allocation5] sm:$0x1]
        %v381 = vld [vmem:[#allocation7] sm:$0x1]
        %382 = vadd.xlane.f32.xlu0 %v378
        %v383 = vpop.xlane.xlu0 %382
        %vm384 = vcmask 1040384
        %v385 = vsel %vm384, %v379, 0.0
        %386 = vadd.xlane.f32.xlu0 %v385
        %v387 = vpop.xlane.xlu0 %386
        %v388 = vrcp.pop 128.0
        %v389 = vmul.f32 %v383, %v388
        %v390 = vmul.f32 %v387, %v388
        %v391 = vsub.f32 %v378, %v389
        %v392 = vsub.f32 %v379, %v390
        %v393 = vmul.f32 %v391, %v391
        %v394 = vmul.f32 %v392, %v392
        %395 = vadd.xlane.f32.xlu0 %v393
        %v396 = vpop.xlane.xlu0 %395
        %v397 = vsel %vm384, %v394, 0.0
        %398 = vadd.xlane.f32.xlu0 %v397
        %v399 = vpop.xlane.xlu0 %398
        %v400 = vmul.f32 %v396, %v388
        %v401 = vmul.f32 %v399, %v388
        %v402 = vadd.f32 %v400, 1e-05
        %v403 = vadd.f32 %v401, 1e-05
        %v404 = vrsqrt.pop %v402
        %v405 = vrsqrt.pop %v403
        %v406 = vmul.f32 %v391, %v404
        %v407 = vmul.f32 %v392, %v405
        %v409 = vlaneseq
        %v410 = vshrl.u32 %v409, 7
        %v411 = vsub.s32 0, %v410
        %v412 = vrot.slane %v380, %v411
        %v414 = vmul.f32 %v406, %v412
        %v415 = vmul.f32 %v407, %v412
        %v417 = vlaneseq
        %v418 = vshrl.u32 %v417, 7
        %v419 = vsub.s32 0, %v418
        %v420 = vrot.slane %v381, %v419
        %v422 = vadd.f32 %v414, %v420
        %v423 = vadd.f32 %v415, %v420
        %v424 = vld [vmem:[#allocation8] sm:$0xf]
        %v425 = vld [vmem:[#allocation8 + $0x4] sm:$0xf]
        %v426 = vld [vmem:[#allocation8 + $0x8] sm:$0xf]
        %v427 = vld [vmem:[#allocation8 + $0xc] sm:$0xf]
        %v428 = vld [vmem:[#allocation8 + $0x10] sm:$0xf]
        %v429 = vld [vmem:[#allocation8 + $0x14] sm:$0xf]
        %v430 = vld [vmem:[#allocation8 + $0x18] sm:$0xf]
        %v431 = vld [vmem:[#allocation8 + $0x1c] sm:$0xf]
        %v432 = vld [vmem:[#allocation8 + $0x20] sm:$0xf]
        %v433 = vld [vmem:[#allocation8 + $0x24] sm:$0xf]
        %v434 = vld [vmem:[#allocation8 + $0x28] sm:$0xf]
        %v435 = vld [vmem:[#allocation8 + $0x2c] sm:$0xf]
        %v436 = vld [vmem:[#allocation8 + $0x30] sm:$0xf]
        %v437 = vld [vmem:[#allocation8 + $0x34] sm:$0xf]
        %v438 = vld [vmem:[#allocation8 + $0x38] sm:$0xf]
        %v439 = vld [vmem:[#allocation8 + $0x3c] sm:$0xf]
        %v440 = vpack.c.bf16 %v423, %v422
        %v457 = vunpack.c.l.b16 %v424
        %v458 = vunpack.c.l.b16 %v425
        %v459 = vunpack.c.l.b16 %v426
        %v460 = vunpack.c.l.b16 %v427
        %v461 = vunpack.c.l.b16 %v428
        %v462 = vunpack.c.l.b16 %v429
        %v463 = vunpack.c.l.b16 %v430
        %v464 = vunpack.c.l.b16 %v431
        %v465 = vunpack.c.l.b16 %v432
        %v466 = vunpack.c.l.b16 %v433
        %v467 = vunpack.c.l.b16 %v434
        %v468 = vunpack.c.l.b16 %v435
        %v469 = vunpack.c.l.b16 %v436
        %v470 = vunpack.c.l.b16 %v437
        %v471 = vunpack.c.l.b16 %v438
        %v472 = vunpack.c.l.b16 %v439
        %v473 = vpack.c.b16 %v458, %v457
        %v474 = vpack.c.b16 %v460, %v459
        %v475 = vpack.c.b16 %v462, %v461
        %v476 = vpack.c.b16 %v464, %v463
        %v477 = vpack.c.b16 %v466, %v465
        %v478 = vpack.c.b16 %v468, %v467
        %v479 = vpack.c.b16 %v470, %v469
        %v480 = vpack.c.b16 %v472, %v471
        %489 = vmatprep.subr.bf16.mxu0 0
        %490 = vmatpush1.bf16.msra.mxu0 %v473
        %491 = vmatprep.subr.bf16.mxu0 0
        %492 = vmatpush1.bf16.msra.mxu0 %v474
        %493 = vmatprep.subr.bf16.mxu0 0
        %494 = vmatpush1.bf16.msra.mxu0 %v475
        %495 = vmatprep.subr.bf16.mxu0 0
        %496 = vmatpush1.bf16.msra.mxu0 %v476
        %497 = vmatprep.subr.bf16.mxu0 0
        %498 = vmatpush1.bf16.msra.mxu0 %v477
        %499 = vmatprep.subr.bf16.mxu0 0
        %500 = vmatpush1.bf16.msra.mxu0 %v478
        %501 = vmatprep.subr.bf16.mxu0 0
        %502 = vmatpush1.bf16.msra.mxu0 %v479
        %503 = vmatprep.subr.bf16.mxu0 0
        %504 = vmatpush1.bf16.msra.mxu0 %v480
        %505 = vmatprep.subr.bf16.mxu0 0
        %506 = vmatpush1.bf16.msra.mxu0 0
        %507 = vmatprep.subr.bf16.mxu0 0
        %508 = vmatpush1.bf16.msra.mxu0 0
        %509 = vmatprep.subr.bf16.mxu0 0
        %510 = vmatpush1.bf16.msra.mxu0 0
        %511 = vmatprep.subr.bf16.mxu0 0
        %512 = vmatpush1.bf16.msra.mxu0 0
        %513 = vmatprep.subr.bf16.mxu0 0
        %514 = vmatpush1.bf16.msra.mxu0 0
        %515 = vmatprep.subr.bf16.mxu0 0
        %516 = vmatpush1.bf16.msra.mxu0 0
        %517 = vmatprep.subr.bf16.mxu0 0
        %518 = vmatpush1.bf16.msra.mxu0 0
        %519 = vmatprep.subr.bf16.mxu0 0
        %520 = vmatpush1.bf16.msra.mxu0 0
        %521 = vmatprep.mubr.bf16.mxu0 0
        %522 = vmatmul.mubr.bf16.gmra.mrb[0].mxu0 %v440
        %v523 = vpop.f32.mrb[0].mxu0
        %v524 = vadd.f32 0.0, %v523
        %v525 = vpop.f32.mrb[0].mxu0
        %v526 = vpop.f32.mrb[0].mxu0
        %v527 = vadd.f32 0.0, %v526
        %v528 = vpop.f32.mrb[0].mxu0
        %529 = vdwg.mxu0
        %v530 = vadd.f32 %v524, 0.0
        %vm533 = vcmask 1046528
        %v534 = vrot.slane %v524, 1
        %v535 = vrot.slane %v527, 1
        %v536 = vsel %vm533, %v534, %v535
        %v538 = vrot.slane %v536, 4
        %v539 = vadd.f32 %v536, %v538
        %v540 = vrot.slane %v539, 2
        %v541 = vadd.f32 %v539, %v540
        %v542 = vrot.slane %v541, 1
        %v543 = vadd.f32 %v541, %v542
        %v544 = vrcp.pop 8.0
        %v545 = vmul.f32 %v543, %v544
        %v546 = vld [vmem:[#allocation10] sm:$0xf]
        %v547 = vld [vmem:[#allocation10 + $0x4] sm:$0xf]
        %v548 = vld [vmem:[#allocation10 + $0x8] sm:$0xf]
        %v549 = vld [vmem:[#allocation10 + $0xc] sm:$0xf]
        %v550 = vld [vmem:[#allocation10 + $0x10] sm:$0xf]
        %v551 = vld [vmem:[#allocation10 + $0x14] sm:$0xf]
        %v552 = vld [vmem:[#allocation10 + $0x18] sm:$0xf]
        %v553 = vld [vmem:[#allocation10 + $0x1c] sm:$0xf]
        %v554 = vld [vmem:[#allocation10 + $0x20] sm:$0xf]
        %v555 = vld [vmem:[#allocation10 + $0x24] sm:$0xf]
        %v556 = vld [vmem:[#allocation10 + $0x28] sm:$0xf]
        %v557 = vld [vmem:[#allocation10 + $0x2c] sm:$0xf]
        %v558 = vld [vmem:[#allocation10 + $0x30] sm:$0xf]
        %v559 = vld [vmem:[#allocation10 + $0x34] sm:$0xf]
        %v560 = vld [vmem:[#allocation10 + $0x38] sm:$0xf]
        %v561 = vld [vmem:[#allocation10 + $0x3c] sm:$0xf]
        %v562 = vpack.c.bf16 %v530, %v530
        %v563 = vld [vmem:[#allocation11] sm:$0xf]
        %v564 = vld [vmem:[#allocation11 + $0x4] sm:$0xf]
        %v565 = vld [vmem:[#allocation11 + $0x8] sm:$0xf]
        %v566 = vld [vmem:[#allocation11 + $0xc] sm:$0xf]
        %v567 = vld [vmem:[#allocation11 + $0x10] sm:$0xf]
        %v568 = vld [vmem:[#allocation11 + $0x14] sm:$0xf]
        %v569 = vld [vmem:[#allocation11 + $0x18] sm:$0xf]
        %v570 = vld [vmem:[#allocation11 + $0x1c] sm:$0xf]
        %v571 = vld [vmem:[#allocation11 + $0x20] sm:$0xf]
        %v572 = vld [vmem:[#allocation11 + $0x24] sm:$0xf]
        %v573 = vld [vmem:[#allocation11 + $0x28] sm:$0xf]
        %v574 = vld [vmem:[#allocation11 + $0x2c] sm:$0xf]
        %v575 = vld [vmem:[#allocation11 + $0x30] sm:$0xf]
        %v576 = vld [vmem:[#allocation11 + $0x34] sm:$0xf]
        %v577 = vld [vmem:[#allocation11 + $0x38] sm:$0xf]
        %v578 = vld [vmem:[#allocation11 + $0x3c] sm:$0xf]
        %v579 = vpack.c.bf16 %v545, %v545
        %v596 = vunpack.c.l.b16 %v563
        %v597 = vunpack.c.l.b16 %v564
        %v598 = vunpack.c.l.b16 %v565
        %v599 = vunpack.c.l.b16 %v566
        %v600 = vunpack.c.l.b16 %v567
        %v601 = vunpack.c.l.b16 %v568
        %v602 = vunpack.c.l.b16 %v569
        %v603 = vunpack.c.l.b16 %v570
        %v604 = vunpack.c.l.b16 %v571
        %v605 = vunpack.c.l.b16 %v572
        %v606 = vunpack.c.l.b16 %v573
        %v607 = vunpack.c.l.b16 %v574
        %v608 = vunpack.c.l.b16 %v575
        %v609 = vunpack.c.l.b16 %v576
        %v610 = vunpack.c.l.b16 %v577
        %v611 = vunpack.c.l.b16 %v578
        %v612 = vpack.c.b16 %v597, %v596
        %v613 = vpack.c.b16 %v599, %v598
        %v614 = vpack.c.b16 %v601, %v600
        %v615 = vpack.c.b16 %v603, %v602
        %v616 = vpack.c.b16 %v605, %v604
        %v617 = vpack.c.b16 %v607, %v606
        %v618 = vpack.c.b16 %v609, %v608
        %v619 = vpack.c.b16 %v611, %v610
        %628 = vmatprep.subr.bf16.mxu0 0
        %629 = vmatpush1.bf16.msra.mxu0 %v612
        %630 = vmatprep.subr.bf16.mxu0 0
        %631 = vmatpush1.bf16.msra.mxu0 %v613
        %632 = vmatprep.subr.bf16.mxu0 0
        %633 = vmatpush1.bf16.msra.mxu0 %v614
        %634 = vmatprep.subr.bf16.mxu0 0
        %635 = vmatpush1.bf16.msra.mxu0 %v615
        %636 = vmatprep.subr.bf16.mxu0 0
        %637 = vmatpush1.bf16.msra.mxu0 %v616
        %638 = vmatprep.subr.bf16.mxu0 0
        %639 = vmatpush1.bf16.msra.mxu0 %v617
        %640 = vmatprep.subr.bf16.mxu0 0
        %641 = vmatpush1.bf16.msra.mxu0 %v618
        %642 = vmatprep.subr.bf16.mxu0 0
        %643 = vmatpush1.bf16.msra.mxu0 %v619
        %644 = vmatprep.subr.bf16.mxu0 0
        %645 = vmatpush1.bf16.msra.mxu0 0
        %646 = vmatprep.subr.bf16.mxu0 0
        %647 = vmatpush1.bf16.msra.mxu0 0
        %648 = vmatprep.subr.bf16.mxu0 0
        %649 = vmatpush1.bf16.msra.mxu0 0
        %650 = vmatprep.subr.bf16.mxu0 0
        %651 = vmatpush1.bf16.msra.mxu0 0
        %652 = vmatprep.subr.bf16.mxu0 0
        %653 = vmatpush1.bf16.msra.mxu0 0
        %654 = vmatprep.subr.bf16.mxu0 0
        %655 = vmatpush1.bf16.msra.mxu0 0
        %656 = vmatprep.subr.bf16.mxu0 0
        %657 = vmatpush1.bf16.msra.mxu0 0
        %658 = vmatprep.subr.bf16.mxu0 0
        %659 = vmatpush1.bf16.msra.mxu0 0
        %660 = vmatprep.mubr.bf16.mxu0 0
        %661 = vmatmul.mubr.bf16.gmra.mrb[0].mxu0 %v579
        %v662 = vpop.f32.mrb[0].mxu0
        %v663 = vadd.f32 0.0, %v662
        %v664 = vpop.f32.mrb[0].mxu0
        %v665 = vpop.f32.mrb[0].mxu0
        %v666 = vpop.f32.mrb[0].mxu0
        %667 = vdwg.mxu0
        %v684 = vunpack.c.l.b16 %v546
        %v685 = vunpack.c.l.b16 %v547
        %v686 = vunpack.c.l.b16 %v548
        %v687 = vunpack.c.l.b16 %v549
        %v688 = vunpack.c.l.b16 %v550
        %v689 = vunpack.c.l.b16 %v551
        %v690 = vunpack.c.l.b16 %v552
        %v691 = vunpack.c.l.b16 %v553
        %v692 = vunpack.c.l.b16 %v554
        %v693 = vunpack.c.l.b16 %v555
        %v694 = vunpack.c.l.b16 %v556
        %v695 = vunpack.c.l.b16 %v557
        %v696 = vunpack.c.l.b16 %v558
        %v697 = vunpack.c.l.b16 %v559
        %v698 = vunpack.c.l.b16 %v560
        %v699 = vunpack.c.l.b16 %v561
        %v700 = vpack.c.b16 %v685, %v684
        %v701 = vpack.c.b16 %v687, %v686
        %v702 = vpack.c.b16 %v689, %v688
        %v703 = vpack.c.b16 %v691, %v690
        %v704 = vpack.c.b16 %v693, %v692
        %v705 = vpack.c.b16 %v695, %v694
        %v706 = vpack.c.b16 %v697, %v696
        %v707 = vpack.c.b16 %v699, %v698
        %716 = vmatprep.subr.bf16.mxu0 0
        %717 = vmatpush1.bf16.msra.mxu0 %v700
        %718 = vmatprep.subr.bf16.mxu0 0
        %719 = vmatpush1.bf16.msra.mxu0 %v701
        %720 = vmatprep.subr.bf16.mxu0 0
        %721 = vmatpush1.bf16.msra.mxu0 %v702
        %722 = vmatprep.subr.bf16.mxu0 0
        %723 = vmatpush1.bf16.msra.mxu0 %v703
        %724 = vmatprep.subr.bf16.mxu0 0
        %725 = vmatpush1.bf16.msra.mxu0 %v704
        %726 = vmatprep.subr.bf16.mxu0 0
        %727 = vmatpush1.bf16.msra.mxu0 %v705
        %728 = vmatprep.subr.bf16.mxu0 0
        %729 = vmatpush1.bf16.msra.mxu0 %v706
        %730 = vmatprep.subr.bf16.mxu0 0
        %731 = vmatpush1.bf16.msra.mxu0 %v707
        %732 = vmatprep.subr.bf16.mxu0 0
        %733 = vmatpush1.bf16.msra.mxu0 0
        %734 = vmatprep.subr.bf16.mxu0 0
        %735 = vmatpush1.bf16.msra.mxu0 0
        %736 = vmatprep.subr.bf16.mxu0 0
        %737 = vmatpush1.bf16.msra.mxu0 0
        %738 = vmatprep.subr.bf16.mxu0 0
        %739 = vmatpush1.bf16.msra.mxu0 0
        %740 = vmatprep.subr.bf16.mxu0 0
        %741 = vmatpush1.bf16.msra.mxu0 0
        %742 = vmatprep.subr.bf16.mxu0 0
        %743 = vmatpush1.bf16.msra.mxu0 0
        %744 = vmatprep.subr.bf16.mxu0 0
        %745 = vmatpush1.bf16.msra.mxu0 0
        %746 = vmatprep.subr.bf16.mxu0 0
        %747 = vmatpush1.bf16.msra.mxu0 0
        %748 = vmatprep.mubr.bf16.mxu0 0
        %749 = vmatmul.mubr.bf16.gmra.mrb[0].mxu0 %v562
        %v750 = vpop.f32.mrb[0].mxu0
        %v751 = vadd.f32 %v663, %v750
        %v752 = vpop.f32.mrb[0].mxu0
        %v753 = vpop.f32.mrb[0].mxu0
        %v754 = vpop.f32.mrb[0].mxu0
        %755 = vdwg.mxu0
        %v756 = vld [vmem:[#allocation13] sm:$0x1]
        %v757 = vadd.f32 %v751, %v756
        %758 = vst [vmem:[%s376] sm:$0x1] %v757
        %s759 = sand.u32 %s187, 1
        %s760 = scalar_lea.sflag [#allocation4], %s759
        %s761 = sand.u32 %s187, 1
        %s762 = scalar_lea.vmem [#allocation14], %s761
        // Predicated region
        $region77: #{vit_clip_dualpath_forward.7} parent=47 // pred_check
          %p763 = pneg %p197
        $region78: #{vit_clip_dualpath_forward.7} parent=47 // pred_check_branch
          %765 = sbr.rel (%p763) target = $region80
        $region79: #{vit_clip_dualpath_forward.7} parent=47 // pred_region
          %s767 = ssub.s32 16, 16
          %768 = vsyncadd %s760, %s767
          %s769 = smul.addr %s27, 16
          %s770 = scalar_lea.hbm %s7, %s769
          %s772 = sshll.u32 %s762, 4
          %s773 = int_to_ptr.vmem [resolvable:$true] %s772
          %775 = dma.vmem_to_hbm [thread:$0]  %s773, 16, %s770, %s760
        $region80: #{vit_clip_dualpath_forward.7} parent=47 // pred_fallthru
          _
      $region48: #{vit_clip_dualpath_forward.7} parent=5 // pred_fallthru
        _
      %p776 = scmp.le.s32.totalorder 2, %s22
      // Predicated region
      $region81: #{vit_clip_dualpath_forward.7} parent=5 // pred_check
        %p777 = pneg %p776
      $region82: #{vit_clip_dualpath_forward.7} parent=5 // pred_check_branch
        %779 = sbr.rel (%p777) target = $region84
      $region83: #{vit_clip_dualpath_forward.7} parent=5 // pred_region
        %s780 = ssub.s32 %s22, 2
        // Predicated region
        $region85: #{vit_clip_dualpath_forward.7} parent=83 // pred_check
          %p781 = pneg %p203
        $region86: #{vit_clip_dualpath_forward.7} parent=83 // pred_check_branch
          %783 = sbr.rel (%p781) target = $region88
        $region87: #{vit_clip_dualpath_forward.7} parent=83 // pred_region
          %s784 = sand.u32 %s188, 1
          %s785 = scalar_lea.sflag [#allocation4], %s784
          %s786 = sand.u32 %s188, 1
          %s787 = scalar_lea.vmem [#allocation14], %s786
          %788 = dma.done %s785, 16
        $region88: #{vit_clip_dualpath_forward.7} parent=83 // pred_fallthru
          _
      $region84: #{vit_clip_dualpath_forward.7} parent=5 // pred_fallthru
        _
    $region6: #{vit_clip_dualpath_forward.7} parent=1 // loop_footer
      %s26 = sadd.s32 1, %s22
    $region7: #{vit_clip_dualpath_forward.7} parent=1 // loop_footer_branch
      %21 = sbr.rel target = $region3
    $region8: #{vit_clip_dualpath_forward.7} parent=1 // loop_exit
      _
    %789 = vsyncpa [#allocation3], 1
    %s790 = scalar_lea.sflag [#allocation3], 1
    %791 = vsyncpa %s790, 1
    %792 = vsyncpa [#allocation6], 1
    %793 = vsyncpa [#allocation9], 1
    %794 = vsyncpa [#allocation12], 1
    %795 = vsyncpa [#allocation4], 1
    %s796 = scalar_lea.sflag [#allocation4], 1
    %797 = vsyncpa %s796, 1

</llo_original>
